<compile_context>
chip_gen: v7x
topology: tpu7x:2x2x1
jax: 0.10.0
libtpu: 0.0.40
codegen_flags: <defaults>
</compile_context>

<pallas_src>
import functools
import math

import jax
import jax.numpy as jnp
from jax import lax
from jax.experimental import pallas as pl
from jax.experimental.pallas import tpu as pltpu


# ----------------------------- hardware-aware config -------------------------


@functools.lru_cache(maxsize=None)
def _tpu_config():
    """VMEM budget + tile preferences derived from the actual TPU generation."""
    vmem_cap = 64 * 1024 * 1024  # conservative (v7x-sized) fallback
    try:
        info = pltpu.get_tpu_info()
        vmem_cap = int(getattr(info, "vmem_capacity_bytes", vmem_cap))
    except Exception:
        pass
    if vmem_cap >= 100 * 1024 * 1024:  # v5e / v6e class: 128 MiB VMEM per core
        return {"vmem_limit": 100 * 1024 * 1024, "tm": 512, "tn": 512, "tk": 1024}
    # v7x class: 64 MiB per core -> keep headroom for double buffering
    return {"vmem_limit": 48 * 1024 * 1024, "tm": 256, "tn": 256, "tk": 512}


def _sublane_align(dtype):
    """dtype-aware sublane alignment: 8 for 4-byte, 16 for 2-byte, 32 for 1-byte."""
    itemsize = jnp.dtype(dtype).itemsize
    return {4: 8, 2: 16, 1: 32}.get(itemsize, 8)


def _pick_tile(dim, pref, align):
    """Largest tile <= pref that divides dim and respects TPU alignment."""
    if dim <= pref:
        return dim
    t = (pref // align) * align
    while t >= align:
        if dim % t == 0:
            return t
        t -= align
    return dim


# ----------------------------- Pallas kernels ------------------------------


def _ln_matmul_kernel(x_ref, lnw_ref, lnb_ref, w_ref, b_ref, o_ref, y_ref, *, eps):
    """y = LayerNorm(x); out = y @ W + b.  LN computed once per row block (j == 0),
    cached as bf16 in y_ref and reused for every N tile. Matmul is bf16 -> f32."""
    @pl.when(pl.program_id(1) == 0)
    def _ln():
        x = x_ref[...].astype(jnp.float32)                    # (tm, D)
        d = x.shape[-1]
        mean = jnp.mean(x, axis=-1, keepdims=True)
        diff = x - mean
        var = jnp.sum(diff * diff, axis=-1, keepdims=True) * (1.0 / (d - 1))  # ddof=1
        inv = 1.0 / (jnp.sqrt(var) + eps)                     # eps added to std (ref)
        y = (lnw_ref[...].astype(jnp.float32) * diff * inv
             + lnb_ref[...].astype(jnp.float32))
        y_ref[...] = y.astype(y_ref.dtype)                    # bf16 MXU operand cache

    out = jnp.dot(y_ref[...], w_ref[...], preferred_element_type=jnp.float32)
    out = out + b_ref[...].astype(jnp.float32)
    o_ref[...] = out.astype(o_ref.dtype)


def _matmul_kernel(x_ref, w_ref, b_ref, o_ref, acc_ref):
    """Tiled (M,N,K) matmul, bf16 MXU operands, f32 VMEM accumulator, bias fused."""
    k = pl.program_id(2)

    @pl.when(k == 0)
    def _init():
        acc_ref[...] = jnp.zeros_like(acc_ref)

    acc_ref[...] += jnp.dot(x_ref[...].astype(jnp.bfloat16), w_ref[...],
                            preferred_element_type=jnp.float32)

    @pl.when(k == pl.num_programs(2) - 1)
    def _finalize():
        o_ref[...] = (acc_ref[...] + b_ref[...].astype(jnp.float32)).astype(o_ref.dtype)


def _attn_kernel(q_ref, kv_ref, wo_ref, bo_ref, res_ref, o_ref, *, n_heads, scale):
    """All heads of one (batch, Sq-tile) per step. kv layout is [K | V] on lanes.
    The output projection + bias + residual are fused: per-head outputs are pushed
    through the matching wo row-slab and accumulated in f32 (no lane concat),
    then stored once, lane-dense (D wide)."""
    q_all = q_ref[0]                                          # (tsq, D)
    kv_all = kv_ref[0]                                        # (Sk, 2*D)
    wo = wo_ref[...]                                          # (D, D) bf16
    d_model = q_all.shape[-1]
    dk = d_model // n_heads

    acc = res_ref[0].astype(jnp.float32) + bo_ref[...].astype(jnp.float32)  # (tsq, D)
    for h in range(n_heads):                                  # static per-head lane slices
        qh = q_all[:, h * dk:(h + 1) * dk].astype(jnp.bfloat16)
        kh = kv_all[:, h * dk:(h + 1) * dk].astype(jnp.bfloat16)
        vh = kv_all[:, d_model + h * dk: d_model + (h + 1) * dk].astype(jnp.bfloat16)
        # scores: contract the dk axes directly (no materialized k.T), f32 result
        s = lax.dot_general(qh, kh, (((1,), (1,)), ((), ())),
                            preferred_element_type=jnp.float32) * scale
        s = s - jnp.max(s, axis=-1, keepdims=True)
        p = jnp.exp(s)
        p = p * pl.reciprocal(jnp.sum(p, axis=-1, keepdims=True), approx=True)
        oh = jnp.dot(p.astype(jnp.bfloat16), vh, preferred_element_type=jnp.float32)
        # fused output projection: accumulate head h through its wo row slab
        acc = acc + jnp.dot(oh.astype(jnp.bfloat16), wo[h * dk:(h + 1) * dk, :],
                            preferred_element_type=jnp.float32)
    o_ref[0] = acc.astype(o_ref.dtype)


def _ffn_kernel(x_ref, lnw_ref, lnb_ref, w1_ref, b1_ref, w2_ref, b2_ref, o_ref,
                y_ref, acc_ref, *, eps):
    """FFN residual branch with d_ff tiled as a reduction axis:
       acc += relu(LN(x) @ W1[:, j] + b1[j]) @ W2[j, :];  out = x + acc + b2."""
    j = pl.program_id(1)

    @pl.when(j == 0)
    def _init():
        x = x_ref[...].astype(jnp.float32)
        d = x.shape[-1]
        mean = jnp.mean(x, axis=-1, keepdims=True)
        diff = x - mean
        var = jnp.sum(diff * diff, axis=-1, keepdims=True) * (1.0 / (d - 1))
        inv = 1.0 / (jnp.sqrt(var) + eps)
        y = (lnw_ref[...].astype(jnp.float32) * diff * inv
             + lnb_ref[...].astype(jnp.float32))
        y_ref[...] = y.astype(y_ref.dtype)                    # bf16 LN cache
        acc_ref[...] = jnp.zeros_like(acc_ref)

    h = jnp.dot(y_ref[...], w1_ref[...], preferred_element_type=jnp.float32)
    h = jnp.maximum(h + b1_ref[...].astype(jnp.float32), 0.0)
    acc_ref[...] += jnp.dot(h.astype(jnp.bfloat16), w2_ref[...],
                            preferred_element_type=jnp.float32)

    @pl.when(j == pl.num_programs(1) - 1)
    def _finalize():
        out = (x_ref[...].astype(jnp.float32) + acc_ref[...]
               + b2_ref[...].astype(jnp.float32))
        o_ref[...] = out.astype(o_ref.dtype)


# ----------------------------- wrappers -------------------------------------


def ln_matmul(x2d, ln_w, ln_b, w, b, *, eps=1e-6):
    cfg = _tpu_config()
    M, D = x2d.shape
    N = w.shape[1]
    tm = _pick_tile(M, cfg["tm"], _sublane_align(x2d.dtype))
    tn = _pick_tile(N, cfg["tn"], 128)
    grid = (M // tm, N // tn)
    w_bf = w.astype(jnp.bfloat16)
    flops = 2 * M * N * D + 10 * M * D
    bytes_accessed = (M * D * 4 + D * N * 2 + M * N * 4 + (2 * D + N) * 4)
    return pl.pallas_call(
        functools.partial(_ln_matmul_kernel, eps=eps),
        out_shape=jax.ShapeDtypeStruct((M, N), x2d.dtype),
        grid=grid,
        in_specs=[
            pl.BlockSpec((tm, D), lambda i, j: (i, 0)),
            pl.BlockSpec((1, D), lambda i, j: (0, 0)),
            pl.BlockSpec((1, D), lambda i, j: (0, 0)),
            pl.BlockSpec((D, tn), lambda i, j: (0, j)),
            pl.BlockSpec((1, tn), lambda i, j: (0, j)),
        ],
        out_specs=pl.BlockSpec((tm, tn), lambda i, j: (i, j)),
        scratch_shapes=[pltpu.VMEM((tm, D), jnp.bfloat16)],
        compiler_params=pltpu.CompilerParams(
            dimension_semantics=("parallel", "arbitrary"),
            vmem_limit_bytes=cfg["vmem_limit"]),
        cost_estimate=pl.CostEstimate(flops=int(flops), transcendentals=int(M),
                                      bytes_accessed=int(bytes_accessed)),
    )(x2d, ln_w.reshape(1, D), ln_b.reshape(1, D), w_bf, b.reshape(1, N))


def matmul(x2d, w, b):
    cfg = _tpu_config()
    M, K = x2d.shape
    N = w.shape[1]
    tm = _pick_tile(M, cfg["tm"], _sublane_align(x2d.dtype))
    tn = _pick_tile(N, cfg["tn"], 128)
    tk = _pick_tile(K, cfg["tk"], 128)
    grid = (M // tm, N // tn, K // tk)
    w_bf = w.astype(jnp.bfloat16)
    flops = 2 * M * N * K
    bytes_accessed = M * K * 4 + K * N * 2 + M * N * 4 + N * 4
    return pl.pallas_call(
        _matmul_kernel,
        out_shape=jax.ShapeDtypeStruct((M, N), x2d.dtype),
        grid=grid,
        in_specs=[
            pl.BlockSpec((tm, tk), lambda i, j, k: (i, k)),
            pl.BlockSpec((tk, tn), lambda i, j, k: (k, j)),
            pl.BlockSpec((1, tn), lambda i, j, k: (0, j)),
        ],
        out_specs=pl.BlockSpec((tm, tn), lambda i, j, k: (i, j)),
        scratch_shapes=[pltpu.VMEM((tm, tn), jnp.float32)],
        compiler_params=pltpu.CompilerParams(
            dimension_semantics=("parallel", "parallel", "arbitrary"),
            vmem_limit_bytes=cfg["vmem_limit"]),
        cost_estimate=pl.CostEstimate(flops=int(flops), transcendentals=0,
                                      bytes_accessed=int(bytes_accessed)),
    )(x2d, w_bf, b.reshape(1, N))


def attention(q_src, kv_src, residual, wo, bo, d_model, n_heads):
    """q_src: (B, Sq, D) or (B, Sq, 3D) with Q as its last D lanes (kvq layout).
       kv_src: array whose first 2D lanes are [K | V]. Output = residual + MHA@wo+bo."""
    cfg = _tpu_config()
    B, Sq, Dq = q_src.shape
    _, Sk, Dkv = kv_src.shape
    q_idx = Dq // d_model - 1          # last-dim *block* index of the Q slab
    dk = d_model // n_heads
    tsq = _pick_tile(Sq, 256, _sublane_align(q_src.dtype))
    grid = (B, Sq // tsq)              # second axis keeps both v7x cores busy
    wo_bf = wo.astype(jnp.bfloat16)
    flops = 4 * B * n_heads * Sq * Sk * dk + 2 * B * Sq * d_model * d_model
    trans = B * n_heads * Sq * Sk
    bytes_accessed = (B * Sq * Dq + B * Sk * Dkv + 2 * B * Sq * d_model) * 4 \
        + d_model * d_model * 2
    # TODO(synk): for very long Sk, stream K/V tiles with an online softmax instead
    # of holding the whole (1, Sk, 2D) block resident.
    return pl.pallas_call(
        functools.partial(_attn_kernel, n_heads=n_heads, scale=1.0 / math.sqrt(dk)),
        out_shape=jax.ShapeDtypeStruct((B, Sq, d_model), q_src.dtype),
        grid=grid,
        in_specs=[
            pl.BlockSpec((1, tsq, d_model), lambda b, s: (b, s, q_idx)),
            pl.BlockSpec((1, Sk, 2 * d_model), lambda b, s: (b, 0, 0)),
            pl.BlockSpec((d_model, d_model), lambda b, s: (0, 0)),
            pl.BlockSpec((1, d_model), lambda b, s: (0, 0)),
            pl.BlockSpec((1, tsq, d_model), lambda b, s: (b, s, 0)),
        ],
        out_specs=pl.BlockSpec((1, tsq, d_model), lambda b, s: (b, s, 0)),
        compiler_params=pltpu.CompilerParams(
            dimension_semantics=("parallel", "parallel"),
            vmem_limit_bytes=cfg["vmem_limit"]),
        cost_estimate=pl.CostEstimate(flops=int(flops), transcendentals=int(trans),
                                      bytes_accessed=int(bytes_accessed)),
    )(q_src, kv_src, wo_bf, bo.reshape(1, d_model), residual)


def ffn(x2d, ln_w, ln_b, w1, b1, w2, b2, *, eps=1e-6):
    cfg = _tpu_config()
    M, D = x2d.shape
    DFF = w1.shape[1]
    tm = _pick_tile(M, cfg["tm"], _sublane_align(x2d.dtype))
    tdff = _pick_tile(DFF, cfg["tk"], 128)
    grid = (M // tm, DFF // tdff)
    w1_bf = w1.astype(jnp.bfloat16)
    w2_bf = w2.astype(jnp.bfloat16)
    flops = 4 * M * D * DFF + 10 * M * D
    bytes_accessed = M * D * 4 * 2 + (D * DFF + DFF * D) * 2 + (DFF + 3 * D) * 4
    return pl.pallas_call(
        functools.partial(_ffn_kernel, eps=eps),
        out_shape=jax.ShapeDtypeStruct((M, D), x2d.dtype),
        grid=grid,
        in_specs=[
            pl.BlockSpec((tm, D), lambda i, j: (i, 0)),
            pl.BlockSpec((1, D), lambda i, j: (0, 0)),
            pl.BlockSpec((1, D), lambda i, j: (0, 0)),
            pl.BlockSpec((D, tdff), lambda i, j: (0, j)),
            pl.BlockSpec((1, tdff), lambda i, j: (0, j)),
            pl.BlockSpec((tdff, D), lambda i, j: (j, 0)),
            pl.BlockSpec((1, D), lambda i, j: (0, 0)),
        ],
        out_specs=pl.BlockSpec((tm, D), lambda i, j: (i, 0)),
        scratch_shapes=[pltpu.VMEM((tm, D), jnp.bfloat16),
                        pltpu.VMEM((tm, D), jnp.float32)],
        compiler_params=pltpu.CompilerParams(
            dimension_semantics=("parallel", "arbitrary"),
            vmem_limit_bytes=cfg["vmem_limit"]),
        cost_estimate=pl.CostEstimate(flops=int(flops), transcendentals=int(M),
                                      bytes_accessed=int(bytes_accessed)),
    )(x2d, ln_w.reshape(1, D), ln_b.reshape(1, D), w1_bf, b1.reshape(1, DFF),
      w2_bf, b2.reshape(1, D))


# ----------------------------- decoder forward -------------------------------


def decoder_forward(x, encoder_output, mask1, mask2, params, n_heads):
    # NOTE: the reference's `masked_fill` is non-in-place and its result is discarded,
    # so the masks have NO effect on the reference output. They are dropped here on
    # purpose; if the reference is ever fixed, masking must be added to _attn_kernel.
    del mask1, mask2

    B, S, D = x.shape
    Se = encoder_output.shape[1]
    x2 = x.reshape(B * S, D)
    enc2 = encoder_output.reshape(B * Se, D)

    # --- residual_connection[0]: self-attention ---------------------------------
    pa = params["masked_attn"]
    w_kvq = jnp.concatenate([pa["wk"], pa["wv"], pa["wq"]], axis=1)   # (D, 3D) [K|V|Q]
    b_kvq = jnp.concatenate([pa["bk"], pa["bv"], pa["bq"]], axis=0)
    kvq = ln_matmul(x2, params["ln0_w"], params["ln0_b"], w_kvq, b_kvq).reshape(B, S, 3 * D)
    x3 = attention(kvq, kvq, x2.reshape(B, S, D), pa["wo"], pa["bo"], D, n_heads)
    x2 = x3.reshape(B * S, D)

    # --- residual_connection[1]: cross-attention with encoder output ------------
    pc = params["attn"]
    w_kv = jnp.concatenate([pc["wk"], pc["wv"]], axis=1)              # (D, 2D) [K|V]
    b_kv = jnp.concatenate([pc["bk"], pc["bv"]], axis=0)
    q = ln_matmul(x2, params["ln1_w"], params["ln1_b"], pc["wq"], pc["bq"]).reshape(B, S, D)
    kv = matmul(enc2, w_kv, b_kv).reshape(B, Se, 2 * D)
    x3 = attention(q, kv, x2.reshape(B, S, D), pc["wo"], pc["bo"], D, n_heads)
    x2 = x3.reshape(B * S, D)

    # --- residual_connection[2]: feed-forward ------------------------------------
    # TODO(synk): reference code bug — `lambda x: self.feedforward` never calls the
    # FeedForward; intended `x + feedforward(norm(x))` is implemented here.
    pf = params["ff"]
    x2 = ffn(x2, params["ln2_w"], params["ln2_b"], pf["w1"], pf["b1"], pf["w2"], pf["b2"])

    return x2.reshape(B, S, D)


# ----------------------------- pure-JAX reference -----------------------------


def reference_forward(x, enc, params, n_heads, eps=1e-6):
    def ln(x, w, b):
        mean = jnp.mean(x, -1, keepdims=True)
        var = jnp.sum((x - mean) ** 2, -1, keepdims=True) / (x.shape[-1] - 1)
        return w * (x - mean) / (jnp.sqrt(var) + eps) + b

    def mha(q_in, k_in, v_in, p):
        B, Sq, D = q_in.shape
        Sk = k_in.shape[1]
        dk = D // n_heads
        q = (q_in @ p["wq"] + p["bq"]).reshape(B, Sq, n_heads, dk).transpose(0, 2, 1, 3)
        k = (k_in @ p["wk"] + p["bk"]).reshape(B, Sk, n_heads, dk).transpose(0, 2, 1, 3)
        v = (v_in @ p["wv"] + p["bv"]).reshape(B, Sk, n_heads, dk).transpose(0, 2, 1, 3)
        s = q @ k.transpose(0, 1, 3, 2) / math.sqrt(dk)
        a = jax.nn.softmax(s, -1)
        o = (a @ v).transpose(0, 2, 1, 3).reshape(B, Sq, D)
        return o @ p["wo"] + p["bo"]

    y = ln(x, params["ln0_w"], params["ln0_b"])
    x = x + mha(y, y, y, params["masked_attn"])
    y = ln(x, params["ln1_w"], params["ln1_b"])
    x = x + mha(y, enc, enc, params["attn"])
    y = ln(x, params["ln2_w"], params["ln2_b"])
    h = jnp.maximum(y @ params["ff"]["w1"] + params["ff"]["b1"], 0.0)
    return x + h @ params["ff"]["w2"] + params["ff"]["b2"]


# ----------------------------- param init -----------------------------------


def init_params(key, d_model, d_ff, n_heads, dtype=jnp.float32):
    def lin(k, din, dout):
        kw, kb = jax.random.split(k)
        bound = 1.0 / math.sqrt(din)
        w = jax.random.uniform(kw, (din, dout), dtype, -bound, bound)
        b = jax.random.uniform(kb, (dout,), dtype, -bound, bound)
        return w, b

    keys = jax.random.split(key, 16)

    def mha_params(ks):
        wq, bq = lin(ks[0], d_model, d_model)
        wk, bk = lin(ks[1], d_model, d_model)
        wv, bv = lin(ks[2], d_model, d_model)
        wo, bo = lin(ks[3], d_model, d_model)
        return dict(wq=wq, bq=bq, wk=wk, bk=bk, wv=wv, bv=bv, wo=wo, bo=bo)

    w1, b1 = lin(keys[8], d_model, d_ff)
    w2, b2 = lin(keys[9], d_ff, d_model)

    return dict(
        masked_attn=mha_params(keys[0:4]),
        attn=mha_params(keys[4:8]),
        ff=dict(w1=w1, b1=b1, w2=w2, b2=b2),
        ln0_w=jnp.ones((d_model,), dtype), ln0_b=jnp.zeros((d_model,), dtype),
        ln1_w=jnp.ones((d_model,), dtype), ln1_b=jnp.zeros((d_model,), dtype),
        ln2_w=jnp.ones((d_model,), dtype), ln2_b=jnp.zeros((d_model,), dtype),
    )


# ----------------------------- main ------------------------------------------


if __name__ == "__main__":
    # Small but lane-aligned shapes (d_model multiple of 128 keeps all blocks dense).
    B, S, D, H, DFF = 2, 16, 128, 4, 256

    key = jax.random.PRNGKey(0)
    kx, kenc, kp = jax.random.split(key, 3)

    x = jax.random.normal(kx, (B, S, D), jnp.float32)
    encoder_output = jax.random.normal(kenc, (B, S, D), jnp.float32)
    mask1 = jnp.tril(jnp.ones((S, S), jnp.int32))[None, None]   # unused (reference bug)
    mask2 = jnp.ones((B, 1, S, S), jnp.int32)                   # unused (reference bug)

    params = init_params(kp, D, DFF, H)

    out = jax.jit(
        functools.partial(decoder_forward, n_heads=H)
    )(x, encoder_output, mask1, mask2, params)
    out = jax.block_until_ready(out)

    ref = reference_forward(x, encoder_output, params, H)

    assert out.shape == (B, S, D)
    assert jnp.all(jnp.isfinite(out))
    # bf16 MXU operands (f32 accumulation) introduce ~1e-2-level error vs the f32
    # reference; f32 end-to-end would match to ~1e-5.
    assert jnp.allclose(out, ref, atol=3e-2, rtol=3e-2), float(jnp.max(jnp.abs(out - ref)))
    print("KERNEL_OK")
</pallas_src>

<mosaic_0001>
module attributes {stable_mosaic.version = 11 : i64} {
  func.func @_ln_matmul_kernel(%arg0: i32, %arg1: i32, %arg2: memref<32x128xf32, #tpu.memory_space<vmem>>, %arg3: memref<1x128xf32, #tpu.memory_space<vmem>>, %arg4: memref<1x128xf32, #tpu.memory_space<vmem>>, %arg5: memref<128x128xbf16, #tpu.memory_space<vmem>>, %arg6: memref<1x128xf32, #tpu.memory_space<vmem>>, %arg7: memref<32x128xf32, #tpu.memory_space<vmem>>, %arg8: memref<32x128xbf16, #tpu.memory_space<vmem>>) attributes {dimension_semantics = [#tpu.dimension_semantics<parallel>, #tpu.dimension_semantics<arbitrary>], iteration_bounds = array<i64: 1, 3>, scalar_prefetch = 0 : i64, scratch_operands = 1 : i64, tpu.core_type = #tpu.core_type<tc>, window_params = [{transform_indices = @transform_0, window_bounds = array<i64: 32, 128>}, {pipeline_mode = #tpu.pipeline_mode<synchronous>, transform_indices = @transform_1, window_bounds = array<i64: 1, 128>}, {pipeline_mode = #tpu.pipeline_mode<synchronous>, transform_indices = @transform_2, window_bounds = array<i64: 1, 128>}, {transform_indices = @transform_3, window_bounds = array<i64: 128, 128>}, {transform_indices = @transform_4, window_bounds = array<i64: 1, 128>}, {transform_indices = @transform_5, window_bounds = array<i64: 32, 128>}]} {
    %c0_i32 = arith.constant 0 : i32
    %0 = arith.cmpi eq, %arg1, %c0_i32 : i32
    %1 = arith.extui %0 : i1 to i32
    %c0_i32_0 = arith.constant 0 : i32
    %2 = arith.cmpi ne, %1, %c0_i32_0 : i32
    scf.if %2 {
      %c0_8 = arith.constant 0 : index
      %c0_9 = arith.constant 0 : index
      %10 = vector.load %arg2[%c0_8, %c0_9] : memref<32x128xf32, #tpu.memory_space<vmem>>, vector<32x128xf32>
      %cst_10 = arith.constant dense<0.000000e+00> : vector<32xf32>
      %11 = vector.multi_reduction <add>, %10, %cst_10 [1] : vector<32x128xf32> to vector<32xf32>
      %12 = vector.shape_cast %11 : vector<32xf32> to vector<32x1xf32>
      %cst_11 = arith.constant 1.280000e+02 : f32
      %13 = vector.broadcast %cst_11 : f32 to vector<32x1xf32>
      %14 = arith.divf %12, %13 : vector<32x1xf32>
      %15 = vector.broadcast %14 : vector<32x1xf32> to vector<32x128xf32>
      %16 = arith.subf %10, %15 : vector<32x128xf32>
      %17 = arith.mulf %16, %16 : vector<32x128xf32>
      %cst_12 = arith.constant dense<0.000000e+00> : vector<32xf32>
      %18 = vector.multi_reduction <add>, %17, %cst_12 [1] : vector<32x128xf32> to vector<32xf32>
      %19 = vector.shape_cast %18 : vector<32xf32> to vector<32x1xf32>
      %cst_13 = arith.constant 0.00787401571 : f32
      %20 = vector.broadcast %cst_13 : f32 to vector<32x1xf32>
      %21 = arith.mulf %19, %20 : vector<32x1xf32>
      %22 = math.sqrt %21 : vector<32x1xf32>
      %cst_14 = arith.constant 9.99999997E-7 : f32
      %23 = vector.broadcast %cst_14 : f32 to vector<32x1xf32>
      %24 = arith.addf %22, %23 : vector<32x1xf32>
      %cst_15 = arith.constant 1.000000e+00 : f32
      %25 = vector.broadcast %cst_15 : f32 to vector<32x1xf32>
      %26 = arith.divf %25, %24 : vector<32x1xf32>
      %c0_16 = arith.constant 0 : index
      %c0_17 = arith.constant 0 : index
      %27 = vector.load %arg3[%c0_16, %c0_17] : memref<1x128xf32, #tpu.memory_space<vmem>>, vector<1x128xf32>
      %28 = vector.broadcast %27 : vector<1x128xf32> to vector<32x128xf32>
      %29 = arith.mulf %28, %16 : vector<32x128xf32>
      %30 = vector.broadcast %26 : vector<32x1xf32> to vector<32x128xf32>
      %31 = arith.mulf %29, %30 : vector<32x128xf32>
      %c0_18 = arith.constant 0 : index
      %c0_19 = arith.constant 0 : index
      %32 = vector.load %arg4[%c0_18, %c0_19] : memref<1x128xf32, #tpu.memory_space<vmem>>, vector<1x128xf32>
      %33 = vector.broadcast %32 : vector<1x128xf32> to vector<32x128xf32>
      %34 = arith.addf %31, %33 : vector<32x128xf32>
      %35 = arith.truncf %34 : vector<32x128xf32> to vector<32x128xbf16>
      %c0_20 = arith.constant 0 : index
      %c0_21 = arith.constant 0 : index
      %36 = vector.load %arg8[%c0_20, %c0_21] : memref<32x128xbf16, #tpu.memory_space<vmem>>, vector<32x128xbf16>
      tpu.vector_store %arg8[%c0_20, %c0_21], %35 {strides = array<i32>} : memref<32x128xbf16, #tpu.memory_space<vmem>>, vector<32x128xbf16>,
    } else {
    }
    %c0 = arith.constant 0 : index
    %c0_1 = arith.constant 0 : index
    %3 = vector.load %arg8[%c0, %c0_1] : memref<32x128xbf16, #tpu.memory_space<vmem>>, vector<32x128xbf16>
    %c0_2 = arith.constant 0 : index
    %c0_3 = arith.constant 0 : index
    %4 = vector.load %arg5[%c0_2, %c0_3] : memref<128x128xbf16, #tpu.memory_space<vmem>>, vector<128x128xbf16>
    %cst = arith.constant dense<0.000000e+00> : vector<32x128xf32>
    %5 = tpu.matmul %3, %4, %cst {dimension_numbers = #tpu.dot_dimension_numbers<[1], [0], [0], [1], [0, 0, 1, 1], [], []>} : vector<32x128xbf16>, vector<128x128xbf16>, vector<32x128xf32> -> vector<32x128xf32>
    %c0_4 = arith.constant 0 : index
    %c0_5 = arith.constant 0 : index
    %6 = vector.load %arg6[%c0_4, %c0_5] : memref<1x128xf32, #tpu.memory_space<vmem>>, vector<1x128xf32>
    %7 = vector.broadcast %6 : vector<1x128xf32> to vector<32x128xf32>
    %8 = arith.addf %5, %7 : vector<32x128xf32>
    %c0_6 = arith.constant 0 : index
    %c0_7 = arith.constant 0 : index
    %9 = vector.load %arg7[%c0_6, %c0_7] : memref<32x128xf32, #tpu.memory_space<vmem>>, vector<32x128xf32>
    tpu.vector_store %arg7[%c0_6, %c0_7], %8 {strides = array<i32>} : memref<32x128xf32, #tpu.memory_space<vmem>>, vector<32x128xf32>,
    return
  }
  func.func @transform_0(%arg0: i32, %arg1: i32) -> (i32, i32) {
    %c0_i32 = arith.constant 0 : i32
    %c0_i32_0 = arith.constant 0 : i32
    return %arg0, %c0_i32 : i32, i32
  }
  func.func @transform_1(%arg0: i32, %arg1: i32) -> (i32, i32) {
    %c0_i32 = arith.constant 0 : i32
    %c0_i32_0 = arith.constant 0 : i32
    %c0_i32_1 = arith.constant 0 : i32
    return %c0_i32, %c0_i32_0 : i32, i32
  }
  func.func @transform_2(%arg0: i32, %arg1: i32) -> (i32, i32) {
    %c0_i32 = arith.constant 0 : i32
    %c0_i32_0 = arith.constant 0 : i32
    %c0_i32_1 = arith.constant 0 : i32
    return %c0_i32, %c0_i32_0 : i32, i32
  }
  func.func @transform_3(%arg0: i32, %arg1: i32) -> (i32, i32) {
    %c0_i32 = arith.constant 0 : i32
    %c0_i32_0 = arith.constant 0 : i32
    return %c0_i32, %arg1 : i32, i32
  }
  func.func @transform_4(%arg0: i32, %arg1: i32) -> (i32, i32) {
    %c0_i32 = arith.constant 0 : i32
    %c0_i32_0 = arith.constant 0 : i32
    return %c0_i32, %arg1 : i32, i32
  }
  func.func @transform_5(%arg0: i32, %arg1: i32) -> (i32, i32) {
    %c0_i32 = arith.constant 0 : i32
    return %arg0, %arg1 : i32, i32
  }
}

module attributes {stable_mosaic.version = 11 : i64} {
  func.func @_ln_matmul_kernel(%arg0: i32, %arg1: i32, %arg2: memref<32x128xf32, #tpu.memory_space<vmem>>, %arg3: memref<1x128xf32, #tpu.memory_space<vmem>>, %arg4: memref<1x128xf32, #tpu.memory_space<vmem>>, %arg5: memref<128x128xbf16, #tpu.memory_space<vmem>>, %arg6: memref<1x128xf32, #tpu.memory_space<vmem>>, %arg7: memref<32x128xf32, #tpu.memory_space<vmem>>, %arg8: memref<32x128xbf16, #tpu.memory_space<vmem>>) attributes {dimension_semantics = [#tpu.dimension_semantics<parallel>, #tpu.dimension_semantics<arbitrary>], iteration_bounds = array<i64: 1, 1>, scalar_prefetch = 0 : i64, scratch_operands = 1 : i64, tpu.core_type = #tpu.core_type<tc>, window_params = [{transform_indices = @transform_0, window_bounds = array<i64: 32, 128>}, {pipeline_mode = #tpu.pipeline_mode<synchronous>, transform_indices = @transform_1, window_bounds = array<i64: 1, 128>}, {pipeline_mode = #tpu.pipeline_mode<synchronous>, transform_indices = @transform_2, window_bounds = array<i64: 1, 128>}, {transform_indices = @transform_3, window_bounds = array<i64: 128, 128>}, {transform_indices = @transform_4, window_bounds = array<i64: 1, 128>}, {transform_indices = @transform_5, window_bounds = array<i64: 32, 128>}]} {
    %c0_i32 = arith.constant 0 : i32
    %0 = arith.cmpi eq, %arg1, %c0_i32 : i32
    %1 = arith.extui %0 : i1 to i32
    %c0_i32_0 = arith.constant 0 : i32
    %2 = arith.cmpi ne, %1, %c0_i32_0 : i32
    scf.if %2 {
      %c0_8 = arith.constant 0 : index
      %c0_9 = arith.constant 0 : index
      %10 = vector.load %arg2[%c0_8, %c0_9] : memref<32x128xf32, #tpu.memory_space<vmem>>, vector<32x128xf32>
      %cst_10 = arith.constant dense<0.000000e+00> : vector<32xf32>
      %11 = vector.multi_reduction <add>, %10, %cst_10 [1] : vector<32x128xf32> to vector<32xf32>
      %12 = vector.shape_cast %11 : vector<32xf32> to vector<32x1xf32>
      %cst_11 = arith.constant 1.280000e+02 : f32
      %13 = vector.broadcast %cst_11 : f32 to vector<32x1xf32>
      %14 = arith.divf %12, %13 : vector<32x1xf32>
      %15 = vector.broadcast %14 : vector<32x1xf32> to vector<32x128xf32>
      %16 = arith.subf %10, %15 : vector<32x128xf32>
      %17 = arith.mulf %16, %16 : vector<32x128xf32>
      %cst_12 = arith.constant dense<0.000000e+00> : vector<32xf32>
      %18 = vector.multi_reduction <add>, %17, %cst_12 [1] : vector<32x128xf32> to vector<32xf32>
      %19 = vector.shape_cast %18 : vector<32xf32> to vector<32x1xf32>
      %cst_13 = arith.constant 0.00787401571 : f32
      %20 = vector.broadcast %cst_13 : f32 to vector<32x1xf32>
      %21 = arith.mulf %19, %20 : vector<32x1xf32>
      %22 = math.sqrt %21 : vector<32x1xf32>
      %cst_14 = arith.constant 9.99999997E-7 : f32
      %23 = vector.broadcast %cst_14 : f32 to vector<32x1xf32>
      %24 = arith.addf %22, %23 : vector<32x1xf32>
      %cst_15 = arith.constant 1.000000e+00 : f32
      %25 = vector.broadcast %cst_15 : f32 to vector<32x1xf32>
      %26 = arith.divf %25, %24 : vector<32x1xf32>
      %c0_16 = arith.constant 0 : index
      %c0_17 = arith.constant 0 : index
      %27 = vector.load %arg3[%c0_16, %c0_17] : memref<1x128xf32, #tpu.memory_space<vmem>>, vector<1x128xf32>
      %28 = vector.broadcast %27 : vector<1x128xf32> to vector<32x128xf32>
      %29 = arith.mulf %28, %16 : vector<32x128xf32>
      %30 = vector.broadcast %26 : vector<32x1xf32> to vector<32x128xf32>
      %31 = arith.mulf %29, %30 : vector<32x128xf32>
      %c0_18 = arith.constant 0 : index
      %c0_19 = arith.constant 0 : index
      %32 = vector.load %arg4[%c0_18, %c0_19] : memref<1x128xf32, #tpu.memory_space<vmem>>, vector<1x128xf32>
      %33 = vector.broadcast %32 : vector<1x128xf32> to vector<32x128xf32>
      %34 = arith.addf %31, %33 : vector<32x128xf32>
      %35 = arith.truncf %34 : vector<32x128xf32> to vector<32x128xbf16>
      %c0_20 = arith.constant 0 : index
      %c0_21 = arith.constant 0 : index
      %36 = vector.load %arg8[%c0_20, %c0_21] : memref<32x128xbf16, #tpu.memory_space<vmem>>, vector<32x128xbf16>
      tpu.vector_store %arg8[%c0_20, %c0_21], %35 {strides = array<i32>} : memref<32x128xbf16, #tpu.memory_space<vmem>>, vector<32x128xbf16>,
    } else {
    }
    %c0 = arith.constant 0 : index
    %c0_1 = arith.constant 0 : index
    %3 = vector.load %arg8[%c0, %c0_1] : memref<32x128xbf16, #tpu.memory_space<vmem>>, vector<32x128xbf16>
    %c0_2 = arith.constant 0 : index
    %c0_3 = arith.constant 0 : index
    %4 = vector.load %arg5[%c0_2, %c0_3] : memref<128x128xbf16, #tpu.memory_space<vmem>>, vector<128x128xbf16>
    %cst = arith.constant dense<0.000000e+00> : vector<32x128xf32>
    %5 = tpu.matmul %3, %4, %cst {dimension_numbers = #tpu.dot_dimension_numbers<[1], [0], [0], [1], [0, 0, 1, 1], [], []>} : vector<32x128xbf16>, vector<128x128xbf16>, vector<32x128xf32> -> vector<32x128xf32>
    %c0_4 = arith.constant 0 : index
    %c0_5 = arith.constant 0 : index
    %6 = vector.load %arg6[%c0_4, %c0_5] : memref<1x128xf32, #tpu.memory_space<vmem>>, vector<1x128xf32>
    %7 = vector.broadcast %6 : vector<1x128xf32> to vector<32x128xf32>
    %8 = arith.addf %5, %7 : vector<32x128xf32>
    %c0_6 = arith.constant 0 : index
    %c0_7 = arith.constant 0 : index
    %9 = vector.load %arg7[%c0_6, %c0_7] : memref<32x128xf32, #tpu.memory_space<vmem>>, vector<32x128xf32>
    tpu.vector_store %arg7[%c0_6, %c0_7], %8 {strides = array<i32>} : memref<32x128xf32, #tpu.memory_space<vmem>>, vector<32x128xf32>,
    return
  }
  func.func @transform_0(%arg0: i32, %arg1: i32) -> (i32, i32) {
    %c0_i32 = arith.constant 0 : i32
    %c0_i32_0 = arith.constant 0 : i32
    return %arg0, %c0_i32 : i32, i32
  }
  func.func @transform_1(%arg0: i32, %arg1: i32) -> (i32, i32) {
    %c0_i32 = arith.constant 0 : i32
    %c0_i32_0 = arith.constant 0 : i32
    %c0_i32_1 = arith.constant 0 : i32
    return %c0_i32, %c0_i32_0 : i32, i32
  }
  func.func @transform_2(%arg0: i32, %arg1: i32) -> (i32, i32) {
    %c0_i32 = arith.constant 0 : i32
    %c0_i32_0 = arith.constant 0 : i32
    %c0_i32_1 = arith.constant 0 : i32
    return %c0_i32, %c0_i32_0 : i32, i32
  }
  func.func @transform_3(%arg0: i32, %arg1: i32) -> (i32, i32) {
    %c0_i32 = arith.constant 0 : i32
    %c0_i32_0 = arith.constant 0 : i32
    return %c0_i32, %arg1 : i32, i32
  }
  func.func @transform_4(%arg0: i32, %arg1: i32) -> (i32, i32) {
    %c0_i32 = arith.constant 0 : i32
    %c0_i32_0 = arith.constant 0 : i32
    return %c0_i32, %arg1 : i32, i32
  }
  func.func @transform_5(%arg0: i32, %arg1: i32) -> (i32, i32) {
    %c0_i32 = arith.constant 0 : i32
    return %arg0, %arg1 : i32, i32
  }
}

module attributes {stable_mosaic.version = 11 : i64} {
  func.func @_attn_kernel(%arg0: i32, %arg1: i32, %arg2: memref<1x16x128xf32, #tpu.memory_space<vmem>>, %arg3: memref<1x16x256xf32, #tpu.memory_space<vmem>>, %arg4: memref<128x128xbf16, #tpu.memory_space<vmem>>, %arg5: memref<1x128xf32, #tpu.memory_space<vmem>>, %arg6: memref<1x16x128xf32, #tpu.memory_space<vmem>>, %arg7: memref<1x16x128xf32, #tpu.memory_space<vmem>>) attributes {dimension_semantics = [#tpu.dimension_semantics<parallel>, #tpu.dimension_semantics<parallel>], iteration_bounds = array<i64: 2, 1>, scalar_prefetch = 0 : i64, scratch_operands = 0 : i64, tpu.core_type = #tpu.core_type<tc>, window_params = [{transform_indices = @transform_0, window_bounds = array<i64: 1, 16, 128>}, {transform_indices = @transform_1, window_bounds = array<i64: 1, 16, 256>}, {pipeline_mode = #tpu.pipeline_mode<synchronous>, transform_indices = @transform_2, window_bounds = array<i64: 128, 128>}, {pipeline_mode = #tpu.pipeline_mode<synchronous>, transform_indices = @transform_3, window_bounds = array<i64: 1, 128>}, {transform_indices = @transform_4, window_bounds = array<i64: 1, 16, 128>}, {transform_indices = @transform_5, window_bounds = array<i64: 1, 16, 128>}]} {
    %c0 = arith.constant 0 : index
    %c0_0 = arith.constant 0 : index
    %c0_1 = arith.constant 0 : index
    %0 = vector.load %arg2[%c0, %c0_0, %c0_1] : memref<1x16x128xf32, #tpu.memory_space<vmem>>, vector<1x16x128xf32>
    %1 = vector.shape_cast %0 : vector<1x16x128xf32> to vector<16x128xf32>
    %c0_2 = arith.constant 0 : index
    %c0_3 = arith.constant 0 : index
    %c0_4 = arith.constant 0 : index
    %2 = vector.load %arg3[%c0_2, %c0_3, %c0_4] : memref<1x16x256xf32, #tpu.memory_space<vmem>>, vector<1x16x256xf32>
    %3 = vector.shape_cast %2 : vector<1x16x256xf32> to vector<16x256xf32>
    %c0_5 = arith.constant 0 : index
    %c0_6 = arith.constant 0 : index
    %4 = vector.load %arg4[%c0_5, %c0_6] : memref<128x128xbf16, #tpu.memory_space<vmem>>, vector<128x128xbf16>
    %c0_7 = arith.constant 0 : index
    %c0_8 = arith.constant 0 : index
    %c0_9 = arith.constant 0 : index
    %5 = vector.load %arg6[%c0_7, %c0_8, %c0_9] : memref<1x16x128xf32, #tpu.memory_space<vmem>>, vector<1x16x128xf32>
    %6 = vector.shape_cast %5 : vector<1x16x128xf32> to vector<16x128xf32>
    %c0_10 = arith.constant 0 : index
    %c0_11 = arith.constant 0 : index
    %7 = vector.load %arg5[%c0_10, %c0_11] : memref<1x128xf32, #tpu.memory_space<vmem>>, vector<1x128xf32>
    %8 = vector.broadcast %7 : vector<1x128xf32> to vector<16x128xf32>
    %9 = arith.addf %6, %8 : vector<16x128xf32>
    %10 = vector.extract_strided_slice %1 {offsets = [0, 0], sizes = [16, 32], strides = [1, 1]} : vector<16x128xf32> to vector<16x32xf32>
    %11 = arith.truncf %10 : vector<16x32xf32> to vector<16x32xbf16>
    %12 = vector.extract_strided_slice %3 {offsets = [0, 0], sizes = [16, 32], strides = [1, 1]} : vector<16x256xf32> to vector<16x32xf32>
    %13 = arith.truncf %12 : vector<16x32xf32> to vector<16x32xbf16>
    %14 = vector.extract_strided_slice %3 {offsets = [0, 128], sizes = [16, 32], strides = [1, 1]} : vector<16x256xf32> to vector<16x32xf32>
    %15 = arith.truncf %14 : vector<16x32xf32> to vector<16x32xbf16>
    %cst = arith.constant dense<0.000000e+00> : vector<16x16xf32>
    %16 = tpu.matmul %11, %13, %cst {dimension_numbers = #tpu.dot_dimension_numbers<[1], [1], [0], [0], [0, 0, 1, 0], [], []>} : vector<16x32xbf16>, vector<16x32xbf16>, vector<16x16xf32> -> vector<16x16xf32>
    %cst_12 = arith.constant 0.176776692 : f32
    %17 = vector.broadcast %cst_12 : f32 to vector<16x16xf32>
    %18 = arith.mulf %16, %17 : vector<16x16xf32>
    %cst_13 = arith.constant dense<0xFF800000> : vector<16xf32>
    %19 = vector.multi_reduction <maximumf>, %18, %cst_13 [1] : vector<16x16xf32> to vector<16xf32>
    %20 = vector.shape_cast %19 : vector<16xf32> to vector<16x1xf32>
    %21 = vector.broadcast %20 : vector<16x1xf32> to vector<16x16xf32>
    %22 = arith.subf %18, %21 : vector<16x16xf32>
    %23 = math.exp %22 : vector<16x16xf32>
    %cst_14 = arith.constant dense<0.000000e+00> : vector<16xf32>
    %24 = vector.multi_reduction <add>, %23, %cst_14 [1] : vector<16x16xf32> to vector<16xf32>
    %25 = vector.shape_cast %24 : vector<16xf32> to vector<16x1xf32>
    %26 = tpu.reciprocal %25 {approx = true} : vector<16x1xf32> -> vector<16x1xf32>
    %27 = vector.broadcast %26 : vector<16x1xf32> to vector<16x16xf32>
    %28 = arith.mulf %23, %27 : vector<16x16xf32>
    %29 = arith.truncf %28 : vector<16x16xf32> to vector<16x16xbf16>
    %cst_15 = arith.constant dense<0.000000e+00> : vector<16x32xf32>
    %30 = tpu.matmul %29, %15, %cst_15 {dimension_numbers = #tpu.dot_dimension_numbers<[1], [0], [0], [1], [0, 0, 1, 1], [], []>} : vector<16x16xbf16>, vector<16x32xbf16>, vector<16x32xf32> -> vector<16x32xf32>
    %31 = arith.truncf %30 : vector<16x32xf32> to vector<16x32xbf16>
    %32 = vector.extract_strided_slice %4 {offsets = [0, 0], sizes = [32, 128], strides = [1, 1]} : vector<128x128xbf16> to vector<32x128xbf16>
    %cst_16 = arith.constant dense<0.000000e+00> : vector<16x128xf32>
    %33 = tpu.matmul %31, %32, %cst_16 {dimension_numbers = #tpu.dot_dimension_numbers<[1], [0], [0], [1], [0, 0, 1, 1], [], []>} : vector<16x32xbf16>, vector<32x128xbf16>, vector<16x128xf32> -> vector<16x128xf32>
    %34 = arith.addf %9, %33 : vector<16x128xf32>
    %35 = vector.extract_strided_slice %1 {offsets = [0, 32], sizes = [16, 32], strides = [1, 1]} : vector<16x128xf32> to vector<16x32xf32>
    %36 = arith.truncf %35 : vector<16x32xf32> to vector<16x32xbf16>
    %37 = vector.extract_strided_slice %3 {offsets = [0, 32], sizes = [16, 32], strides = [1, 1]} : vector<16x256xf32> to vector<16x32xf32>
    %38 = arith.truncf %37 : vector<16x32xf32> to vector<16x32xbf16>
    %39 = vector.extract_strided_slice %3 {offsets = [0, 160], sizes = [16, 32], strides = [1, 1]} : vector<16x256xf32> to vector<16x32xf32>
    %40 = arith.truncf %39 : vector<16x32xf32> to vector<16x32xbf16>
    %cst_17 = arith.constant dense<0.000000e+00> : vector<16x16xf32>
    %41 = tpu.matmul %36, %38, %cst_17 {dimension_numbers = #tpu.dot_dimension_numbers<[1], [1], [0], [0], [0, 0, 1, 0], [], []>} : vector<16x32xbf16>, vector<16x32xbf16>, vector<16x16xf32> -> vector<16x16xf32>
    %cst_18 = arith.constant 0.176776692 : f32
    %42 = vector.broadcast %cst_18 : f32 to vector<16x16xf32>
    %43 = arith.mulf %41, %42 : vector<16x16xf32>
    %cst_19 = arith.constant dense<0xFF800000> : vector<16xf32>
    %44 = vector.multi_reduction <maximumf>, %43, %cst_19 [1] : vector<16x16xf32> to vector<16xf32>
    %45 = vector.shape_cast %44 : vector<16xf32> to vector<16x1xf32>
    %46 = vector.broadcast %45 : vector<16x1xf32> to vector<16x16xf32>
    %47 = arith.subf %43, %46 : vector<16x16xf32>
    %48 = math.exp %47 : vector<16x16xf32>
    %cst_20 = arith.constant dense<0.000000e+00> : vector<16xf32>
    %49 = vector.multi_reduction <add>, %48, %cst_20 [1] : vector<16x16xf32> to vector<16xf32>
    %50 = vector.shape_cast %49 : vector<16xf32> to vector<16x1xf32>
    %51 = tpu.reciprocal %50 {approx = true} : vector<16x1xf32> -> vector<16x1xf32>
    %52 = vector.broadcast %51 : vector<16x1xf32> to vector<16x16xf32>
    %53 = arith.mulf %48, %52 : vector<16x16xf32>
    %54 = arith.truncf %53 : vector<16x16xf32> to vector<16x16xbf16>
    %cst_21 = arith.constant dense<0.000000e+00> : vector<16x32xf32>
    %55 = tpu.matmul %54, %40, %cst_21 {dimension_numbers = #tpu.dot_dimension_numbers<[1], [0], [0], [1], [0, 0, 1, 1], [], []>} : vector<16x16xbf16>, vector<16x32xbf16>, vector<16x32xf32> -> vector<16x32xf32>
    %56 = arith.truncf %55 : vector<16x32xf32> to vector<16x32xbf16>
    %57 = vector.extract_strided_slice %4 {offsets = [32, 0], sizes = [32, 128], strides = [1, 1]} : vector<128x128xbf16> to vector<32x128xbf16>
    %cst_22 = arith.constant dense<0.000000e+00> : vector<16x128xf32>
    %58 = tpu.matmul %56, %57, %cst_22 {dimension_numbers = #tpu.dot_dimension_numbers<[1], [0], [0], [1], [0, 0, 1, 1], [], []>} : vector<16x32xbf16>, vector<32x128xbf16>, vector<16x128xf32> -> vector<16x128xf32>
    %59 = arith.addf %34, %58 : vector<16x128xf32>
    %60 = vector.extract_strided_slice %1 {offsets = [0, 64], sizes = [16, 32], strides = [1, 1]} : vector<16x128xf32> to vector<16x32xf32>
    %61 = arith.truncf %60 : vector<16x32xf32> to vector<16x32xbf16>
    %62 = vector.extract_strided_slice %3 {offsets = [0, 64], sizes = [16, 32], strides = [1, 1]} : vector<16x256xf32> to vector<16x32xf32>
    %63 = arith.truncf %62 : vector<16x32xf32> to vector<16x32xbf16>
    %64 = vector.extract_strided_slice %3 {offsets = [0, 192], sizes = [16, 32], strides = [1, 1]} : vector<16x256xf32> to vector<16x32xf32>
    %65 = arith.truncf %64 : vector<16x32xf32> to vector<16x32xbf16>
    %cst_23 = arith.constant dense<0.000000e+00> : vector<16x16xf32>
    %66 = tpu.matmul %61, %63, %cst_23 {dimension_numbers = #tpu.dot_dimension_numbers<[1], [1], [0], [0], [0, 0, 1, 0], [], []>} : vector<16x32xbf16>, vector<16x32xbf16>, vector<16x16xf32> -> vector<16x16xf32>
    %cst_24 = arith.constant 0.176776692 : f32
    %67 = vector.broadcast %cst_24 : f32 to vector<16x16xf32>
    %68 = arith.mulf %66, %67 : vector<16x16xf32>
    %cst_25 = arith.constant dense<0xFF800000> : vector<16xf32>
    %69 = vector.multi_reduction <maximumf>, %68, %cst_25 [1] : vector<16x16xf32> to vector<16xf32>
    %70 = vector.shape_cast %69 : vector<16xf32> to vector<16x1xf32>
    %71 = vector.broadcast %70 : vector<16x1xf32> to vector<16x16xf32>
    %72 = arith.subf %68, %71 : vector<16x16xf32>
    %73 = math.exp %72 : vector<16x16xf32>
    %cst_26 = arith.constant dense<0.000000e+00> : vector<16xf32>
    %74 = vector.multi_reduction <add>, %73, %cst_26 [1] : vector<16x16xf32> to vector<16xf32>
    %75 = vector.shape_cast %74 : vector<16xf32> to vector<16x1xf32>
    %76 = tpu.reciprocal %75 {approx = true} : vector<16x1xf32> -> vector<16x1xf32>
    %77 = vector.broadcast %76 : vector<16x1xf32> to vector<16x16xf32>
    %78 = arith.mulf %73, %77 : vector<16x16xf32>
    %79 = arith.truncf %78 : vector<16x16xf32> to vector<16x16xbf16>
    %cst_27 = arith.constant dense<0.000000e+00> : vector<16x32xf32>
    %80 = tpu.matmul %79, %65, %cst_27 {dimension_numbers = #tpu.dot_dimension_numbers<[1], [0], [0], [1], [0, 0, 1, 1], [], []>} : vector<16x16xbf16>, vector<16x32xbf16>, vector<16x32xf32> -> vector<16x32xf32>
    %81 = arith.truncf %80 : vector<16x32xf32> to vector<16x32xbf16>
    %82 = vector.extract_strided_slice %4 {offsets = [64, 0], sizes = [32, 128], strides = [1, 1]} : vector<128x128xbf16> to vector<32x128xbf16>
    %cst_28 = arith.constant dense<0.000000e+00> : vector<16x128xf32>
    %83 = tpu.matmul %81, %82, %cst_28 {dimension_numbers = #tpu.dot_dimension_numbers<[1], [0], [0], [1], [0, 0, 1, 1], [], []>} : vector<16x32xbf16>, vector<32x128xbf16>, vector<16x128xf32> -> vector<16x128xf32>
    %84 = arith.addf %59, %83 : vector<16x128xf32>
    %85 = vector.extract_strided_slice %1 {offsets = [0, 96], sizes = [16, 32], strides = [1, 1]} : vector<16x128xf32> to vector<16x32xf32>
    %86 = arith.truncf %85 : vector<16x32xf32> to vector<16x32xbf16>
    %87 = vector.extract_strided_slice %3 {offsets = [0, 96], sizes = [16, 32], strides = [1, 1]} : vector<16x256xf32> to vector<16x32xf32>
    %88 = arith.truncf %87 : vector<16x32xf32> to vector<16x32xbf16>
    %89 = vector.extract_strided_slice %3 {offsets = [0, 224], sizes = [16, 32], strides = [1, 1]} : vector<16x256xf32> to vector<16x32xf32>
    %90 = arith.truncf %89 : vector<16x32xf32> to vector<16x32xbf16>
    %cst_29 = arith.constant dense<0.000000e+00> : vector<16x16xf32>
    %91 = tpu.matmul %86, %88, %cst_29 {dimension_numbers = #tpu.dot_dimension_numbers<[1], [1], [0], [0], [0, 0, 1, 0], [], []>} : vector<16x32xbf16>, vector<16x32xbf16>, vector<16x16xf32> -> vector<16x16xf32>
    %cst_30 = arith.constant 0.176776692 : f32
    %92 = vector.broadcast %cst_30 : f32 to vector<16x16xf32>
    %93 = arith.mulf %91, %92 : vector<16x16xf32>
    %cst_31 = arith.constant dense<0xFF800000> : vector<16xf32>
    %94 = vector.multi_reduction <maximumf>, %93, %cst_31 [1] : vector<16x16xf32> to vector<16xf32>
    %95 = vector.shape_cast %94 : vector<16xf32> to vector<16x1xf32>
    %96 = vector.broadcast %95 : vector<16x1xf32> to vector<16x16xf32>
    %97 = arith.subf %93, %96 : vector<16x16xf32>
    %98 = math.exp %97 : vector<16x16xf32>
    %cst_32 = arith.constant dense<0.000000e+00> : vector<16xf32>
    %99 = vector.multi_reduction <add>, %98, %cst_32 [1] : vector<16x16xf32> to vector<16xf32>
    %100 = vector.shape_cast %99 : vector<16xf32> to vector<16x1xf32>
    %101 = tpu.reciprocal %100 {approx = true} : vector<16x1xf32> -> vector<16x1xf32>
    %102 = vector.broadcast %101 : vector<16x1xf32> to vector<16x16xf32>
    %103 = arith.mulf %98, %102 : vector<16x16xf32>
    %104 = arith.truncf %103 : vector<16x16xf32> to vector<16x16xbf16>
    %cst_33 = arith.constant dense<0.000000e+00> : vector<16x32xf32>
    %105 = tpu.matmul %104, %90, %cst_33 {dimension_numbers = #tpu.dot_dimension_numbers<[1], [0], [0], [1], [0, 0, 1, 1], [], []>} : vector<16x16xbf16>, vector<16x32xbf16>, vector<16x32xf32> -> vector<16x32xf32>
    %106 = arith.truncf %105 : vector<16x32xf32> to vector<16x32xbf16>
    %107 = vector.extract_strided_slice %4 {offsets = [96, 0], sizes = [32, 128], strides = [1, 1]} : vector<128x128xbf16> to vector<32x128xbf16>
    %cst_34 = arith.constant dense<0.000000e+00> : vector<16x128xf32>
    %108 = tpu.matmul %106, %107, %cst_34 {dimension_numbers = #tpu.dot_dimension_numbers<[1], [0], [0], [1], [0, 0, 1, 1], [], []>} : vector<16x32xbf16>, vector<32x128xbf16>, vector<16x128xf32> -> vector<16x128xf32>
    %109 = arith.addf %84, %108 : vector<16x128xf32>
    %c0_35 = arith.constant 0 : index
    %c0_36 = arith.constant 0 : index
    %c0_37 = arith.constant 0 : index
    %110 = vector.load %arg7[%c0_35, %c0_36, %c0_37] : memref<1x16x128xf32, #tpu.memory_space<vmem>>, vector<1x16x128xf32>
    %111 = vector.shape_cast %110 : vector<1x16x128xf32> to vector<16x128xf32>
    %112 = vector.shape_cast %109 : vector<16x128xf32> to vector<1x16x128xf32>
    tpu.vector_store %arg7[%c0_35, %c0_36, %c0_37], %112 {strides = array<i32>} : memref<1x16x128xf32, #tpu.memory_space<vmem>>, vector<1x16x128xf32>,
    return
  }
  func.func @transform_0(%arg0: i32, %arg1: i32) -> (i32, i32, i32) {
    %c2_i32 = arith.constant 2 : i32
    %c0_i32 = arith.constant 0 : i32
    return %arg0, %arg1, %c2_i32 : i32, i32, i32
  }
  func.func @transform_1(%arg0: i32, %arg1: i32) -> (i32, i32, i32) {
    %c0_i32 = arith.constant 0 : i32
    %c0_i32_0 = arith.constant 0 : i32
    %c0_i32_1 = arith.constant 0 : i32
    return %arg0, %c0_i32, %c0_i32_0 : i32, i32, i32
  }
  func.func @transform_2(%arg0: i32, %arg1: i32) -> (i32, i32) {
    %c0_i32 = arith.constant 0 : i32
    %c0_i32_0 = arith.constant 0 : i32
    %c0_i32_1 = arith.constant 0 : i32
    return %c0_i32, %c0_i32_0 : i32, i32
  }
  func.func @transform_3(%arg0: i32, %arg1: i32) -> (i32, i32) {
    %c0_i32 = arith.constant 0 : i32
    %c0_i32_0 = arith.constant 0 : i32
    %c0_i32_1 = arith.constant 0 : i32
    return %c0_i32, %c0_i32_0 : i32, i32
  }
  func.func @transform_4(%arg0: i32, %arg1: i32) -> (i32, i32, i32) {
    %c0_i32 = arith.constant 0 : i32
    %c0_i32_0 = arith.constant 0 : i32
    return %arg0, %arg1, %c0_i32 : i32, i32, i32
  }
  func.func @transform_5(%arg0: i32, %arg1: i32) -> (i32, i32, i32) {
    %c0_i32 = arith.constant 0 : i32
    %c0_i32_0 = arith.constant 0 : i32
    return %arg0, %arg1, %c0_i32 : i32, i32, i32
  }
}

module attributes {stable_mosaic.version = 11 : i64} {
  func.func @_matmul_kernel(%arg0: i32, %arg1: i32, %arg2: i32, %arg3: memref<32x128xf32, #tpu.memory_space<vmem>>, %arg4: memref<128x256xbf16, #tpu.memory_space<vmem>>, %arg5: memref<1x256xf32, #tpu.memory_space<vmem>>, %arg6: memref<32x256xf32, #tpu.memory_space<vmem>>, %arg7: memref<32x256xf32, #tpu.memory_space<vmem>>) attributes {dimension_semantics = [#tpu.dimension_semantics<parallel>, #tpu.dimension_semantics<parallel>, #tpu.dimension_semantics<arbitrary>], iteration_bounds = array<i64: 1, 1, 1>, scalar_prefetch = 0 : i64, scratch_operands = 1 : i64, tpu.core_type = #tpu.core_type<tc>, window_params = [{transform_indices = @transform_0, window_bounds = array<i64: 32, 128>}, {transform_indices = @transform_1, window_bounds = array<i64: 128, 256>}, {transform_indices = @transform_2, window_bounds = array<i64: 1, 256>}, {transform_indices = @transform_3, window_bounds = array<i64: 32, 256>}]} {
    %c0_i32 = arith.constant 0 : i32
    %0 = arith.cmpi eq, %arg2, %c0_i32 : i32
    %1 = arith.extui %0 : i1 to i32
    %c0_i32_0 = arith.constant 0 : i32
    %2 = arith.cmpi ne, %1, %c0_i32_0 : i32
    scf.if %2 {
      %cst_10 = arith.constant 0.000000e+00 : f32
      %13 = vector.broadcast %cst_10 : f32 to vector<32x256xf32>
      %c0_11 = arith.constant 0 : index
      %c0_12 = arith.constant 0 : index
      %14 = vector.load %arg7[%c0_11, %c0_12] : memref<32x256xf32, #tpu.memory_space<vmem>>, vector<32x256xf32>
      tpu.vector_store %arg7[%c0_11, %c0_12], %13 {strides = array<i32>} : memref<32x256xf32, #tpu.memory_space<vmem>>, vector<32x256xf32>,
    } else {
    }
    %c0 = arith.constant 0 : index
    %c0_1 = arith.constant 0 : index
    %3 = vector.load %arg7[%c0, %c0_1] : memref<32x256xf32, #tpu.memory_space<vmem>>, vector<32x256xf32>
    %c0_2 = arith.constant 0 : index
    %c0_3 = arith.constant 0 : index
    %4 = vector.load %arg3[%c0_2, %c0_3] : memref<32x128xf32, #tpu.memory_space<vmem>>, vector<32x128xf32>
    %5 = arith.truncf %4 : vector<32x128xf32> to vector<32x128xbf16>
    %c0_4 = arith.constant 0 : index
    %c0_5 = arith.constant 0 : index
    %6 = vector.load %arg4[%c0_4, %c0_5] : memref<128x256xbf16, #tpu.memory_space<vmem>>, vector<128x256xbf16>
    %cst = arith.constant dense<0.000000e+00> : vector<32x256xf32>
    %7 = tpu.matmul %5, %6, %cst {dimension_numbers = #tpu.dot_dimension_numbers<[1], [0], [0], [1], [0, 0, 1, 1], [], []>} : vector<32x128xbf16>, vector<128x256xbf16>, vector<32x256xf32> -> vector<32x256xf32>
    %8 = arith.addf %3, %7 : vector<32x256xf32>
    %c0_6 = arith.constant 0 : index
    %c0_7 = arith.constant 0 : index
    %9 = vector.load %arg7[%c0_6, %c0_7] : memref<32x256xf32, #tpu.memory_space<vmem>>, vector<32x256xf32>
    tpu.vector_store %arg7[%c0_6, %c0_7], %8 {strides = array<i32>} : memref<32x256xf32, #tpu.memory_space<vmem>>, vector<32x256xf32>,
    %c0_i32_8 = arith.constant 0 : i32
    %10 = arith.cmpi eq, %arg2, %c0_i32_8 : i32
    %11 = arith.extui %10 : i1 to i32
    %c0_i32_9 = arith.constant 0 : i32
    %12 = arith.cmpi ne, %11, %c0_i32_9 : i32
    scf.if %12 {
      %c0_10 = arith.constant 0 : index
      %c0_11 = arith.constant 0 : index
      %13 = vector.load %arg7[%c0_10, %c0_11] : memref<32x256xf32, #tpu.memory_space<vmem>>, vector<32x256xf32>
      %c0_12 = arith.constant 0 : index
      %c0_13 = arith.constant 0 : index
      %14 = vector.load %arg5[%c0_12, %c0_13] : memref<1x256xf32, #tpu.memory_space<vmem>>, vector<1x256xf32>
      %15 = vector.broadcast %14 : vector<1x256xf32> to vector<32x256xf32>
      %16 = arith.addf %13, %15 : vector<32x256xf32>
      %c0_14 = arith.constant 0 : index
      %c0_15 = arith.constant 0 : index
      %17 = vector.load %arg6[%c0_14, %c0_15] : memref<32x256xf32, #tpu.memory_space<vmem>>, vector<32x256xf32>
      tpu.vector_store %arg6[%c0_14, %c0_15], %16 {strides = array<i32>} : memref<32x256xf32, #tpu.memory_space<vmem>>, vector<32x256xf32>,
    } else {
    }
    return
  }
  func.func @transform_0(%arg0: i32, %arg1: i32, %arg2: i32) -> (i32, i32) {
    %c0_i32 = arith.constant 0 : i32
    return %arg0, %arg2 : i32, i32
  }
  func.func @transform_1(%arg0: i32, %arg1: i32, %arg2: i32) -> (i32, i32) {
    %c0_i32 = arith.constant 0 : i32
    return %arg2, %arg1 : i32, i32
  }
  func.func @transform_2(%arg0: i32, %arg1: i32, %arg2: i32) -> (i32, i32) {
    %c0_i32 = arith.constant 0 : i32
    %c0_i32_0 = arith.constant 0 : i32
    return %c0_i32, %arg1 : i32, i32
  }
  func.func @transform_3(%arg0: i32, %arg1: i32, %arg2: i32) -> (i32, i32) {
    %c0_i32 = arith.constant 0 : i32
    return %arg0, %arg1 : i32, i32
  }
}

module attributes {stable_mosaic.version = 11 : i64} {
  func.func @_attn_kernel(%arg0: i32, %arg1: i32, %arg2: memref<1x16x128xf32, #tpu.memory_space<vmem>>, %arg3: memref<1x16x256xf32, #tpu.memory_space<vmem>>, %arg4: memref<128x128xbf16, #tpu.memory_space<vmem>>, %arg5: memref<1x128xf32, #tpu.memory_space<vmem>>, %arg6: memref<1x16x128xf32, #tpu.memory_space<vmem>>, %arg7: memref<1x16x128xf32, #tpu.memory_space<vmem>>) attributes {dimension_semantics = [#tpu.dimension_semantics<parallel>, #tpu.dimension_semantics<parallel>], iteration_bounds = array<i64: 2, 1>, scalar_prefetch = 0 : i64, scratch_operands = 0 : i64, tpu.core_type = #tpu.core_type<tc>, window_params = [{transform_indices = @transform_0, window_bounds = array<i64: 1, 16, 128>}, {transform_indices = @transform_1, window_bounds = array<i64: 1, 16, 256>}, {pipeline_mode = #tpu.pipeline_mode<synchronous>, transform_indices = @transform_2, window_bounds = array<i64: 128, 128>}, {pipeline_mode = #tpu.pipeline_mode<synchronous>, transform_indices = @transform_3, window_bounds = array<i64: 1, 128>}, {transform_indices = @transform_4, window_bounds = array<i64: 1, 16, 128>}, {transform_indices = @transform_5, window_bounds = array<i64: 1, 16, 128>}]} {
    %c0 = arith.constant 0 : index
    %c0_0 = arith.constant 0 : index
    %c0_1 = arith.constant 0 : index
    %0 = vector.load %arg2[%c0, %c0_0, %c0_1] : memref<1x16x128xf32, #tpu.memory_space<vmem>>, vector<1x16x128xf32>
    %1 = vector.shape_cast %0 : vector<1x16x128xf32> to vector<16x128xf32>
    %c0_2 = arith.constant 0 : index
    %c0_3 = arith.constant 0 : index
    %c0_4 = arith.constant 0 : index
    %2 = vector.load %arg3[%c0_2, %c0_3, %c0_4] : memref<1x16x256xf32, #tpu.memory_space<vmem>>, vector<1x16x256xf32>
    %3 = vector.shape_cast %2 : vector<1x16x256xf32> to vector<16x256xf32>
    %c0_5 = arith.constant 0 : index
    %c0_6 = arith.constant 0 : index
    %4 = vector.load %arg4[%c0_5, %c0_6] : memref<128x128xbf16, #tpu.memory_space<vmem>>, vector<128x128xbf16>
    %c0_7 = arith.constant 0 : index
    %c0_8 = arith.constant 0 : index
    %c0_9 = arith.constant 0 : index
    %5 = vector.load %arg6[%c0_7, %c0_8, %c0_9] : memref<1x16x128xf32, #tpu.memory_space<vmem>>, vector<1x16x128xf32>
    %6 = vector.shape_cast %5 : vector<1x16x128xf32> to vector<16x128xf32>
    %c0_10 = arith.constant 0 : index
    %c0_11 = arith.constant 0 : index
    %7 = vector.load %arg5[%c0_10, %c0_11] : memref<1x128xf32, #tpu.memory_space<vmem>>, vector<1x128xf32>
    %8 = vector.broadcast %7 : vector<1x128xf32> to vector<16x128xf32>
    %9 = arith.addf %6, %8 : vector<16x128xf32>
    %10 = vector.extract_strided_slice %1 {offsets = [0, 0], sizes = [16, 32], strides = [1, 1]} : vector<16x128xf32> to vector<16x32xf32>
    %11 = arith.truncf %10 : vector<16x32xf32> to vector<16x32xbf16>
    %12 = vector.extract_strided_slice %3 {offsets = [0, 0], sizes = [16, 32], strides = [1, 1]} : vector<16x256xf32> to vector<16x32xf32>
    %13 = arith.truncf %12 : vector<16x32xf32> to vector<16x32xbf16>
    %14 = vector.extract_strided_slice %3 {offsets = [0, 128], sizes = [16, 32], strides = [1, 1]} : vector<16x256xf32> to vector<16x32xf32>
    %15 = arith.truncf %14 : vector<16x32xf32> to vector<16x32xbf16>
    %cst = arith.constant dense<0.000000e+00> : vector<16x16xf32>
    %16 = tpu.matmul %11, %13, %cst {dimension_numbers = #tpu.dot_dimension_numbers<[1], [1], [0], [0], [0, 0, 1, 0], [], []>} : vector<16x32xbf16>, vector<16x32xbf16>, vector<16x16xf32> -> vector<16x16xf32>
    %cst_12 = arith.constant 0.176776692 : f32
    %17 = vector.broadcast %cst_12 : f32 to vector<16x16xf32>
    %18 = arith.mulf %16, %17 : vector<16x16xf32>
    %cst_13 = arith.constant dense<0xFF800000> : vector<16xf32>
    %19 = vector.multi_reduction <maximumf>, %18, %cst_13 [1] : vector<16x16xf32> to vector<16xf32>
    %20 = vector.shape_cast %19 : vector<16xf32> to vector<16x1xf32>
    %21 = vector.broadcast %20 : vector<16x1xf32> to vector<16x16xf32>
    %22 = arith.subf %18, %21 : vector<16x16xf32>
    %23 = math.exp %22 : vector<16x16xf32>
    %cst_14 = arith.constant dense<0.000000e+00> : vector<16xf32>
    %24 = vector.multi_reduction <add>, %23, %cst_14 [1] : vector<16x16xf32> to vector<16xf32>
    %25 = vector.shape_cast %24 : vector<16xf32> to vector<16x1xf32>
    %26 = tpu.reciprocal %25 {approx = true} : vector<16x1xf32> -> vector<16x1xf32>
    %27 = vector.broadcast %26 : vector<16x1xf32> to vector<16x16xf32>
    %28 = arith.mulf %23, %27 : vector<16x16xf32>
    %29 = arith.truncf %28 : vector<16x16xf32> to vector<16x16xbf16>
    %cst_15 = arith.constant dense<0.000000e+00> : vector<16x32xf32>
    %30 = tpu.matmul %29, %15, %cst_15 {dimension_numbers = #tpu.dot_dimension_numbers<[1], [0], [0], [1], [0, 0, 1, 1], [], []>} : vector<16x16xbf16>, vector<16x32xbf16>, vector<16x32xf32> -> vector<16x32xf32>
    %31 = arith.truncf %30 : vector<16x32xf32> to vector<16x32xbf16>
    %32 = vector.extract_strided_slice %4 {offsets = [0, 0], sizes = [32, 128], strides = [1, 1]} : vector<128x128xbf16> to vector<32x128xbf16>
    %cst_16 = arith.constant dense<0.000000e+00> : vector<16x128xf32>
    %33 = tpu.matmul %31, %32, %cst_16 {dimension_numbers = #tpu.dot_dimension_numbers<[1], [0], [0], [1], [0, 0, 1, 1], [], []>} : vector<16x32xbf16>, vector<32x128xbf16>, vector<16x128xf32> -> vector<16x128xf32>
    %34 = arith.addf %9, %33 : vector<16x128xf32>
    %35 = vector.extract_strided_slice %1 {offsets = [0, 32], sizes = [16, 32], strides = [1, 1]} : vector<16x128xf32> to vector<16x32xf32>
    %36 = arith.truncf %35 : vector<16x32xf32> to vector<16x32xbf16>
    %37 = vector.extract_strided_slice %3 {offsets = [0, 32], sizes = [16, 32], strides = [1, 1]} : vector<16x256xf32> to vector<16x32xf32>
    %38 = arith.truncf %37 : vector<16x32xf32> to vector<16x32xbf16>
    %39 = vector.extract_strided_slice %3 {offsets = [0, 160], sizes = [16, 32], strides = [1, 1]} : vector<16x256xf32> to vector<16x32xf32>
    %40 = arith.truncf %39 : vector<16x32xf32> to vector<16x32xbf16>
    %cst_17 = arith.constant dense<0.000000e+00> : vector<16x16xf32>
    %41 = tpu.matmul %36, %38, %cst_17 {dimension_numbers = #tpu.dot_dimension_numbers<[1], [1], [0], [0], [0, 0, 1, 0], [], []>} : vector<16x32xbf16>, vector<16x32xbf16>, vector<16x16xf32> -> vector<16x16xf32>
    %cst_18 = arith.constant 0.176776692 : f32
    %42 = vector.broadcast %cst_18 : f32 to vector<16x16xf32>
    %43 = arith.mulf %41, %42 : vector<16x16xf32>
    %cst_19 = arith.constant dense<0xFF800000> : vector<16xf32>
    %44 = vector.multi_reduction <maximumf>, %43, %cst_19 [1] : vector<16x16xf32> to vector<16xf32>
    %45 = vector.shape_cast %44 : vector<16xf32> to vector<16x1xf32>
    %46 = vector.broadcast %45 : vector<16x1xf32> to vector<16x16xf32>
    %47 = arith.subf %43, %46 : vector<16x16xf32>
    %48 = math.exp %47 : vector<16x16xf32>
    %cst_20 = arith.constant dense<0.000000e+00> : vector<16xf32>
    %49 = vector.multi_reduction <add>, %48, %cst_20 [1] : vector<16x16xf32> to vector<16xf32>
    %50 = vector.shape_cast %49 : vector<16xf32> to vector<16x1xf32>
    %51 = tpu.reciprocal %50 {approx = true} : vector<16x1xf32> -> vector<16x1xf32>
    %52 = vector.broadcast %51 : vector<16x1xf32> to vector<16x16xf32>
    %53 = arith.mulf %48, %52 : vector<16x16xf32>
    %54 = arith.truncf %53 : vector<16x16xf32> to vector<16x16xbf16>
    %cst_21 = arith.constant dense<0.000000e+00> : vector<16x32xf32>
    %55 = tpu.matmul %54, %40, %cst_21 {dimension_numbers = #tpu.dot_dimension_numbers<[1], [0], [0], [1], [0, 0, 1, 1], [], []>} : vector<16x16xbf16>, vector<16x32xbf16>, vector<16x32xf32> -> vector<16x32xf32>
    %56 = arith.truncf %55 : vector<16x32xf32> to vector<16x32xbf16>
    %57 = vector.extract_strided_slice %4 {offsets = [32, 0], sizes = [32, 128], strides = [1, 1]} : vector<128x128xbf16> to vector<32x128xbf16>
    %cst_22 = arith.constant dense<0.000000e+00> : vector<16x128xf32>
    %58 = tpu.matmul %56, %57, %cst_22 {dimension_numbers = #tpu.dot_dimension_numbers<[1], [0], [0], [1], [0, 0, 1, 1], [], []>} : vector<16x32xbf16>, vector<32x128xbf16>, vector<16x128xf32> -> vector<16x128xf32>
    %59 = arith.addf %34, %58 : vector<16x128xf32>
    %60 = vector.extract_strided_slice %1 {offsets = [0, 64], sizes = [16, 32], strides = [1, 1]} : vector<16x128xf32> to vector<16x32xf32>
    %61 = arith.truncf %60 : vector<16x32xf32> to vector<16x32xbf16>
    %62 = vector.extract_strided_slice %3 {offsets = [0, 64], sizes = [16, 32], strides = [1, 1]} : vector<16x256xf32> to vector<16x32xf32>
    %63 = arith.truncf %62 : vector<16x32xf32> to vector<16x32xbf16>
    %64 = vector.extract_strided_slice %3 {offsets = [0, 192], sizes = [16, 32], strides = [1, 1]} : vector<16x256xf32> to vector<16x32xf32>
    %65 = arith.truncf %64 : vector<16x32xf32> to vector<16x32xbf16>
    %cst_23 = arith.constant dense<0.000000e+00> : vector<16x16xf32>
    %66 = tpu.matmul %61, %63, %cst_23 {dimension_numbers = #tpu.dot_dimension_numbers<[1], [1], [0], [0], [0, 0, 1, 0], [], []>} : vector<16x32xbf16>, vector<16x32xbf16>, vector<16x16xf32> -> vector<16x16xf32>
    %cst_24 = arith.constant 0.176776692 : f32
    %67 = vector.broadcast %cst_24 : f32 to vector<16x16xf32>
    %68 = arith.mulf %66, %67 : vector<16x16xf32>
    %cst_25 = arith.constant dense<0xFF800000> : vector<16xf32>
    %69 = vector.multi_reduction <maximumf>, %68, %cst_25 [1] : vector<16x16xf32> to vector<16xf32>
    %70 = vector.shape_cast %69 : vector<16xf32> to vector<16x1xf32>
    %71 = vector.broadcast %70 : vector<16x1xf32> to vector<16x16xf32>
    %72 = arith.subf %68, %71 : vector<16x16xf32>
    %73 = math.exp %72 : vector<16x16xf32>
    %cst_26 = arith.constant dense<0.000000e+00> : vector<16xf32>
    %74 = vector.multi_reduction <add>, %73, %cst_26 [1] : vector<16x16xf32> to vector<16xf32>
    %75 = vector.shape_cast %74 : vector<16xf32> to vector<16x1xf32>
    %76 = tpu.reciprocal %75 {approx = true} : vector<16x1xf32> -> vector<16x1xf32>
    %77 = vector.broadcast %76 : vector<16x1xf32> to vector<16x16xf32>
    %78 = arith.mulf %73, %77 : vector<16x16xf32>
    %79 = arith.truncf %78 : vector<16x16xf32> to vector<16x16xbf16>
    %cst_27 = arith.constant dense<0.000000e+00> : vector<16x32xf32>
    %80 = tpu.matmul %79, %65, %cst_27 {dimension_numbers = #tpu.dot_dimension_numbers<[1], [0], [0], [1], [0, 0, 1, 1], [], []>} : vector<16x16xbf16>, vector<16x32xbf16>, vector<16x32xf32> -> vector<16x32xf32>
    %81 = arith.truncf %80 : vector<16x32xf32> to vector<16x32xbf16>
    %82 = vector.extract_strided_slice %4 {offsets = [64, 0], sizes = [32, 128], strides = [1, 1]} : vector<128x128xbf16> to vector<32x128xbf16>
    %cst_28 = arith.constant dense<0.000000e+00> : vector<16x128xf32>
    %83 = tpu.matmul %81, %82, %cst_28 {dimension_numbers = #tpu.dot_dimension_numbers<[1], [0], [0], [1], [0, 0, 1, 1], [], []>} : vector<16x32xbf16>, vector<32x128xbf16>, vector<16x128xf32> -> vector<16x128xf32>
    %84 = arith.addf %59, %83 : vector<16x128xf32>
    %85 = vector.extract_strided_slice %1 {offsets = [0, 96], sizes = [16, 32], strides = [1, 1]} : vector<16x128xf32> to vector<16x32xf32>
    %86 = arith.truncf %85 : vector<16x32xf32> to vector<16x32xbf16>
    %87 = vector.extract_strided_slice %3 {offsets = [0, 96], sizes = [16, 32], strides = [1, 1]} : vector<16x256xf32> to vector<16x32xf32>
    %88 = arith.truncf %87 : vector<16x32xf32> to vector<16x32xbf16>
    %89 = vector.extract_strided_slice %3 {offsets = [0, 224], sizes = [16, 32], strides = [1, 1]} : vector<16x256xf32> to vector<16x32xf32>
    %90 = arith.truncf %89 : vector<16x32xf32> to vector<16x32xbf16>
    %cst_29 = arith.constant dense<0.000000e+00> : vector<16x16xf32>
    %91 = tpu.matmul %86, %88, %cst_29 {dimension_numbers = #tpu.dot_dimension_numbers<[1], [1], [0], [0], [0, 0, 1, 0], [], []>} : vector<16x32xbf16>, vector<16x32xbf16>, vector<16x16xf32> -> vector<16x16xf32>
    %cst_30 = arith.constant 0.176776692 : f32
    %92 = vector.broadcast %cst_30 : f32 to vector<16x16xf32>
    %93 = arith.mulf %91, %92 : vector<16x16xf32>
    %cst_31 = arith.constant dense<0xFF800000> : vector<16xf32>
    %94 = vector.multi_reduction <maximumf>, %93, %cst_31 [1] : vector<16x16xf32> to vector<16xf32>
    %95 = vector.shape_cast %94 : vector<16xf32> to vector<16x1xf32>
    %96 = vector.broadcast %95 : vector<16x1xf32> to vector<16x16xf32>
    %97 = arith.subf %93, %96 : vector<16x16xf32>
    %98 = math.exp %97 : vector<16x16xf32>
    %cst_32 = arith.constant dense<0.000000e+00> : vector<16xf32>
    %99 = vector.multi_reduction <add>, %98, %cst_32 [1] : vector<16x16xf32> to vector<16xf32>
    %100 = vector.shape_cast %99 : vector<16xf32> to vector<16x1xf32>
    %101 = tpu.reciprocal %100 {approx = true} : vector<16x1xf32> -> vector<16x1xf32>
    %102 = vector.broadcast %101 : vector<16x1xf32> to vector<16x16xf32>
    %103 = arith.mulf %98, %102 : vector<16x16xf32>
    %104 = arith.truncf %103 : vector<16x16xf32> to vector<16x16xbf16>
    %cst_33 = arith.constant dense<0.000000e+00> : vector<16x32xf32>
    %105 = tpu.matmul %104, %90, %cst_33 {dimension_numbers = #tpu.dot_dimension_numbers<[1], [0], [0], [1], [0, 0, 1, 1], [], []>} : vector<16x16xbf16>, vector<16x32xbf16>, vector<16x32xf32> -> vector<16x32xf32>
    %106 = arith.truncf %105 : vector<16x32xf32> to vector<16x32xbf16>
    %107 = vector.extract_strided_slice %4 {offsets = [96, 0], sizes = [32, 128], strides = [1, 1]} : vector<128x128xbf16> to vector<32x128xbf16>
    %cst_34 = arith.constant dense<0.000000e+00> : vector<16x128xf32>
    %108 = tpu.matmul %106, %107, %cst_34 {dimension_numbers = #tpu.dot_dimension_numbers<[1], [0], [0], [1], [0, 0, 1, 1], [], []>} : vector<16x32xbf16>, vector<32x128xbf16>, vector<16x128xf32> -> vector<16x128xf32>
    %109 = arith.addf %84, %108 : vector<16x128xf32>
    %c0_35 = arith.constant 0 : index
    %c0_36 = arith.constant 0 : index
    %c0_37 = arith.constant 0 : index
    %110 = vector.load %arg7[%c0_35, %c0_36, %c0_37] : memref<1x16x128xf32, #tpu.memory_space<vmem>>, vector<1x16x128xf32>
    %111 = vector.shape_cast %110 : vector<1x16x128xf32> to vector<16x128xf32>
    %112 = vector.shape_cast %109 : vector<16x128xf32> to vector<1x16x128xf32>
    tpu.vector_store %arg7[%c0_35, %c0_36, %c0_37], %112 {strides = array<i32>} : memref<1x16x128xf32, #tpu.memory_space<vmem>>, vector<1x16x128xf32>,
    return
  }
  func.func @transform_0(%arg0: i32, %arg1: i32) -> (i32, i32, i32) {
    %c0_i32 = arith.constant 0 : i32
    %c0_i32_0 = arith.constant 0 : i32
    return %arg0, %arg1, %c0_i32 : i32, i32, i32
  }
  func.func @transform_1(%arg0: i32, %arg1: i32) -> (i32, i32, i32) {
    %c0_i32 = arith.constant 0 : i32
    %c0_i32_0 = arith.constant 0 : i32
    %c0_i32_1 = arith.constant 0 : i32
    return %arg0, %c0_i32, %c0_i32_0 : i32, i32, i32
  }
  func.func @transform_2(%arg0: i32, %arg1: i32) -> (i32, i32) {
    %c0_i32 = arith.constant 0 : i32
    %c0_i32_0 = arith.constant 0 : i32
    %c0_i32_1 = arith.constant 0 : i32
    return %c0_i32, %c0_i32_0 : i32, i32
  }
  func.func @transform_3(%arg0: i32, %arg1: i32) -> (i32, i32) {
    %c0_i32 = arith.constant 0 : i32
    %c0_i32_0 = arith.constant 0 : i32
    %c0_i32_1 = arith.constant 0 : i32
    return %c0_i32, %c0_i32_0 : i32, i32
  }
  func.func @transform_4(%arg0: i32, %arg1: i32) -> (i32, i32, i32) {
    %c0_i32 = arith.constant 0 : i32
    %c0_i32_0 = arith.constant 0 : i32
    return %arg0, %arg1, %c0_i32 : i32, i32, i32
  }
  func.func @transform_5(%arg0: i32, %arg1: i32) -> (i32, i32, i32) {
    %c0_i32 = arith.constant 0 : i32
    %c0_i32_0 = arith.constant 0 : i32
    return %arg0, %arg1, %c0_i32 : i32, i32, i32
  }
}

module attributes {stable_mosaic.version = 11 : i64} {
  func.func @_ffn_kernel(%arg0: i32, %arg1: i32, %arg2: memref<32x128xf32, #tpu.memory_space<vmem>>, %arg3: memref<1x128xf32, #tpu.memory_space<vmem>>, %arg4: memref<1x128xf32, #tpu.memory_space<vmem>>, %arg5: memref<128x256xbf16, #tpu.memory_space<vmem>>, %arg6: memref<1x256xf32, #tpu.memory_space<vmem>>, %arg7: memref<256x128xbf16, #tpu.memory_space<vmem>>, %arg8: memref<1x128xf32, #tpu.memory_space<vmem>>, %arg9: memref<32x128xf32, #tpu.memory_space<vmem>>, %arg10: memref<32x128xbf16, #tpu.memory_space<vmem>>, %arg11: memref<32x128xf32, #tpu.memory_space<vmem>>) attributes {dimension_semantics = [#tpu.dimension_semantics<parallel>, #tpu.dimension_semantics<arbitrary>], iteration_bounds = array<i64: 1, 1>, scalar_prefetch = 0 : i64, scratch_operands = 2 : i64, tpu.core_type = #tpu.core_type<tc>, window_params = [{transform_indices = @transform_0, window_bounds = array<i64: 32, 128>}, {pipeline_mode = #tpu.pipeline_mode<synchronous>, transform_indices = @transform_1, window_bounds = array<i64: 1, 128>}, {pipeline_mode = #tpu.pipeline_mode<synchronous>, transform_indices = @transform_2, window_bounds = array<i64: 1, 128>}, {transform_indices = @transform_3, window_bounds = array<i64: 128, 256>}, {transform_indices = @transform_4, window_bounds = array<i64: 1, 256>}, {transform_indices = @transform_5, window_bounds = array<i64: 256, 128>}, {pipeline_mode = #tpu.pipeline_mode<synchronous>, transform_indices = @transform_6, window_bounds = array<i64: 1, 128>}, {transform_indices = @transform_7, window_bounds = array<i64: 32, 128>}]} {
    %c0_i32 = arith.constant 0 : i32
    %0 = arith.cmpi eq, %arg1, %c0_i32 : i32
    %1 = arith.extui %0 : i1 to i32
    %c0_i32_0 = arith.constant 0 : i32
    %2 = arith.cmpi ne, %1, %c0_i32_0 : i32
    scf.if %2 {
      %c0_16 = arith.constant 0 : index
      %c0_17 = arith.constant 0 : index
      %20 = vector.load %arg2[%c0_16, %c0_17] : memref<32x128xf32, #tpu.memory_space<vmem>>, vector<32x128xf32>
      %cst_18 = arith.constant dense<0.000000e+00> : vector<32xf32>
      %21 = vector.multi_reduction <add>, %20, %cst_18 [1] : vector<32x128xf32> to vector<32xf32>
      %22 = vector.shape_cast %21 : vector<32xf32> to vector<32x1xf32>
      %cst_19 = arith.constant 1.280000e+02 : f32
      %23 = vector.broadcast %cst_19 : f32 to vector<32x1xf32>
      %24 = arith.divf %22, %23 : vector<32x1xf32>
      %25 = vector.broadcast %24 : vector<32x1xf32> to vector<32x128xf32>
      %26 = arith.subf %20, %25 : vector<32x128xf32>
      %27 = arith.mulf %26, %26 : vector<32x128xf32>
      %cst_20 = arith.constant dense<0.000000e+00> : vector<32xf32>
      %28 = vector.multi_reduction <add>, %27, %cst_20 [1] : vector<32x128xf32> to vector<32xf32>
      %29 = vector.shape_cast %28 : vector<32xf32> to vector<32x1xf32>
      %cst_21 = arith.constant 0.00787401571 : f32
      %30 = vector.broadcast %cst_21 : f32 to vector<32x1xf32>
      %31 = arith.mulf %29, %30 : vector<32x1xf32>
      %32 = math.sqrt %31 : vector<32x1xf32>
      %cst_22 = arith.constant 9.99999997E-7 : f32
      %33 = vector.broadcast %cst_22 : f32 to vector<32x1xf32>
      %34 = arith.addf %32, %33 : vector<32x1xf32>
      %cst_23 = arith.constant 1.000000e+00 : f32
      %35 = vector.broadcast %cst_23 : f32 to vector<32x1xf32>
      %36 = arith.divf %35, %34 : vector<32x1xf32>
      %c0_24 = arith.constant 0 : index
      %c0_25 = arith.constant 0 : index
      %37 = vector.load %arg3[%c0_24, %c0_25] : memref<1x128xf32, #tpu.memory_space<vmem>>, vector<1x128xf32>
      %38 = vector.broadcast %37 : vector<1x128xf32> to vector<32x128xf32>
      %39 = arith.mulf %38, %26 : vector<32x128xf32>
      %40 = vector.broadcast %36 : vector<32x1xf32> to vector<32x128xf32>
      %41 = arith.mulf %39, %40 : vector<32x128xf32>
      %c0_26 = arith.constant 0 : index
      %c0_27 = arith.constant 0 : index
      %42 = vector.load %arg4[%c0_26, %c0_27] : memref<1x128xf32, #tpu.memory_space<vmem>>, vector<1x128xf32>
      %43 = vector.broadcast %42 : vector<1x128xf32> to vector<32x128xf32>
      %44 = arith.addf %41, %43 : vector<32x128xf32>
      %45 = arith.truncf %44 : vector<32x128xf32> to vector<32x128xbf16>
      %c0_28 = arith.constant 0 : index
      %c0_29 = arith.constant 0 : index
      %46 = vector.load %arg10[%c0_28, %c0_29] : memref<32x128xbf16, #tpu.memory_space<vmem>>, vector<32x128xbf16>
      tpu.vector_store %arg10[%c0_28, %c0_29], %45 {strides = array<i32>} : memref<32x128xbf16, #tpu.memory_space<vmem>>, vector<32x128xbf16>,
      %cst_30 = arith.constant 0.000000e+00 : f32
      %47 = vector.broadcast %cst_30 : f32 to vector<32x128xf32>
      %c0_31 = arith.constant 0 : index
      %c0_32 = arith.constant 0 : index
      %48 = vector.load %arg11[%c0_31, %c0_32] : memref<32x128xf32, #tpu.memory_space<vmem>>, vector<32x128xf32>
      tpu.vector_store %arg11[%c0_31, %c0_32], %47 {strides = array<i32>} : memref<32x128xf32, #tpu.memory_space<vmem>>, vector<32x128xf32>,
    } else {
    }
    %c0 = arith.constant 0 : index
    %c0_1 = arith.constant 0 : index
    %3 = vector.load %arg10[%c0, %c0_1] : memref<32x128xbf16, #tpu.memory_space<vmem>>, vector<32x128xbf16>
    %c0_2 = arith.constant 0 : index
    %c0_3 = arith.constant 0 : index
    %4 = vector.load %arg5[%c0_2, %c0_3] : memref<128x256xbf16, #tpu.memory_space<vmem>>, vector<128x256xbf16>
    %cst = arith.constant dense<0.000000e+00> : vector<32x256xf32>
    %5 = tpu.matmul %3, %4, %cst {dimension_numbers = #tpu.dot_dimension_numbers<[1], [0], [0], [1], [0, 0, 1, 1], [], []>} : vector<32x128xbf16>, vector<128x256xbf16>, vector<32x256xf32> -> vector<32x256xf32>
    %c0_4 = arith.constant 0 : index
    %c0_5 = arith.constant 0 : index
    %6 = vector.load %arg6[%c0_4, %c0_5] : memref<1x256xf32, #tpu.memory_space<vmem>>, vector<1x256xf32>
    %7 = vector.broadcast %6 : vector<1x256xf32> to vector<32x256xf32>
    %8 = arith.addf %5, %7 : vector<32x256xf32>
    %cst_6 = arith.constant 0.000000e+00 : f32
    %9 = vector.broadcast %cst_6 : f32 to vector<32x256xf32>
    %10 = arith.maximumf %8, %9 : vector<32x256xf32>
    %c0_7 = arith.constant 0 : index
    %c0_8 = arith.constant 0 : index
    %11 = vector.load %arg11[%c0_7, %c0_8] : memref<32x128xf32, #tpu.memory_space<vmem>>, vector<32x128xf32>
    %12 = arith.truncf %10 : vector<32x256xf32> to vector<32x256xbf16>
    %c0_9 = arith.constant 0 : index
    %c0_10 = arith.constant 0 : index
    %13 = vector.load %arg7[%c0_9, %c0_10] : memref<256x128xbf16, #tpu.memory_space<vmem>>, vector<256x128xbf16>
    %cst_11 = arith.constant dense<0.000000e+00> : vector<32x128xf32>
    %14 = tpu.matmul %12, %13, %cst_11 {dimension_numbers = #tpu.dot_dimension_numbers<[1], [0], [0], [1], [0, 0, 1, 1], [], []>} : vector<32x256xbf16>, vector<256x128xbf16>, vector<32x128xf32> -> vector<32x128xf32>
    %15 = arith.addf %11, %14 : vector<32x128xf32>
    %c0_12 = arith.constant 0 : index
    %c0_13 = arith.constant 0 : index
    %16 = vector.load %arg11[%c0_12, %c0_13] : memref<32x128xf32, #tpu.memory_space<vmem>>, vector<32x128xf32>
    tpu.vector_store %arg11[%c0_12, %c0_13], %15 {strides = array<i32>} : memref<32x128xf32, #tpu.memory_space<vmem>>, vector<32x128xf32>,
    %c0_i32_14 = arith.constant 0 : i32
    %17 = arith.cmpi eq, %arg1, %c0_i32_14 : i32
    %18 = arith.extui %17 : i1 to i32
    %c0_i32_15 = arith.constant 0 : i32
    %19 = arith.cmpi ne, %18, %c0_i32_15 : i32
    scf.if %19 {
      %c0_16 = arith.constant 0 : index
      %c0_17 = arith.constant 0 : index
      %20 = vector.load %arg2[%c0_16, %c0_17] : memref<32x128xf32, #tpu.memory_space<vmem>>, vector<32x128xf32>
      %c0_18 = arith.constant 0 : index
      %c0_19 = arith.constant 0 : index
      %21 = vector.load %arg11[%c0_18, %c0_19] : memref<32x128xf32, #tpu.memory_space<vmem>>, vector<32x128xf32>
      %22 = arith.addf %20, %21 : vector<32x128xf32>
      %c0_20 = arith.constant 0 : index
      %c0_21 = arith.constant 0 : index
      %23 = vector.load %arg8[%c0_20, %c0_21] : memref<1x128xf32, #tpu.memory_space<vmem>>, vector<1x128xf32>
      %24 = vector.broadcast %23 : vector<1x128xf32> to vector<32x128xf32>
      %25 = arith.addf %22, %24 : vector<32x128xf32>
      %c0_22 = arith.constant 0 : index
      %c0_23 = arith.constant 0 : index
      %26 = vector.load %arg9[%c0_22, %c0_23] : memref<32x128xf32, #tpu.memory_space<vmem>>, vector<32x128xf32>
      tpu.vector_store %arg9[%c0_22, %c0_23], %25 {strides = array<i32>} : memref<32x128xf32, #tpu.memory_space<vmem>>, vector<32x128xf32>,
    } else {
    }
    return
  }
  func.func @transform_0(%arg0: i32, %arg1: i32) -> (i32, i32) {
    %c0_i32 = arith.constant 0 : i32
    %c0_i32_0 = arith.constant 0 : i32
    return %arg0, %c0_i32 : i32, i32
  }
  func.func @transform_1(%arg0: i32, %arg1: i32) -> (i32, i32) {
    %c0_i32 = arith.constant 0 : i32
    %c0_i32_0 = arith.constant 0 : i32
    %c0_i32_1 = arith.constant 0 : i32
    return %c0_i32, %c0_i32_0 : i32, i32
  }
  func.func @transform_2(%arg0: i32, %arg1: i32) -> (i32, i32) {
    %c0_i32 = arith.constant 0 : i32
    %c0_i32_0 = arith.constant 0 : i32
    %c0_i32_1 = arith.constant 0 : i32
    return %c0_i32, %c0_i32_0 : i32, i32
  }
  func.func @transform_3(%arg0: i32, %arg1: i32) -> (i32, i32) {
    %c0_i32 = arith.constant 0 : i32
    %c0_i32_0 = arith.constant 0 : i32
    return %c0_i32, %arg1 : i32, i32
  }
  func.func @transform_4(%arg0: i32, %arg1: i32) -> (i32, i32) {
    %c0_i32 = arith.constant 0 : i32
    %c0_i32_0 = arith.constant 0 : i32
    return %c0_i32, %arg1 : i32, i32
  }
  func.func @transform_5(%arg0: i32, %arg1: i32) -> (i32, i32) {
    %c0_i32 = arith.constant 0 : i32
    %c0_i32_0 = arith.constant 0 : i32
    return %arg1, %c0_i32 : i32, i32
  }
  func.func @transform_6(%arg0: i32, %arg1: i32) -> (i32, i32) {
    %c0_i32 = arith.constant 0 : i32
    %c0_i32_0 = arith.constant 0 : i32
    %c0_i32_1 = arith.constant 0 : i32
    return %c0_i32, %c0_i32_0 : i32, i32
  }
  func.func @transform_7(%arg0: i32, %arg1: i32) -> (i32, i32) {
    %c0_i32 = arith.constant 0 : i32
    %c0_i32_0 = arith.constant 0 : i32
    return %arg0, %c0_i32 : i32, i32
  }
}

</mosaic_0001>

<llo_original>
// kernel: decoder_forward.9
$region0: #{decoder_forward.9}
  #allocation0 [shape = 'u32[]', space=smem, size = 0x4, offset = 0x4, fixed_abs, tag = 'smem constant byte address 0x4 - core index']
  #allocation1 [shape = 'u32[144,128]{1,0:T(1,128)}', space=vmem, size = 0x12000, scoped, tag = 'internal scratch']
  #allocation2 [shape = 'f32[32,256]{1,0:T(8,128)}', space=vmem, size = 0x8000, scoped, tag = 'scratch operand']
  %s0 = inlined_call_operand.vmem [shape: f32[32,128], index: 0, kind: input, shape index: {}]
  %s1 = inlined_call_operand.vmem [shape: bf16[128,256], index: 1, kind: input, shape index: {}]
  %s2 = inlined_call_operand.vmem [shape: f32[1,256], index: 2, kind: input, shape index: {}]
  %s3 = inlined_call_operand.vmem [shape: f32[32,256], index: 3, kind: output, shape index: {}]
  %s4 = sld [smem:[#allocation0]]
  $region30: #{decoder_forward.9} parent=0
    _
  %s6 = ssub.s32 1, %s4
  %s7 = scalar_select 0, %s6, %s4
  // Predicated region
  $region2: #{decoder_forward.9} parent=0 // pred_check
    _
  $region3: #{decoder_forward.9} parent=0 // pred_check_branch
    %9 = sbr.rel (0) target = $region5
  $region4: #{decoder_forward.9} parent=0 // pred_region
    _
  $region5: #{decoder_forward.9} parent=0 // pred_fallthru
    _
  // Predicated region
  $region6: #{decoder_forward.9} parent=0 // pred_check
    _
  $region7: #{decoder_forward.9} parent=0 // pred_check_branch
    %11 = sbr.rel (0) target = $region9
  $region8: #{decoder_forward.9} parent=0 // pred_region
    _
  $region9: #{decoder_forward.9} parent=0 // pred_fallthru
    _
  // Predicated region
  $region10: #{decoder_forward.9} parent=0 // pred_check
    _
  $region11: #{decoder_forward.9} parent=0 // pred_check_branch
    %13 = sbr.rel (0) target = $region13
  $region12: #{decoder_forward.9} parent=0 // pred_region
    _
  $region13: #{decoder_forward.9} parent=0 // pred_fallthru
    _
  %p15 = scmp.eq.s32.totalorder 0, 0
  // Predicated region
  $region14: #{decoder_forward.9} parent=0 // pred_check
    %p16 = pneg %p15
  $region15: #{decoder_forward.9} parent=0 // pred_check_branch
    %18 = sbr.rel (%p16) target = $region17
  $region16: #{decoder_forward.9} parent=0 // pred_region
    %19 = vst [vmem:[#allocation2] sm:$0xff] 0.0
    %20 = vst [vmem:[#allocation2 + $0x8] sm:$0xff] 0.0
    %21 = vst [vmem:[#allocation2 + $0x10] sm:$0xff] 0.0
    %22 = vst [vmem:[#allocation2 + $0x18] sm:$0xff] 0.0
    %23 = vst [vmem:[#allocation2 + $0x20] sm:$0xff] 0.0
    %24 = vst [vmem:[#allocation2 + $0x28] sm:$0xff] 0.0
    %25 = vst [vmem:[#allocation2 + $0x30] sm:$0xff] 0.0
    %26 = vst [vmem:[#allocation2 + $0x38] sm:$0xff] 0.0
  $region17: #{decoder_forward.9} parent=0 // pred_fallthru
    _
  %v27 = vld [vmem:[#allocation2] sm:$0xff]
  %v28 = vld [vmem:[#allocation2 + $0x8] sm:$0xff]
  %v29 = vld [vmem:[#allocation2 + $0x10] sm:$0xff]
  %v30 = vld [vmem:[#allocation2 + $0x18] sm:$0xff]
  %v31 = vld [vmem:[#allocation2 + $0x20] sm:$0xff]
  %v32 = vld [vmem:[#allocation2 + $0x28] sm:$0xff]
  %v33 = vld [vmem:[#allocation2 + $0x30] sm:$0xff]
  %v34 = vld [vmem:[#allocation2 + $0x38] sm:$0xff]
  %v35 = vld [vmem:[%s0] sm:$0xff]
  %v36 = vld [vmem:[%s0 + $0x8] sm:$0xff]
  %v37 = vld [vmem:[%s0 + $0x10] sm:$0xff]
  %v38 = vld [vmem:[%s0 + $0x18] sm:$0xff]
  %v39 = vpack.c.bf16 %v36, %v35
  %v40 = vpack.c.bf16 %v38, %v37
  %v41 = vld [vmem:[%s1] sm:$0xff]
  %v42 = vld [vmem:[%s1 + $0x8] sm:$0xff]
  %v43 = vld [vmem:[%s1 + $0x10] sm:$0xff]
  %v44 = vld [vmem:[%s1 + $0x18] sm:$0xff]
  %v45 = vld [vmem:[%s1 + $0x20] sm:$0xff]
  %v46 = vld [vmem:[%s1 + $0x28] sm:$0xff]
  %v47 = vld [vmem:[%s1 + $0x30] sm:$0xff]
  %v48 = vld [vmem:[%s1 + $0x38] sm:$0xff]
  %v49 = vld [vmem:[%s1 + $0x40] sm:$0xff]
  %v50 = vld [vmem:[%s1 + $0x48] sm:$0xff]
  %v51 = vld [vmem:[%s1 + $0x50] sm:$0xff]
  %v52 = vld [vmem:[%s1 + $0x58] sm:$0xff]
  %v53 = vld [vmem:[%s1 + $0x60] sm:$0xff]
  %v54 = vld [vmem:[%s1 + $0x68] sm:$0xff]
  %v55 = vld [vmem:[%s1 + $0x70] sm:$0xff]
  %v56 = vld [vmem:[%s1 + $0x78] sm:$0xff]
  %v73 = vunpack.c.l.b16 %v41
  %v74 = vunpack.c.h.b16 %v41
  %v75 = vunpack.c.l.b16 %v42
  %v76 = vunpack.c.h.b16 %v42
  %v77 = vunpack.c.l.b16 %v43
  %v78 = vunpack.c.h.b16 %v43
  %v79 = vunpack.c.l.b16 %v44
  %v80 = vunpack.c.h.b16 %v44
  %v81 = vunpack.c.l.b16 %v45
  %v82 = vunpack.c.h.b16 %v45
  %v83 = vunpack.c.l.b16 %v46
  %v84 = vunpack.c.h.b16 %v46
  %v85 = vunpack.c.l.b16 %v47
  %v86 = vunpack.c.h.b16 %v47
  %v87 = vunpack.c.l.b16 %v48
  %v88 = vunpack.c.h.b16 %v48
  %v89 = vunpack.c.l.b16 %v49
  %v90 = vunpack.c.h.b16 %v49
  %v91 = vunpack.c.l.b16 %v50
  %v92 = vunpack.c.h.b16 %v50
  %v93 = vunpack.c.l.b16 %v51
  %v94 = vunpack.c.h.b16 %v51
  %v95 = vunpack.c.l.b16 %v52
  %v96 = vunpack.c.h.b16 %v52
  %v97 = vunpack.c.l.b16 %v53
  %v98 = vunpack.c.h.b16 %v53
  %v99 = vunpack.c.l.b16 %v54
  %v100 = vunpack.c.h.b16 %v54
  %v101 = vunpack.c.l.b16 %v55
  %v102 = vunpack.c.h.b16 %v55
  %v103 = vunpack.c.l.b16 %v56
  %v104 = vunpack.c.h.b16 %v56
  %v105 = vpack.c.b16 %v75, %v73
  %v106 = vpack.c.b16 %v76, %v74
  %v107 = vpack.c.b16 %v79, %v77
  %v108 = vpack.c.b16 %v80, %v78
  %v109 = vpack.c.b16 %v83, %v81
  %v110 = vpack.c.b16 %v84, %v82
  %v111 = vpack.c.b16 %v87, %v85
  %v112 = vpack.c.b16 %v88, %v86
  %v113 = vpack.c.b16 %v91, %v89
  %v114 = vpack.c.b16 %v92, %v90
  %v115 = vpack.c.b16 %v95, %v93
  %v116 = vpack.c.b16 %v96, %v94
  %v117 = vpack.c.b16 %v99, %v97
  %v118 = vpack.c.b16 %v100, %v98
  %v119 = vpack.c.b16 %v103, %v101
  %v120 = vpack.c.b16 %v104, %v102
  %137 = vmatprep.subr.bf16.mxu0 %v106
  %138 = vmatpush1.bf16.msra.mxu0 %v105
  %139 = vmatprep.subr.bf16.mxu0 %v108
  %140 = vmatpush1.bf16.msra.mxu0 %v107
  %141 = vmatprep.subr.bf16.mxu0 %v110
  %142 = vmatpush1.bf16.msra.mxu0 %v109
  %143 = vmatprep.subr.bf16.mxu0 %v112
  %144 = vmatpush1.bf16.msra.mxu0 %v111
  %145 = vmatprep.subr.bf16.mxu0 %v114
  %146 = vmatpush1.bf16.msra.mxu0 %v113
  %147 = vmatprep.subr.bf16.mxu0 %v116
  %148 = vmatpush1.bf16.msra.mxu0 %v115
  %149 = vmatprep.subr.bf16.mxu0 %v118
  %150 = vmatpush1.bf16.msra.mxu0 %v117
  %151 = vmatprep.subr.bf16.mxu0 %v120
  %152 = vmatpush1.bf16.msra.mxu0 %v119
  %153 = vmatprep.subr.bf16.mxu0 0
  %154 = vmatpush1.bf16.msra.mxu0 0
  %155 = vmatprep.subr.bf16.mxu0 0
  %156 = vmatpush1.bf16.msra.mxu0 0
  %157 = vmatprep.subr.bf16.mxu0 0
  %158 = vmatpush1.bf16.msra.mxu0 0
  %159 = vmatprep.subr.bf16.mxu0 0
  %160 = vmatpush1.bf16.msra.mxu0 0
  %161 = vmatprep.subr.bf16.mxu0 0
  %162 = vmatpush1.bf16.msra.mxu0 0
  %163 = vmatprep.subr.bf16.mxu0 0
  %164 = vmatpush1.bf16.msra.mxu0 0
  %165 = vmatprep.subr.bf16.mxu0 0
  %166 = vmatpush1.bf16.msra.mxu0 0
  %167 = vmatprep.subr.bf16.mxu0 0
  %168 = vmatpush1.bf16.msra.mxu0 0
  %169 = vmatprep.mubr.bf16.mxu0 0
  %170 = vmatmul.mubr.bf16.gmra.mrb[0].mxu0 %v39
  %v171 = vpop.f32.mrb[0].mxu0
  %v172 = vadd.f32 0.0, %v171
  %v173 = vpop.f32.mrb[0].mxu0
  %v174 = vadd.f32 0.0, %v173
  %v175 = vpop.f32.mrb[0].mxu0
  %v176 = vadd.f32 0.0, %v175
  %v177 = vpop.f32.mrb[0].mxu0
  %v178 = vadd.f32 0.0, %v177
  %179 = vmatprep.mubr.bf16.mxu0 0
  %180 = vmatmul.mubr.bf16.gmra.mrb[0].mxu0 %v40
  %v181 = vpop.f32.mrb[0].mxu0
  %v182 = vadd.f32 0.0, %v181
  %v183 = vpop.f32.mrb[0].mxu0
  %v184 = vadd.f32 0.0, %v183
  %v185 = vpop.f32.mrb[0].mxu0
  %v186 = vadd.f32 0.0, %v185
  %v187 = vpop.f32.mrb[0].mxu0
  %v188 = vadd.f32 0.0, %v187
  %189 = vdwg.mxu0
  %v190 = vadd.f32 %v27, %v172
  %v191 = vadd.f32 %v28, %v174
  %v192 = vadd.f32 %v29, %v176
  %v193 = vadd.f32 %v30, %v178
  %v194 = vadd.f32 %v31, %v182
  %v195 = vadd.f32 %v32, %v184
  %v196 = vadd.f32 %v33, %v186
  %v197 = vadd.f32 %v34, %v188
  %198 = vst [vmem:[#allocation2] sm:$0xff] %v190
  %199 = vst [vmem:[#allocation2 + $0x8] sm:$0xff] %v191
  %200 = vst [vmem:[#allocation2 + $0x10] sm:$0xff] %v192
  %201 = vst [vmem:[#allocation2 + $0x18] sm:$0xff] %v193
  %202 = vst [vmem:[#allocation2 + $0x20] sm:$0xff] %v194
  %203 = vst [vmem:[#allocation2 + $0x28] sm:$0xff] %v195
  %204 = vst [vmem:[#allocation2 + $0x30] sm:$0xff] %v196
  %205 = vst [vmem:[#allocation2 + $0x38] sm:$0xff] %v197
  // Predicated region
  $region18: #{decoder_forward.9} parent=0 // pred_check
    %p206 = pneg %p15
  $region19: #{decoder_forward.9} parent=0 // pred_check_branch
    %208 = sbr.rel (%p206) target = $region21
  $region20: #{decoder_forward.9} parent=0 // pred_region
    %v209 = vld [vmem:[#allocation2] sm:$0xff]
    %v210 = vld [vmem:[#allocation2 + $0x8] sm:$0xff]
    %v211 = vld [vmem:[#allocation2 + $0x10] sm:$0xff]
    %v212 = vld [vmem:[#allocation2 + $0x18] sm:$0xff]
    %v213 = vld [vmem:[#allocation2 + $0x20] sm:$0xff]
    %v214 = vld [vmem:[#allocation2 + $0x28] sm:$0xff]
    %v215 = vld [vmem:[#allocation2 + $0x30] sm:$0xff]
    %v216 = vld [vmem:[#allocation2 + $0x38] sm:$0xff]
    %v217 = vld [vmem:[%s2] sm:$0x3]
    %v219 = vlaneseq
    %v220 = vshrl.u32 %v219, 7
    %v221 = vsub.s32 0, %v220
    %v222 = vrot.slane %v217, %v221
    %v223 = vlaneseq
    %v224 = vshrl.u32 %v223, 7
    %v225 = vsub.s32 1, %v224
    %v226 = vrot.slane %v217, %v225
    %v229 = vadd.f32 %v209, %v222
    %v230 = vadd.f32 %v210, %v226
    %v231 = vadd.f32 %v211, %v222
    %v232 = vadd.f32 %v212, %v226
    %v233 = vadd.f32 %v213, %v222
    %v234 = vadd.f32 %v214, %v226
    %v235 = vadd.f32 %v215, %v222
    %v236 = vadd.f32 %v216, %v226
    %237 = vst [vmem:[%s3] sm:$0xff] %v229
    %238 = vst [vmem:[%s3 + $0x8] sm:$0xff] %v230
    %239 = vst [vmem:[%s3 + $0x10] sm:$0xff] %v231
    %240 = vst [vmem:[%s3 + $0x18] sm:$0xff] %v232
    %241 = vst [vmem:[%s3 + $0x20] sm:$0xff] %v233
    %242 = vst [vmem:[%s3 + $0x28] sm:$0xff] %v234
    %243 = vst [vmem:[%s3 + $0x30] sm:$0xff] %v235
    %244 = vst [vmem:[%s3 + $0x38] sm:$0xff] %v236
  $region21: #{decoder_forward.9} parent=0 // pred_fallthru
    _
  // Predicated region
  $region22: #{decoder_forward.9} parent=0 // pred_check
    _
  $region23: #{decoder_forward.9} parent=0 // pred_check_branch
    %246 = sbr.rel (0) target = $region25
  $region24: #{decoder_forward.9} parent=0 // pred_region
    _
  $region25: #{decoder_forward.9} parent=0 // pred_fallthru
    _
  // Predicated region
  $region26: #{decoder_forward.9} parent=0 // pred_check
    _
  $region27: #{decoder_forward.9} parent=0 // pred_check_branch
    %248 = sbr.rel (0) target = $region29
  $region28: #{decoder_forward.9} parent=0 // pred_region
    _
  $region29: #{decoder_forward.9} parent=0 // pred_fallthru
    _

// kernel: decoder_forward.6
$region0: #{decoder_forward.6}
  #allocation0 [shape = 'u32[]', space=smem, size = 0x4, offset = 0x4, fixed_abs, tag = 'smem constant byte address 0x4 - core index']
  #allocation1 [shape = 'u32[144,128]{1,0:T(1,128)}', space=vmem, size = 0x12000, scoped, tag = 'internal scratch']
  #allocation2 [shape = 'bf16[32,128]{1,0:T(16,128)(2,1)}', space=vmem, size = 0x2000, scoped, tag = 'scratch operand']
  %s0 = inlined_call_operand.vmem [shape: f32[32,128], index: 0, kind: input, shape index: {}]
  %s1 = inlined_call_operand.vmem [shape: f32[1,128], index: 1, kind: input, shape index: {}]
  %s2 = inlined_call_operand.vmem [shape: f32[1,128], index: 2, kind: input, shape index: {}]
  %s3 = inlined_call_operand.vmem [shape: bf16[128,384], index: 3, kind: input, shape index: {}]
  %s4 = inlined_call_operand.vmem [shape: f32[1,384], index: 4, kind: input, shape index: {}]
  %s5 = inlined_call_operand.vmem [shape: f32[32,384], index: 5, kind: output, shape index: {}]
  %s6 = sld [smem:[#allocation0]]
  $region132: #{decoder_forward.6} parent=0
    _
  %s8 = ssub.s32 1, %s6
  %s9 = scalar_select 0, %s8, %s6
  $region1: #{decoder_forward.6} parent=0
    #allocation3 [shape = 'u8[65536]{0}', space=vmem, size = 0x10000, scoped, tag = 'input window, operand 3']
    #allocation4 [shape = 'u8[32768]{0}', space=vmem, size = 0x8000, scoped, tag = 'output window, operand 0']
    loop: start=0, step=1, limit=5
    $region2: #{decoder_forward.6} parent=1 // loop_pre_header
      _
    $region3: #{decoder_forward.6} parent=1 // loop_header
      %s11 = sphi 0, %s15
      %p12 = scmp.ge.s32.totalorder %s11, 5
      %s18 = sphi 0, %s30
      %s19 = sphi 0, %s26
      %s20 = sphi 0, %s18
      %s21 = sphi 0, %s19
      %s22 = sphi 0, %s20
      %s23 = sphi 0, %s21
      %s33 = sphi 0, %s35
      %s36 = sphi 0, %s33
      %s37 = sphi 0, %s36
      %s53 = sphi 0, %s37
      %s57 = sphi 0, %s57
      %s59 = sphi 0, %s57
      %s60 = sphi 0, %s59
      %s74 = sphi 0, %s60
      %s78 = sphi 0, %s78
      %s80 = sphi 0, %s78
      %s81 = sphi 0, %s80
      %s95 = sphi 0, %s81
      %s101 = sphi 0, %s103
      %s104 = sphi 0, %s101
      %s105 = sphi 0, %s104
      %s121 = sphi 0, %s105
      %s127 = sphi 0, %s129
      %s130 = sphi 0, %s127
      %s131 = sphi 0, %s130
      %s147 = sphi 0, %s131
      %s155 = sphi 0, %s157
      %s158 = sphi 0, %s155
      %s159 = sphi 0, %s158
      %s175 = sphi 0, %s159
    $region4: #{decoder_forward.6} parent=1 // loop_header_branch
      %14 = sbr.rel (%p12) target = $region8
    $region5: #{decoder_forward.6} parent=1 // loop_body
      %s16 = ssub.s32 %s11, 1
      %s17 = ssub.s32 %s11, 2
      %s24 = sadd.s32 1, %s19
      %p25 = scmp.ge.s32.totalorder %s24, 3
      %s26 = scalar_select %p25, 0, %s24
      %s27 = sadd.s32 1, %s18
      %s28 = scalar_select %p25, %s27, %s18
      %p29 = scmp.ge.s32.totalorder %s28, 1
      %s30 = scalar_select %p29, 0, %s28
      %s31 = ssub.s32 %s18, %s30
      %p32 = scmp.eq.s32.totalorder %s31, 0
      %s34 = sadd.s32 %s33, 1
      %s35 = scalar_select %p32, %s33, %s34
      %p38 = pneg %p32
      %p39 = scmp.eq.s32.totalorder %s11, 2
      %p40 = por %p38, %p39
      %p41 = scmp.ne.s32.totalorder %s33, %s36
      %p42 = scmp.eq.s32.totalorder %s11, 0
      %p43 = por %p41, %p42
      %p44 = scmp.ne.s32.totalorder %s33, %s36
      %p45 = scmp.eq.s32.totalorder %s16, 2
      %p46 = por %p44, %p45
      %p47 = scmp.ne.s32.totalorder %s36, %s37
      %p48 = scmp.eq.s32.totalorder %s16, 0
      %p49 = por %p47, %p48
      %p50 = scmp.ne.s32.totalorder %s36, %s37
      %p51 = scmp.eq.s32.totalorder %s17, 2
      %p52 = por %p50, %p51
      %p54 = scmp.ne.s32.totalorder %s37, %s53
      %p55 = scmp.eq.s32.totalorder %s17, 0
      %p56 = por %p54, %p55
      %s58 = sadd.s32 %s57, 1
      %p61 = scmp.eq.s32.totalorder %s11, 2
      %p62 = scmp.ne.s32.totalorder %s57, %s59
      %p63 = scmp.eq.s32.totalorder %s11, 0
      %p64 = por %p62, %p63
      %p65 = scmp.ne.s32.totalorder %s57, %s59
      %p66 = scmp.eq.s32.totalorder %s16, 2
      %p67 = por %p65, %p66
      %p68 = scmp.ne.s32.totalorder %s59, %s60
      %p69 = scmp.eq.s32.totalorder %s16, 0
      %p70 = por %p68, %p69
      %p71 = scmp.ne.s32.totalorder %s59, %s60
      %p72 = scmp.eq.s32.totalorder %s17, 2
      %p73 = por %p71, %p72
      %p75 = scmp.ne.s32.totalorder %s60, %s74
      %p76 = scmp.eq.s32.totalorder %s17, 0
      %p77 = por %p75, %p76
      %s79 = sadd.s32 %s78, 1
      %p82 = scmp.eq.s32.totalorder %s11, 2
      %p83 = scmp.ne.s32.totalorder %s78, %s80
      %p84 = scmp.eq.s32.totalorder %s11, 0
      %p85 = por %p83, %p84
      %p86 = scmp.ne.s32.totalorder %s78, %s80
      %p87 = scmp.eq.s32.totalorder %s16, 2
      %p88 = por %p86, %p87
      %p89 = scmp.ne.s32.totalorder %s80, %s81
      %p90 = scmp.eq.s32.totalorder %s16, 0
      %p91 = por %p89, %p90
      %p92 = scmp.ne.s32.totalorder %s80, %s81
      %p93 = scmp.eq.s32.totalorder %s17, 2
      %p94 = por %p92, %p93
      %p96 = scmp.ne.s32.totalorder %s81, %s95
      %p97 = scmp.eq.s32.totalorder %s17, 0
      %p98 = por %p96, %p97
      %s99 = ssub.s32 %s19, %s26
      %p100 = scmp.eq.s32.totalorder %s99, 0
      %s102 = sadd.s32 %s101, 1
      %s103 = scalar_select %p100, %s101, %s102
      %p106 = pneg %p100
      %p107 = scmp.eq.s32.totalorder %s11, 2
      %p108 = por %p106, %p107
      %p109 = scmp.ne.s32.totalorder %s101, %s104
      %p110 = scmp.eq.s32.totalorder %s11, 0
      %p111 = por %p109, %p110
      %p112 = scmp.ne.s32.totalorder %s101, %s104
      %p113 = scmp.eq.s32.totalorder %s16, 2
      %p114 = por %p112, %p113
      %p115 = scmp.ne.s32.totalorder %s104, %s105
      %p116 = scmp.eq.s32.totalorder %s16, 0
      %p117 = por %p115, %p116
      %p118 = scmp.ne.s32.totalorder %s104, %s105
      %p119 = scmp.eq.s32.totalorder %s17, 2
      %p120 = por %p118, %p119
      %p122 = scmp.ne.s32.totalorder %s105, %s121
      %p123 = scmp.eq.s32.totalorder %s17, 0
      %p124 = por %p122, %p123
      %s125 = ssub.s32 %s19, %s26
      %p126 = scmp.eq.s32.totalorder %s125, 0
      %s128 = sadd.s32 %s127, 1
      %s129 = scalar_select %p126, %s127, %s128
      %p132 = pneg %p126
      %p133 = scmp.eq.s32.totalorder %s11, 2
      %p134 = por %p132, %p133
      %p135 = scmp.ne.s32.totalorder %s127, %s130
      %p136 = scmp.eq.s32.totalorder %s11, 0
      %p137 = por %p135, %p136
      %p138 = scmp.ne.s32.totalorder %s127, %s130
      %p139 = scmp.eq.s32.totalorder %s16, 2
      %p140 = por %p138, %p139
      %p141 = scmp.ne.s32.totalorder %s130, %s131
      %p142 = scmp.eq.s32.totalorder %s16, 0
      %p143 = por %p141, %p142
      %p144 = scmp.ne.s32.totalorder %s130, %s131
      %p145 = scmp.eq.s32.totalorder %s17, 2
      %p146 = por %p144, %p145
      %p148 = scmp.ne.s32.totalorder %s131, %s147
      %p149 = scmp.eq.s32.totalorder %s17, 0
      %p150 = por %p148, %p149
      %s151 = ssub.s32 %s18, %s30
      %s152 = ssub.s32 %s19, %s26
      %s153 = sor.u32 %s151, %s152
      %p154 = scmp.eq.s32.totalorder %s153, 0
      %s156 = sadd.s32 %s155, 1
      %s157 = scalar_select %p154, %s155, %s156
      %p160 = pneg %p154
      %p161 = scmp.eq.s32.totalorder %s11, 2
      %p162 = por %p160, %p161
      %p163 = scmp.ne.s32.totalorder %s155, %s158
      %p164 = scmp.eq.s32.totalorder %s11, 0
      %p165 = por %p163, %p164
      %p166 = scmp.ne.s32.totalorder %s155, %s158
      %p167 = scmp.eq.s32.totalorder %s16, 2
      %p168 = por %p166, %p167
      %p169 = scmp.ne.s32.totalorder %s158, %s159
      %p170 = scmp.eq.s32.totalorder %s16, 0
      %p171 = por %p169, %p170
      %p172 = scmp.ne.s32.totalorder %s158, %s159
      %p173 = scmp.eq.s32.totalorder %s17, 2
      %p174 = por %p172, %p173
      %p176 = scmp.ne.s32.totalorder %s159, %s175
      %p177 = scmp.eq.s32.totalorder %s17, 0
      %p178 = por %p176, %p177
      %p179 = scmp.le.s32.totalorder 1, %s11
      %p180 = scmp.lt.s32.totalorder %s11, 4
      %p181 = pnand %p179, %p180
      %p182 = pneg %p181
      // Predicated region
      $region9: #{decoder_forward.6} parent=5 // pred_check
        _
      $region10: #{decoder_forward.6} parent=5 // pred_check_branch
        %184 = sbr.rel (%p181) target = $region12
      $region11: #{decoder_forward.6} parent=5 // pred_region
        %s185 = ssub.s32 %s11, 1
        // Predicated region
        $region13: #{decoder_forward.6} parent=11 // pred_check
          %p186 = pneg %p49
        $region14: #{decoder_forward.6} parent=11 // pred_check_branch
          %188 = sbr.rel (%p186) target = $region16
        $region15: #{decoder_forward.6} parent=11 // pred_region
          %s189 = smul.u32 4, %s20
          %p190 = scmp.lt.s32.totalorder %s189, 3
          %s191 = scalar_select %p190, %s189, 3
          %s192 = smul.addr %s191, 8
          %s193 = scalar_lea.vmem %s0, %s192
          %s194 = smul.u32 4, %s20
        $region16: #{decoder_forward.6} parent=11 // pred_fallthru
          _
        // Predicated region
        $region17: #{decoder_forward.6} parent=11 // pred_check
          %p195 = pneg %p70
        $region18: #{decoder_forward.6} parent=11 // pred_check_branch
          %197 = sbr.rel (%p195) target = $region20
        $region19: #{decoder_forward.6} parent=11 // pred_region
          _
        $region20: #{decoder_forward.6} parent=11 // pred_fallthru
          _
        // Predicated region
        $region21: #{decoder_forward.6} parent=11 // pred_check
          %p198 = pneg %p91
        $region22: #{decoder_forward.6} parent=11 // pred_check_branch
          %200 = sbr.rel (%p198) target = $region24
        $region23: #{decoder_forward.6} parent=11 // pred_region
          _
        $region24: #{decoder_forward.6} parent=11 // pred_fallthru
          _
      $region12: #{decoder_forward.6} parent=5 // pred_fallthru
        _
      %p201 = scmp.lt.s32.totalorder %s11, 3
      // Predicated region
      $region25: #{decoder_forward.6} parent=5 // pred_check
        %p202 = pneg %p201
      $region26: #{decoder_forward.6} parent=5 // pred_check_branch
        %204 = sbr.rel (%p202) target = $region28
      $region27: #{decoder_forward.6} parent=5 // pred_region
        // Predicated region
        $region29: #{decoder_forward.6} parent=27 // pred_check
          %p205 = pneg %p111
        $region30: #{decoder_forward.6} parent=27 // pred_check_branch
          %207 = sbr.rel (%p205) target = $region32
        $region31: #{decoder_forward.6} parent=27 // pred_region
          %s208 = sand.u32 %s101, 1
          %s209 = sand.u32 %s101, 1
          %s210 = smul.addr %s209, 64
          %s211 = scalar_lea.vmem [#allocation3], %s210
          %s212 = smul.addr %s19, 4
          %s213 = scalar_lea.vmem %s3, %s212
          // Predicated region
          $region33: #{decoder_forward.6} parent=31 // pred_check
            _
          $region34: #{decoder_forward.6} parent=31 // pred_check_branch
            %215 = sbr.rel (0) target = $region36
          $region35: #{decoder_forward.6} parent=31 // pred_region
            // Predicated region
            $region37: #{decoder_forward.6} parent=35 // pred_check
              _
            $region38: #{decoder_forward.6} parent=35 // pred_check_branch
              %217 = sbr.rel target = $region40
            $region39: #{decoder_forward.6} parent=35 // pred_region
              // Predicated region
              $region52: #{decoder_forward.6} parent=39 // pred_check
                _
              $region53: #{decoder_forward.6} parent=39 // pred_check_branch
                %262 = sbr.rel (0) target = $region55
              $region54: #{decoder_forward.6} parent=39 // pred_region
                loop: start=0, step=1, limit=1
                $region56: #{decoder_forward.6} parent=54 // loop_pre_header
                  _
                $region57: #{decoder_forward.6} parent=54 // loop_header
                  %s264 = sphi 0, %s268
                  %p265 = scmp.ge.s32.totalorder %s264, 1
                  %s269 = sphi %s213, %s213
                  %s270 = sphi %s211, %s211
                $region58: #{decoder_forward.6} parent=54 // loop_header_branch
                  %267 = sbr.rel (%p265) target = $region62
                $region59: #{decoder_forward.6} parent=54 // loop_body
                  _
                $region60: #{decoder_forward.6} parent=54 // loop_footer
                  %s268 = sadd.s32 1, %s264
                $region61: #{decoder_forward.6} parent=54 // loop_footer_branch
                  %263 = sbr.rel target = $region57
                $region62: #{decoder_forward.6} parent=54 // loop_exit
                  _
                loop: start=0, step=1, limit=1
                $region63: #{decoder_forward.6} parent=54 // loop_pre_header
                  _
                $region64: #{decoder_forward.6} parent=54 // loop_header
                  %s273 = sphi 0, %s277
                  %p274 = scmp.ge.s32.totalorder %s273, 1
                  %s278 = sphi %s213, %s213
                  %s279 = sphi %s211, %s211
                $region65: #{decoder_forward.6} parent=54 // loop_header_branch
                  %276 = sbr.rel (%p274) target = $region69
                $region66: #{decoder_forward.6} parent=54 // loop_body
                  %v280 = vld [vmem:[%s278] sm:$0xf]
                  %281 = vst [vmem:[%s279] sm:$0xf] %v280
                  %v282 = vld [vmem:[%s278 + $0xc] sm:$0xf]
                  %283 = vst [vmem:[%s279 + $0x4] sm:$0xf] %v282
                  %v284 = vld [vmem:[%s278 + $0x18] sm:$0xf]
                  %285 = vst [vmem:[%s279 + $0x8] sm:$0xf] %v284
                  %v286 = vld [vmem:[%s278 + $0x24] sm:$0xf]
                  %287 = vst [vmem:[%s279 + $0xc] sm:$0xf] %v286
                  %v288 = vld [vmem:[%s278 + $0x30] sm:$0xf]
                  %289 = vst [vmem:[%s279 + $0x10] sm:$0xf] %v288
                  %v290 = vld [vmem:[%s278 + $0x3c] sm:$0xf]
                  %291 = vst [vmem:[%s279 + $0x14] sm:$0xf] %v290
                  %v292 = vld [vmem:[%s278 + $0x48] sm:$0xf]
                  %293 = vst [vmem:[%s279 + $0x18] sm:$0xf] %v292
                  %v294 = vld [vmem:[%s278 + $0x54] sm:$0xf]
                  %295 = vst [vmem:[%s279 + $0x1c] sm:$0xf] %v294
                  %v296 = vld [vmem:[%s278 + $0x60] sm:$0xf]
                  %297 = vst [vmem:[%s279 + $0x20] sm:$0xf] %v296
                  %v298 = vld [vmem:[%s278 + $0x6c] sm:$0xf]
                  %299 = vst [vmem:[%s279 + $0x24] sm:$0xf] %v298
                  %v300 = vld [vmem:[%s278 + $0x78] sm:$0xf]
                  %301 = vst [vmem:[%s279 + $0x28] sm:$0xf] %v300
                  %v302 = vld [vmem:[%s278 + $0x84] sm:$0xf]
                  %303 = vst [vmem:[%s279 + $0x2c] sm:$0xf] %v302
                  %v304 = vld [vmem:[%s278 + $0x90] sm:$0xf]
                  %305 = vst [vmem:[%s279 + $0x30] sm:$0xf] %v304
                  %v306 = vld [vmem:[%s278 + $0x9c] sm:$0xf]
                  %307 = vst [vmem:[%s279 + $0x34] sm:$0xf] %v306
                  %v308 = vld [vmem:[%s278 + $0xa8] sm:$0xf]
                  %309 = vst [vmem:[%s279 + $0x38] sm:$0xf] %v308
                  %v310 = vld [vmem:[%s278 + $0xb4] sm:$0xf]
                  %311 = vst [vmem:[%s279 + $0x3c] sm:$0xf] %v310
                $region67: #{decoder_forward.6} parent=54 // loop_footer
                  %s277 = sadd.s32 1, %s273
                $region68: #{decoder_forward.6} parent=54 // loop_footer_branch
                  %272 = sbr.rel target = $region64
                $region69: #{decoder_forward.6} parent=54 // loop_exit
                  _
              $region55: #{decoder_forward.6} parent=39 // pred_fallthru
                _
            $region40: #{decoder_forward.6} parent=35 // pred_fallthru
              _
            // Predicated region
            $region41: #{decoder_forward.6} parent=35 // pred_check
              _
            $region42: #{decoder_forward.6} parent=35 // pred_check_branch
              %219 = sbr.rel (0) target = $region44
            $region43: #{decoder_forward.6} parent=35 // pred_region
              loop: start=0, step=1, limit=1
              $region45: #{decoder_forward.6} parent=43 // loop_pre_header
                _
              $region46: #{decoder_forward.6} parent=43 // loop_header
                %s222 = sphi 0, %s226
                %p223 = scmp.ge.s32.totalorder %s222, 1
                %s227 = sphi %s213, %s213
                %s228 = sphi %s211, %s211
              $region47: #{decoder_forward.6} parent=43 // loop_header_branch
                %225 = sbr.rel (%p223) target = $region51
              $region48: #{decoder_forward.6} parent=43 // loop_body
                %v229 = vld [vmem:[%s227] sm:$0xf]
                %230 = vst [vmem:[%s228] sm:$0xf] %v229
                %v231 = vld [vmem:[%s227 + $0xc] sm:$0xf]
                %232 = vst [vmem:[%s228 + $0x4] sm:$0xf] %v231
                %v233 = vld [vmem:[%s227 + $0x18] sm:$0xf]
                %234 = vst [vmem:[%s228 + $0x8] sm:$0xf] %v233
                %v235 = vld [vmem:[%s227 + $0x24] sm:$0xf]
                %236 = vst [vmem:[%s228 + $0xc] sm:$0xf] %v235
                %v237 = vld [vmem:[%s227 + $0x30] sm:$0xf]
                %238 = vst [vmem:[%s228 + $0x10] sm:$0xf] %v237
                %v239 = vld [vmem:[%s227 + $0x3c] sm:$0xf]
                %240 = vst [vmem:[%s228 + $0x14] sm:$0xf] %v239
                %v241 = vld [vmem:[%s227 + $0x48] sm:$0xf]
                %242 = vst [vmem:[%s228 + $0x18] sm:$0xf] %v241
                %v243 = vld [vmem:[%s227 + $0x54] sm:$0xf]
                %244 = vst [vmem:[%s228 + $0x1c] sm:$0xf] %v243
                %v245 = vld [vmem:[%s227 + $0x60] sm:$0xf]
                %246 = vst [vmem:[%s228 + $0x20] sm:$0xf] %v245
                %v247 = vld [vmem:[%s227 + $0x6c] sm:$0xf]
                %248 = vst [vmem:[%s228 + $0x24] sm:$0xf] %v247
                %v249 = vld [vmem:[%s227 + $0x78] sm:$0xf]
                %250 = vst [vmem:[%s228 + $0x28] sm:$0xf] %v249
                %v251 = vld [vmem:[%s227 + $0x84] sm:$0xf]
                %252 = vst [vmem:[%s228 + $0x2c] sm:$0xf] %v251
                %v253 = vld [vmem:[%s227 + $0x90] sm:$0xf]
                %254 = vst [vmem:[%s228 + $0x30] sm:$0xf] %v253
                %v255 = vld [vmem:[%s227 + $0x9c] sm:$0xf]
                %256 = vst [vmem:[%s228 + $0x34] sm:$0xf] %v255
                %v257 = vld [vmem:[%s227 + $0xa8] sm:$0xf]
                %258 = vst [vmem:[%s228 + $0x38] sm:$0xf] %v257
                %v259 = vld [vmem:[%s227 + $0xb4] sm:$0xf]
                %260 = vst [vmem:[%s228 + $0x3c] sm:$0xf] %v259
              $region49: #{decoder_forward.6} parent=43 // loop_footer
                %s226 = sadd.s32 1, %s222
              $region50: #{decoder_forward.6} parent=43 // loop_footer_branch
                %221 = sbr.rel target = $region46
              $region51: #{decoder_forward.6} parent=43 // loop_exit
                _
            $region44: #{decoder_forward.6} parent=35 // pred_fallthru
              _
          $region36: #{decoder_forward.6} parent=31 // pred_fallthru
            _
          %312 = vnop
        $region32: #{decoder_forward.6} parent=27 // pred_fallthru
          _
        // Predicated region
        $region70: #{decoder_forward.6} parent=27 // pred_check
          %p313 = pneg %p137
        $region71: #{decoder_forward.6} parent=27 // pred_check_branch
          %315 = sbr.rel (%p313) target = $region73
        $region72: #{decoder_forward.6} parent=27 // pred_region
          %p316 = scmp.lt.s32.totalorder %s19, 2
          %s317 = scalar_select %p316, %s19, 2
          %s318 = scalar_lea.vmem %s4, %s317
        $region73: #{decoder_forward.6} parent=27 // pred_fallthru
          _
      $region28: #{decoder_forward.6} parent=5 // pred_fallthru
        _
      %p319 = scmp.le.s32.totalorder 1, %s11
      %p320 = scmp.lt.s32.totalorder %s11, 4
      %p321 = pnand %p319, %p320
      %p322 = pneg %p321
      // Predicated region
      $region74: #{decoder_forward.6} parent=5 // pred_check
        _
      $region75: #{decoder_forward.6} parent=5 // pred_check_branch
        %324 = sbr.rel (%p321) target = $region77
      $region76: #{decoder_forward.6} parent=5 // pred_region
        %s325 = ssub.s32 %s11, 1
        %s326 = sand.u32 %s104, 1
        %s327 = sand.u32 %s104, 1
        %s328 = smul.addr %s327, 64
        %s329 = scalar_lea.vmem [#allocation3], %s328
        // Predicated region
        $region78: #{decoder_forward.6} parent=76 // pred_check
          %p330 = pneg %p117
        $region79: #{decoder_forward.6} parent=76 // pred_check_branch
          %332 = sbr.rel (%p330) target = $region81
        $region80: #{decoder_forward.6} parent=76 // pred_region
          _
        $region81: #{decoder_forward.6} parent=76 // pred_fallthru
          _
        %s333 = smul.u32 4, %s20
        %p334 = scmp.lt.s32.totalorder %s333, 3
        %s335 = scalar_select %p334, %s333, 3
        %s336 = smul.addr %s335, 8
        %s337 = scalar_lea.vmem %s0, %s336
        %p338 = pneg %p49
        %p339 = pneg %p46
        %p340 = pneg %p70
        %p341 = pneg %p67
        %p342 = pneg %p91
        %p343 = pneg %p88
        %s344 = sand.u32 %s104, 1
        %s345 = sand.u32 %s104, 1
        %s346 = smul.addr %s345, 64
        %s347 = scalar_lea.vmem [#allocation3], %s346
        %p348 = pneg %p117
        %p349 = pneg %p114
        %p350 = scmp.lt.s32.totalorder %s21, 2
        %s351 = scalar_select %p350, %s21, 2
        %s352 = scalar_lea.vmem %s4, %s351
        %p353 = pneg %p143
        %p354 = pneg %p140
        %p355 = pneg %p171
        %p356 = pneg %p168
        %s357 = sand.u32 %s158, 1
        %s358 = sand.u32 %s158, 1
        %s359 = smul.addr %s358, 32
        %s360 = scalar_lea.vmem [#allocation4], %s359
        %s361 = smul.u32 4, %s20
        %p362 = scmp.lt.s32.totalorder %s361, 3
        %s363 = scalar_select %p362, %s361, 3
        %s364 = smul.addr %s363, 8
        %s365 = scalar_lea.vmem %s0, %s364
        %s366 = smul.u32 4, %s20
        %p367 = scmp.lt.s32.totalorder %s21, 2
        %s368 = scalar_select %p367, %s21, 2
        %s369 = scalar_lea.vmem %s4, %s368
        %s370 = smul.u32 4, %s20
        %p372 = scmp.eq.s32.totalorder %s21, 0
        // Predicated region
        $region82: #{decoder_forward.6} parent=76 // pred_check
          %p373 = pneg %p372
        $region83: #{decoder_forward.6} parent=76 // pred_check_branch
          %375 = sbr.rel (%p373) target = $region85
        $region84: #{decoder_forward.6} parent=76 // pred_region
          %v376 = vld [vmem:[%s365] sm:$0xff]
          %v377 = vld [vmem:[%s365 + $0x8] sm:$0xff]
          %v378 = vld [vmem:[%s365 + $0x10] sm:$0xff]
          %v379 = vld [vmem:[%s365 + $0x18] sm:$0xff]
          %380 = vadd.xlane.f32.xlu0 %v376
          %v381 = vpop.xlane.xlu0 %380
          %382 = vadd.xlane.f32.xlu0 %v377
          %v383 = vpop.xlane.xlu0 %382
          %384 = vadd.xlane.f32.xlu0 %v378
          %v385 = vpop.xlane.xlu0 %384
          %386 = vadd.xlane.f32.xlu0 %v379
          %v387 = vpop.xlane.xlu0 %386
          %v388 = vrcp.pop 128.0
          %v389 = vmul.f32 %v381, %v388
          %v390 = vmul.f32 %v383, %v388
          %v391 = vmul.f32 %v385, %v388
          %v392 = vmul.f32 %v387, %v388
          %v393 = vsub.f32 %v376, %v389
          %v394 = vsub.f32 %v377, %v390
          %v395 = vsub.f32 %v378, %v391
          %v396 = vsub.f32 %v379, %v392
          %v397 = vmul.f32 %v393, %v393
          %v398 = vmul.f32 %v394, %v394
          %v399 = vmul.f32 %v395, %v395
          %v400 = vmul.f32 %v396, %v396
          %401 = vadd.xlane.f32.xlu0 %v397
          %v402 = vpop.xlane.xlu0 %401
          %403 = vadd.xlane.f32.xlu0 %v398
          %v404 = vpop.xlane.xlu0 %403
          %405 = vadd.xlane.f32.xlu0 %v399
          %v406 = vpop.xlane.xlu0 %405
          %407 = vadd.xlane.f32.xlu0 %v400
          %v408 = vpop.xlane.xlu0 %407
          %v409 = vmul.f32 %v402, 0.007874016
          %v410 = vmul.f32 %v404, 0.007874016
          %v411 = vmul.f32 %v406, 0.007874016
          %v412 = vmul.f32 %v408, 0.007874016
          %v413 = vrsqrt.pop %v409
          %v414 = vmul.f32 %v409, %v413
          %vm415 = vcmp.eq.f32.partialorder %v409, inf
          %v416 = vsel %vm415, %v409, %v414
          %vm417 = vcmp.eq.f32.partialorder %v409, 0.0
          %v418 = vand.u32 %v409, 2147483648
          %v419 = vsel %vm417, %v418, %v416
          %v420 = vrsqrt.pop %v410
          %v421 = vmul.f32 %v410, %v420
          %vm422 = vcmp.eq.f32.partialorder %v410, inf
          %v423 = vsel %vm422, %v410, %v421
          %vm424 = vcmp.eq.f32.partialorder %v410, 0.0
          %v425 = vand.u32 %v410, 2147483648
          %v426 = vsel %vm424, %v425, %v423
          %v427 = vrsqrt.pop %v411
          %v428 = vmul.f32 %v411, %v427
          %vm429 = vcmp.eq.f32.partialorder %v411, inf
          %v430 = vsel %vm429, %v411, %v428
          %vm431 = vcmp.eq.f32.partialorder %v411, 0.0
          %v432 = vand.u32 %v411, 2147483648
          %v433 = vsel %vm431, %v432, %v430
          %v434 = vrsqrt.pop %v412
          %v435 = vmul.f32 %v412, %v434
          %vm436 = vcmp.eq.f32.partialorder %v412, inf
          %v437 = vsel %vm436, %v412, %v435
          %vm438 = vcmp.eq.f32.partialorder %v412, 0.0
          %v439 = vand.u32 %v412, 2147483648
          %v440 = vsel %vm438, %v439, %v437
          %v441 = vadd.f32 %v419, 1e-06
          %v442 = vadd.f32 %v426, 1e-06
          %v443 = vadd.f32 %v433, 1e-06
          %v444 = vadd.f32 %v440, 1e-06
          %v445 = vrcp.pop %v441
          %v446 = vmul.f32 1.0, %v445
          %v447 = vrcp.pop %v442
          %v448 = vmul.f32 1.0, %v447
          %v449 = vrcp.pop %v443
          %v450 = vmul.f32 1.0, %v449
          %v451 = vrcp.pop %v444
          %v452 = vmul.f32 1.0, %v451
          %v453 = vld [vmem:[%s1] sm:$0x1]
          %v455 = vlaneseq
          %v456 = vshrl.u32 %v455, 7
          %v457 = vsub.s32 0, %v456
          %v458 = vrot.slane %v453, %v457
          %v460 = vmul.f32 %v458, %v393
          %v461 = vmul.f32 %v458, %v394
          %v462 = vmul.f32 %v458, %v395
          %v463 = vmul.f32 %v458, %v396
          %v464 = vmul.f32 %v460, %v446
          %v465 = vmul.f32 %v461, %v448
          %v466 = vmul.f32 %v462, %v450
          %v467 = vmul.f32 %v463, %v452
          %v468 = vld [vmem:[%s2] sm:$0x1]
          %v470 = vlaneseq
          %v471 = vshrl.u32 %v470, 7
          %v472 = vsub.s32 0, %v471
          %v473 = vrot.slane %v468, %v472
          %v475 = vadd.f32 %v464, %v473
          %v476 = vadd.f32 %v465, %v473
          %v477 = vadd.f32 %v466, %v473
          %v478 = vadd.f32 %v467, %v473
          %v479 = vpack.c.bf16 %v476, %v475
          %v480 = vpack.c.bf16 %v478, %v477
          %481 = vst [vmem:[#allocation2] sm:$0xff] %v479
          %482 = vst [vmem:[#allocation2 + $0x8] sm:$0xff] %v480
        $region85: #{decoder_forward.6} parent=76 // pred_fallthru
          _
        %v483 = vld [vmem:[#allocation2] sm:$0xff]
        %v484 = vld [vmem:[#allocation2 + $0x8] sm:$0xff]
        %v485 = vld [vmem:[%s329] sm:$0xf]
        %v486 = vld [vmem:[%s329 + $0x4] sm:$0xf]
        %v487 = vld [vmem:[%s329 + $0x8] sm:$0xf]
        %v488 = vld [vmem:[%s329 + $0xc] sm:$0xf]
        %v489 = vld [vmem:[%s329 + $0x10] sm:$0xf]
        %v490 = vld [vmem:[%s329 + $0x14] sm:$0xf]
        %v491 = vld [vmem:[%s329 + $0x18] sm:$0xf]
        %v492 = vld [vmem:[%s329 + $0x1c] sm:$0xf]
        %v493 = vld [vmem:[%s329 + $0x20] sm:$0xf]
        %v494 = vld [vmem:[%s329 + $0x24] sm:$0xf]
        %v495 = vld [vmem:[%s329 + $0x28] sm:$0xf]
        %v496 = vld [vmem:[%s329 + $0x2c] sm:$0xf]
        %v497 = vld [vmem:[%s329 + $0x30] sm:$0xf]
        %v498 = vld [vmem:[%s329 + $0x34] sm:$0xf]
        %v499 = vld [vmem:[%s329 + $0x38] sm:$0xf]
        %v500 = vld [vmem:[%s329 + $0x3c] sm:$0xf]
        %v501 = vld [vmem:[%s369] sm:$0x1]
        %v503 = vlaneseq
        %v504 = vshrl.u32 %v503, 7
        %v505 = vsub.s32 0, %v504
        %v506 = vrot.slane %v501, %v505
        %v524 = vunpack.c.l.b16 %v485
        %v525 = vunpack.c.l.b16 %v486
        %v526 = vunpack.c.l.b16 %v487
        %v527 = vunpack.c.l.b16 %v488
        %v528 = vunpack.c.l.b16 %v489
        %v529 = vunpack.c.l.b16 %v490
        %v530 = vunpack.c.l.b16 %v491
        %v531 = vunpack.c.l.b16 %v492
        %v532 = vunpack.c.l.b16 %v493
        %v533 = vunpack.c.l.b16 %v494
        %v534 = vunpack.c.l.b16 %v495
        %v535 = vunpack.c.l.b16 %v496
        %v536 = vunpack.c.l.b16 %v497
        %v537 = vunpack.c.l.b16 %v498
        %v538 = vunpack.c.l.b16 %v499
        %v539 = vunpack.c.l.b16 %v500
        %v540 = vpack.c.b16 %v525, %v524
        %v541 = vpack.c.b16 %v527, %v526
        %v542 = vpack.c.b16 %v529, %v528
        %v543 = vpack.c.b16 %v531, %v530
        %v544 = vpack.c.b16 %v533, %v532
        %v545 = vpack.c.b16 %v535, %v534
        %v546 = vpack.c.b16 %v537, %v536
        %v547 = vpack.c.b16 %v539, %v538
        %556 = vmatprep.subr.bf16.mxu0 0
        %557 = vmatpush1.bf16.msra.mxu0 %v540
        %558 = vmatprep.subr.bf16.mxu0 0
        %559 = vmatpush1.bf16.msra.mxu0 %v541
        %560 = vmatprep.subr.bf16.mxu0 0
        %561 = vmatpush1.bf16.msra.mxu0 %v542
        %562 = vmatprep.subr.bf16.mxu0 0
        %563 = vmatpush1.bf16.msra.mxu0 %v543
        %564 = vmatprep.subr.bf16.mxu0 0
        %565 = vmatpush1.bf16.msra.mxu0 %v544
        %566 = vmatprep.subr.bf16.mxu0 0
        %567 = vmatpush1.bf16.msra.mxu0 %v545
        %568 = vmatprep.subr.bf16.mxu0 0
        %569 = vmatpush1.bf16.msra.mxu0 %v546
        %570 = vmatprep.subr.bf16.mxu0 0
        %571 = vmatpush1.bf16.msra.mxu0 %v547
        %572 = vmatprep.subr.bf16.mxu0 0
        %573 = vmatpush1.bf16.msra.mxu0 0
        %574 = vmatprep.subr.bf16.mxu0 0
        %575 = vmatpush1.bf16.msra.mxu0 0
        %576 = vmatprep.subr.bf16.mxu0 0
        %577 = vmatpush1.bf16.msra.mxu0 0
        %578 = vmatprep.subr.bf16.mxu0 0
        %579 = vmatpush1.bf16.msra.mxu0 0
        %580 = vmatprep.subr.bf16.mxu0 0
        %581 = vmatpush1.bf16.msra.mxu0 0
        %582 = vmatprep.subr.bf16.mxu0 0
        %583 = vmatpush1.bf16.msra.mxu0 0
        %584 = vmatprep.subr.bf16.mxu0 0
        %585 = vmatpush1.bf16.msra.mxu0 0
        %586 = vmatprep.subr.bf16.mxu0 0
        %587 = vmatpush1.bf16.msra.mxu0 0
        %588 = vmatprep.mubr.bf16.mxu0 0
        %589 = vmatmul.mubr.bf16.gmra.mrb[0].mxu0 %v483
        %v590 = vpop.f32.mrb[0].mxu0
        %v591 = vadd.f32 %v506, %v590
        %v592 = vpop.f32.mrb[0].mxu0
        %v593 = vpop.f32.mrb[0].mxu0
        %v594 = vadd.f32 %v506, %v593
        %v595 = vpop.f32.mrb[0].mxu0
        %596 = vmatprep.mubr.bf16.mxu0 0
        %597 = vmatmul.mubr.bf16.gmra.mrb[0].mxu0 %v484
        %v598 = vpop.f32.mrb[0].mxu0
        %v599 = vadd.f32 %v506, %v598
        %v600 = vpop.f32.mrb[0].mxu0
        %v601 = vpop.f32.mrb[0].mxu0
        %v602 = vadd.f32 %v506, %v601
        %v603 = vpop.f32.mrb[0].mxu0
        %604 = vdwg.mxu0
        %605 = vst [vmem:[%s360] sm:$0xff] %v591
        %606 = vst [vmem:[%s360 + $0x8] sm:$0xff] %v594
        %607 = vst [vmem:[%s360 + $0x10] sm:$0xff] %v599
        %608 = vst [vmem:[%s360 + $0x18] sm:$0xff] %v602
        %s609 = sand.u32 %s158, 1
        %s610 = sand.u32 %s158, 1
        %s611 = smul.addr %s610, 32
        %s612 = scalar_lea.vmem [#allocation4], %s611
        // Predicated region
        $region86: #{decoder_forward.6} parent=76 // pred_check
          %p613 = pneg %p168
        $region87: #{decoder_forward.6} parent=76 // pred_check_branch
          %615 = sbr.rel (%p613) target = $region89
        $region88: #{decoder_forward.6} parent=76 // pred_region
          %s616 = smul.u32 4, %s20
          %s617 = smul.addr %s616, 3
          %s618 = sadd.s32 %s21, %s617
          %s619 = smul.addr %s618, 8
          %s620 = scalar_lea.vmem %s5, %s619
          // Predicated region
          $region90: #{decoder_forward.6} parent=88 // pred_check
            _
          $region91: #{decoder_forward.6} parent=88 // pred_check_branch
            %622 = sbr.rel (0) target = $region93
          $region92: #{decoder_forward.6} parent=88 // pred_region
            // Predicated region
            $region94: #{decoder_forward.6} parent=92 // pred_check
              _
            $region95: #{decoder_forward.6} parent=92 // pred_check_branch
              %624 = sbr.rel (0) target = $region97
            $region96: #{decoder_forward.6} parent=92 // pred_region
              // Predicated region
              $region109: #{decoder_forward.6} parent=96 // pred_check
                _
              $region110: #{decoder_forward.6} parent=96 // pred_check_branch
                %645 = sbr.rel (0) target = $region112
              $region111: #{decoder_forward.6} parent=96 // pred_region
                loop: start=0, step=1, limit=1
                $region113: #{decoder_forward.6} parent=111 // loop_pre_header
                  _
                $region114: #{decoder_forward.6} parent=111 // loop_header
                  %s647 = sphi 0, %s651
                  %p648 = scmp.ge.s32.totalorder %s647, 1
                  %s652 = sphi %s612, %s612
                  %s653 = sphi %s620, %s620
                $region115: #{decoder_forward.6} parent=111 // loop_header_branch
                  %650 = sbr.rel (%p648) target = $region119
                $region116: #{decoder_forward.6} parent=111 // loop_body
                  %v654 = vld [vmem:[%s652] sm:$0xff]
                  %655 = vst [vmem:[%s653] sm:$0xff] %v654
                  %v656 = vld [vmem:[%s652 + $0x8] sm:$0xff]
                  %657 = vst [vmem:[%s653 + $0x18] sm:$0xff] %v656
                  %v658 = vld [vmem:[%s652 + $0x10] sm:$0xff]
                  %659 = vst [vmem:[%s653 + $0x30] sm:$0xff] %v658
                  %v660 = vld [vmem:[%s652 + $0x18] sm:$0xff]
                  %661 = vst [vmem:[%s653 + $0x48] sm:$0xff] %v660
                $region117: #{decoder_forward.6} parent=111 // loop_footer
                  %s651 = sadd.s32 1, %s647
                $region118: #{decoder_forward.6} parent=111 // loop_footer_branch
                  %646 = sbr.rel target = $region114
                $region119: #{decoder_forward.6} parent=111 // loop_exit
                  _
              $region112: #{decoder_forward.6} parent=96 // pred_fallthru
                _
              // Predicated region
              $region120: #{decoder_forward.6} parent=96 // pred_check
                _
              $region121: #{decoder_forward.6} parent=96 // pred_check_branch
                %663 = sbr.rel target = $region123
              $region122: #{decoder_forward.6} parent=96 // pred_region
                _
              $region123: #{decoder_forward.6} parent=96 // pred_fallthru
                _
            $region97: #{decoder_forward.6} parent=92 // pred_fallthru
              _
            // Predicated region
            $region98: #{decoder_forward.6} parent=92 // pred_check
              _
            $region99: #{decoder_forward.6} parent=92 // pred_check_branch
              %626 = sbr.rel target = $region101
            $region100: #{decoder_forward.6} parent=92 // pred_region
              loop: start=0, step=1, limit=1
              $region102: #{decoder_forward.6} parent=100 // loop_pre_header
                _
              $region103: #{decoder_forward.6} parent=100 // loop_header
                %s629 = sphi 0, %s633
                %p630 = scmp.ge.s32.totalorder %s629, 1
                %s634 = sphi %s612, %s612
                %s635 = sphi %s620, %s620
              $region104: #{decoder_forward.6} parent=100 // loop_header_branch
                %632 = sbr.rel (%p630) target = $region108
              $region105: #{decoder_forward.6} parent=100 // loop_body
                %v636 = vld [vmem:[%s634] sm:$0xff]
                %637 = vst [vmem:[%s635] sm:$0xff] %v636
                %v638 = vld [vmem:[%s634 + $0x8] sm:$0xff]
                %639 = vst [vmem:[%s635 + $0x18] sm:$0xff] %v638
                %v640 = vld [vmem:[%s634 + $0x10] sm:$0xff]
                %641 = vst [vmem:[%s635 + $0x30] sm:$0xff] %v640
                %v642 = vld [vmem:[%s634 + $0x18] sm:$0xff]
                %643 = vst [vmem:[%s635 + $0x48] sm:$0xff] %v642
              $region106: #{decoder_forward.6} parent=100 // loop_footer
                %s633 = sadd.s32 1, %s629
              $region107: #{decoder_forward.6} parent=100 // loop_footer_branch
                %628 = sbr.rel target = $region103
              $region108: #{decoder_forward.6} parent=100 // loop_exit
                _
            $region101: #{decoder_forward.6} parent=92 // pred_fallthru
              _
          $region93: #{decoder_forward.6} parent=88 // pred_fallthru
            _
          %664 = vnop
        $region89: #{decoder_forward.6} parent=76 // pred_fallthru
          _
      $region77: #{decoder_forward.6} parent=5 // pred_fallthru
        _
      %p665 = scmp.le.s32.totalorder 2, %s11
      // Predicated region
      $region124: #{decoder_forward.6} parent=5 // pred_check
        %p666 = pneg %p665
      $region125: #{decoder_forward.6} parent=5 // pred_check_branch
        %668 = sbr.rel (%p666) target = $region127
      $region126: #{decoder_forward.6} parent=5 // pred_region
        %s669 = ssub.s32 %s11, 2
        // Predicated region
        $region128: #{decoder_forward.6} parent=126 // pred_check
          %p670 = pneg %p174
        $region129: #{decoder_forward.6} parent=126 // pred_check_branch
          %672 = sbr.rel (%p670) target = $region131
        $region130: #{decoder_forward.6} parent=126 // pred_region
          %s673 = sand.u32 %s159, 1
          %s674 = sand.u32 %s159, 1
          %s675 = smul.addr %s674, 32
          %s676 = scalar_lea.vmem [#allocation4], %s675
        $region131: #{decoder_forward.6} parent=126 // pred_fallthru
          _
      $region127: #{decoder_forward.6} parent=5 // pred_fallthru
        _
    $region6: #{decoder_forward.6} parent=1 // loop_footer
      %s15 = sadd.s32 1, %s11
    $region7: #{decoder_forward.6} parent=1 // loop_footer_branch
      %10 = sbr.rel target = $region3
    $region8: #{decoder_forward.6} parent=1 // loop_exit
      _

// kernel: decoder_forward.8
$region0: #{decoder_forward.8}
  #allocation0 [shape = 'u32[]', space=smem, size = 0x4, offset = 0x4, fixed_abs, tag = 'smem constant byte address 0x4 - core index']
  #allocation1 [shape = 'u32[144,128]{1,0:T(1,128)}', space=vmem, size = 0x12000, scoped, tag = 'internal scratch']
  #allocation2 [shape = 'bf16[32,128]{1,0:T(16,128)(2,1)}', space=vmem, size = 0x2000, scoped, tag = 'scratch operand']
  %s0 = inlined_call_operand.vmem [shape: f32[32,128], index: 0, kind: input, shape index: {}]
  %s1 = inlined_call_operand.vmem [shape: f32[1,128], index: 1, kind: input, shape index: {}]
  %s2 = inlined_call_operand.vmem [shape: f32[1,128], index: 2, kind: input, shape index: {}]
  %s3 = inlined_call_operand.vmem [shape: bf16[128,128], index: 3, kind: input, shape index: {}]
  %s4 = inlined_call_operand.vmem [shape: f32[1,128], index: 4, kind: input, shape index: {}]
  %s5 = inlined_call_operand.vmem [shape: f32[32,128], index: 5, kind: output, shape index: {}]
  %s6 = sld [smem:[#allocation0]]
  $region34: #{decoder_forward.8} parent=0
    _
  %s8 = ssub.s32 1, %s6
  %s9 = scalar_select 0, %s8, %s6
  // Predicated region
  $region2: #{decoder_forward.8} parent=0 // pred_check
    _
  $region3: #{decoder_forward.8} parent=0 // pred_check_branch
    %11 = sbr.rel (0) target = $region5
  $region4: #{decoder_forward.8} parent=0 // pred_region
    _
  $region5: #{decoder_forward.8} parent=0 // pred_fallthru
    _
  // Predicated region
  $region6: #{decoder_forward.8} parent=0 // pred_check
    _
  $region7: #{decoder_forward.8} parent=0 // pred_check_branch
    %13 = sbr.rel (0) target = $region9
  $region8: #{decoder_forward.8} parent=0 // pred_region
    _
  $region9: #{decoder_forward.8} parent=0 // pred_fallthru
    _
  // Predicated region
  $region10: #{decoder_forward.8} parent=0 // pred_check
    _
  $region11: #{decoder_forward.8} parent=0 // pred_check_branch
    %15 = sbr.rel (0) target = $region13
  $region12: #{decoder_forward.8} parent=0 // pred_region
    _
  $region13: #{decoder_forward.8} parent=0 // pred_fallthru
    _
  // Predicated region
  $region14: #{decoder_forward.8} parent=0 // pred_check
    _
  $region15: #{decoder_forward.8} parent=0 // pred_check_branch
    %17 = sbr.rel (0) target = $region17
  $region16: #{decoder_forward.8} parent=0 // pred_region
    _
  $region17: #{decoder_forward.8} parent=0 // pred_fallthru
    _
  // Predicated region
  $region18: #{decoder_forward.8} parent=0 // pred_check
    _
  $region19: #{decoder_forward.8} parent=0 // pred_check_branch
    %19 = sbr.rel (0) target = $region21
  $region20: #{decoder_forward.8} parent=0 // pred_region
    _
  $region21: #{decoder_forward.8} parent=0 // pred_fallthru
    _
  %p21 = scmp.eq.s32.totalorder 0, 0
  // Predicated region
  $region22: #{decoder_forward.8} parent=0 // pred_check
    %p22 = pneg %p21
  $region23: #{decoder_forward.8} parent=0 // pred_check_branch
    %24 = sbr.rel (%p22) target = $region25
  $region24: #{decoder_forward.8} parent=0 // pred_region
    %v25 = vld [vmem:[%s0] sm:$0xff]
    %v26 = vld [vmem:[%s0 + $0x8] sm:$0xff]
    %v27 = vld [vmem:[%s0 + $0x10] sm:$0xff]
    %v28 = vld [vmem:[%s0 + $0x18] sm:$0xff]
    %29 = vadd.xlane.f32.xlu0 %v25
    %v30 = vpop.xlane.xlu0 %29
    %31 = vadd.xlane.f32.xlu0 %v26
    %v32 = vpop.xlane.xlu0 %31
    %33 = vadd.xlane.f32.xlu0 %v27
    %v34 = vpop.xlane.xlu0 %33
    %35 = vadd.xlane.f32.xlu0 %v28
    %v36 = vpop.xlane.xlu0 %35
    %v37 = vrcp.pop 128.0
    %v38 = vmul.f32 %v30, %v37
    %v39 = vmul.f32 %v32, %v37
    %v40 = vmul.f32 %v34, %v37
    %v41 = vmul.f32 %v36, %v37
    %v42 = vsub.f32 %v25, %v38
    %v43 = vsub.f32 %v26, %v39
    %v44 = vsub.f32 %v27, %v40
    %v45 = vsub.f32 %v28, %v41
    %v46 = vmul.f32 %v42, %v42
    %v47 = vmul.f32 %v43, %v43
    %v48 = vmul.f32 %v44, %v44
    %v49 = vmul.f32 %v45, %v45
    %50 = vadd.xlane.f32.xlu0 %v46
    %v51 = vpop.xlane.xlu0 %50
    %52 = vadd.xlane.f32.xlu0 %v47
    %v53 = vpop.xlane.xlu0 %52
    %54 = vadd.xlane.f32.xlu0 %v48
    %v55 = vpop.xlane.xlu0 %54
    %56 = vadd.xlane.f32.xlu0 %v49
    %v57 = vpop.xlane.xlu0 %56
    %v58 = vmul.f32 %v51, 0.007874016
    %v59 = vmul.f32 %v53, 0.007874016
    %v60 = vmul.f32 %v55, 0.007874016
    %v61 = vmul.f32 %v57, 0.007874016
    %v62 = vrsqrt.pop %v58
    %v63 = vmul.f32 %v58, %v62
    %vm64 = vcmp.eq.f32.partialorder %v58, inf
    %v65 = vsel %vm64, %v58, %v63
    %vm66 = vcmp.eq.f32.partialorder %v58, 0.0
    %v67 = vand.u32 %v58, 2147483648
    %v68 = vsel %vm66, %v67, %v65
    %v69 = vrsqrt.pop %v59
    %v70 = vmul.f32 %v59, %v69
    %vm71 = vcmp.eq.f32.partialorder %v59, inf
    %v72 = vsel %vm71, %v59, %v70
    %vm73 = vcmp.eq.f32.partialorder %v59, 0.0
    %v74 = vand.u32 %v59, 2147483648
    %v75 = vsel %vm73, %v74, %v72
    %v76 = vrsqrt.pop %v60
    %v77 = vmul.f32 %v60, %v76
    %vm78 = vcmp.eq.f32.partialorder %v60, inf
    %v79 = vsel %vm78, %v60, %v77
    %vm80 = vcmp.eq.f32.partialorder %v60, 0.0
    %v81 = vand.u32 %v60, 2147483648
    %v82 = vsel %vm80, %v81, %v79
    %v83 = vrsqrt.pop %v61
    %v84 = vmul.f32 %v61, %v83
    %vm85 = vcmp.eq.f32.partialorder %v61, inf
    %v86 = vsel %vm85, %v61, %v84
    %vm87 = vcmp.eq.f32.partialorder %v61, 0.0
    %v88 = vand.u32 %v61, 2147483648
    %v89 = vsel %vm87, %v88, %v86
    %v90 = vadd.f32 %v68, 1e-06
    %v91 = vadd.f32 %v75, 1e-06
    %v92 = vadd.f32 %v82, 1e-06
    %v93 = vadd.f32 %v89, 1e-06
    %v94 = vrcp.pop %v90
    %v95 = vmul.f32 1.0, %v94
    %v96 = vrcp.pop %v91
    %v97 = vmul.f32 1.0, %v96
    %v98 = vrcp.pop %v92
    %v99 = vmul.f32 1.0, %v98
    %v100 = vrcp.pop %v93
    %v101 = vmul.f32 1.0, %v100
    %v102 = vld [vmem:[%s1] sm:$0x1]
    %v104 = vlaneseq
    %v105 = vshrl.u32 %v104, 7
    %v106 = vsub.s32 0, %v105
    %v107 = vrot.slane %v102, %v106
    %v109 = vmul.f32 %v107, %v42
    %v110 = vmul.f32 %v107, %v43
    %v111 = vmul.f32 %v107, %v44
    %v112 = vmul.f32 %v107, %v45
    %v113 = vmul.f32 %v109, %v95
    %v114 = vmul.f32 %v110, %v97
    %v115 = vmul.f32 %v111, %v99
    %v116 = vmul.f32 %v112, %v101
    %v117 = vld [vmem:[%s2] sm:$0x1]
    %v119 = vlaneseq
    %v120 = vshrl.u32 %v119, 7
    %v121 = vsub.s32 0, %v120
    %v122 = vrot.slane %v117, %v121
    %v124 = vadd.f32 %v113, %v122
    %v125 = vadd.f32 %v114, %v122
    %v126 = vadd.f32 %v115, %v122
    %v127 = vadd.f32 %v116, %v122
    %v128 = vpack.c.bf16 %v125, %v124
    %v129 = vpack.c.bf16 %v127, %v126
    %130 = vst [vmem:[#allocation2] sm:$0xff] %v128
    %131 = vst [vmem:[#allocation2 + $0x8] sm:$0xff] %v129
  $region25: #{decoder_forward.8} parent=0 // pred_fallthru
    _
  %v132 = vld [vmem:[#allocation2] sm:$0xff]
  %v133 = vld [vmem:[#allocation2 + $0x8] sm:$0xff]
  %v134 = vld [vmem:[%s3] sm:$0xf]
  %v135 = vld [vmem:[%s3 + $0x4] sm:$0xf]
  %v136 = vld [vmem:[%s3 + $0x8] sm:$0xf]
  %v137 = vld [vmem:[%s3 + $0xc] sm:$0xf]
  %v138 = vld [vmem:[%s3 + $0x10] sm:$0xf]
  %v139 = vld [vmem:[%s3 + $0x14] sm:$0xf]
  %v140 = vld [vmem:[%s3 + $0x18] sm:$0xf]
  %v141 = vld [vmem:[%s3 + $0x1c] sm:$0xf]
  %v142 = vld [vmem:[%s3 + $0x20] sm:$0xf]
  %v143 = vld [vmem:[%s3 + $0x24] sm:$0xf]
  %v144 = vld [vmem:[%s3 + $0x28] sm:$0xf]
  %v145 = vld [vmem:[%s3 + $0x2c] sm:$0xf]
  %v146 = vld [vmem:[%s3 + $0x30] sm:$0xf]
  %v147 = vld [vmem:[%s3 + $0x34] sm:$0xf]
  %v148 = vld [vmem:[%s3 + $0x38] sm:$0xf]
  %v149 = vld [vmem:[%s3 + $0x3c] sm:$0xf]
  %v150 = vld [vmem:[%s4] sm:$0x1]
  %v152 = vlaneseq
  %v153 = vshrl.u32 %v152, 7
  %v154 = vsub.s32 0, %v153
  %v155 = vrot.slane %v150, %v154
  %v173 = vunpack.c.l.b16 %v134
  %v174 = vunpack.c.l.b16 %v135
  %v175 = vunpack.c.l.b16 %v136
  %v176 = vunpack.c.l.b16 %v137
  %v177 = vunpack.c.l.b16 %v138
  %v178 = vunpack.c.l.b16 %v139
  %v179 = vunpack.c.l.b16 %v140
  %v180 = vunpack.c.l.b16 %v141
  %v181 = vunpack.c.l.b16 %v142
  %v182 = vunpack.c.l.b16 %v143
  %v183 = vunpack.c.l.b16 %v144
  %v184 = vunpack.c.l.b16 %v145
  %v185 = vunpack.c.l.b16 %v146
  %v186 = vunpack.c.l.b16 %v147
  %v187 = vunpack.c.l.b16 %v148
  %v188 = vunpack.c.l.b16 %v149
  %v189 = vpack.c.b16 %v174, %v173
  %v190 = vpack.c.b16 %v176, %v175
  %v191 = vpack.c.b16 %v178, %v177
  %v192 = vpack.c.b16 %v180, %v179
  %v193 = vpack.c.b16 %v182, %v181
  %v194 = vpack.c.b16 %v184, %v183
  %v195 = vpack.c.b16 %v186, %v185
  %v196 = vpack.c.b16 %v188, %v187
  %205 = vmatprep.subr.bf16.mxu0 0
  %206 = vmatpush1.bf16.msra.mxu0 %v189
  %207 = vmatprep.subr.bf16.mxu0 0
  %208 = vmatpush1.bf16.msra.mxu0 %v190
  %209 = vmatprep.subr.bf16.mxu0 0
  %210 = vmatpush1.bf16.msra.mxu0 %v191
  %211 = vmatprep.subr.bf16.mxu0 0
  %212 = vmatpush1.bf16.msra.mxu0 %v192
  %213 = vmatprep.subr.bf16.mxu0 0
  %214 = vmatpush1.bf16.msra.mxu0 %v193
  %215 = vmatprep.subr.bf16.mxu0 0
  %216 = vmatpush1.bf16.msra.mxu0 %v194
  %217 = vmatprep.subr.bf16.mxu0 0
  %218 = vmatpush1.bf16.msra.mxu0 %v195
  %219 = vmatprep.subr.bf16.mxu0 0
  %220 = vmatpush1.bf16.msra.mxu0 %v196
  %221 = vmatprep.subr.bf16.mxu0 0
  %222 = vmatpush1.bf16.msra.mxu0 0
  %223 = vmatprep.subr.bf16.mxu0 0
  %224 = vmatpush1.bf16.msra.mxu0 0
  %225 = vmatprep.subr.bf16.mxu0 0
  %226 = vmatpush1.bf16.msra.mxu0 0
  %227 = vmatprep.subr.bf16.mxu0 0
  %228 = vmatpush1.bf16.msra.mxu0 0
  %229 = vmatprep.subr.bf16.mxu0 0
  %230 = vmatpush1.bf16.msra.mxu0 0
  %231 = vmatprep.subr.bf16.mxu0 0
  %232 = vmatpush1.bf16.msra.mxu0 0
  %233 = vmatprep.subr.bf16.mxu0 0
  %234 = vmatpush1.bf16.msra.mxu0 0
  %235 = vmatprep.subr.bf16.mxu0 0
  %236 = vmatpush1.bf16.msra.mxu0 0
  %237 = vmatprep.mubr.bf16.mxu0 0
  %238 = vmatmul.mubr.bf16.gmra.mrb[0].mxu0 %v132
  %v239 = vpop.f32.mrb[0].mxu0
  %v240 = vadd.f32 %v155, %v239
  %v241 = vpop.f32.mrb[0].mxu0
  %v242 = vpop.f32.mrb[0].mxu0
  %v243 = vadd.f32 %v155, %v242
  %v244 = vpop.f32.mrb[0].mxu0
  %245 = vmatprep.mubr.bf16.mxu0 0
  %246 = vmatmul.mubr.bf16.gmra.mrb[0].mxu0 %v133
  %v247 = vpop.f32.mrb[0].mxu0
  %v248 = vadd.f32 %v155, %v247
  %v249 = vpop.f32.mrb[0].mxu0
  %v250 = vpop.f32.mrb[0].mxu0
  %v251 = vadd.f32 %v155, %v250
  %v252 = vpop.f32.mrb[0].mxu0
  %253 = vdwg.mxu0
  %254 = vst [vmem:[%s5] sm:$0xff] %v240
  %255 = vst [vmem:[%s5 + $0x8] sm:$0xff] %v243
  %256 = vst [vmem:[%s5 + $0x10] sm:$0xff] %v248
  %257 = vst [vmem:[%s5 + $0x18] sm:$0xff] %v251
  // Predicated region
  $region26: #{decoder_forward.8} parent=0 // pred_check
    _
  $region27: #{decoder_forward.8} parent=0 // pred_check_branch
    %259 = sbr.rel (0) target = $region29
  $region28: #{decoder_forward.8} parent=0 // pred_region
    _
  $region29: #{decoder_forward.8} parent=0 // pred_fallthru
    _
  // Predicated region
  $region30: #{decoder_forward.8} parent=0 // pred_check
    _
  $region31: #{decoder_forward.8} parent=0 // pred_check_branch
    %261 = sbr.rel (0) target = $region33
  $region32: #{decoder_forward.8} parent=0 // pred_region
    _
  $region33: #{decoder_forward.8} parent=0 // pred_fallthru
    _

// kernel: decoder_forward.7
$region0: #{decoder_forward.7}
  #allocation0 [shape = 'u32[]', space=smem, size = 0x4, offset = 0x4, fixed_abs, tag = 'smem constant byte address 0x4 - core index']
  #allocation1 [shape = 'u32[144,128]{1,0:T(1,128)}', space=vmem, size = 0x12000, scoped, tag = 'internal scratch']
  %s0 = inlined_call_operand.vmem [shape: f32[2,16,384], index: 0, kind: input, shape index: {}, may-alias: {0,1}]
  %s1 = inlined_call_operand.vmem [shape: f32[2,16,384], index: 1, kind: input, shape index: {}, may-alias: {0,1}]
  %s2 = inlined_call_operand.vmem [shape: bf16[128,128], index: 2, kind: input, shape index: {}]
  %s3 = inlined_call_operand.vmem [shape: f32[1,128], index: 3, kind: input, shape index: {}]
  %s4 = inlined_call_operand.vmem [shape: f32[2,16,128], index: 4, kind: input, shape index: {}]
  %s5 = inlined_call_operand.vmem [shape: f32[2,16,128], index: 5, kind: output, shape index: {}]
  %s6 = sld [smem:[#allocation0]]
  $region114: #{decoder_forward.7} parent=0
    _
  %s8 = ssub.s32 1, %s6
  %s9 = scalar_select 0, %s8, %s6
  $region1: #{decoder_forward.7} parent=0
    #allocation2 [shape = 'u8[16384]{0}', space=vmem, size = 0x4000, scoped, tag = 'input window, operand 0']
    #allocation3 [shape = 'u8[32768]{0}', space=vmem, size = 0x8000, scoped, tag = 'input window, operand 1']
    loop: start=0, step=1, limit=4
    $region2: #{decoder_forward.7} parent=1 // loop_pre_header
      _
    $region3: #{decoder_forward.7} parent=1 // loop_header
      %s11 = sphi 0, %s15
      %p12 = scmp.ge.s32.totalorder %s11, 4
      %s18 = sphi 0, %s30
      %s19 = sphi 0, %s26
      %s20 = sphi 0, %s18
      %s21 = sphi 0, %s19
      %s22 = sphi 0, %s20
      %s23 = sphi 0, %s21
      %s35 = sphi 0, %s37
      %s38 = sphi 0, %s35
      %s39 = sphi 0, %s38
      %s55 = sphi 0, %s39
      %s61 = sphi 0, %s63
      %s64 = sphi 0, %s61
      %s65 = sphi 0, %s64
      %s81 = sphi 0, %s65
      %s85 = sphi 0, %s85
      %s87 = sphi 0, %s85
      %s88 = sphi 0, %s87
      %s102 = sphi 0, %s88
      %s106 = sphi 0, %s106
      %s108 = sphi 0, %s106
      %s109 = sphi 0, %s108
      %s123 = sphi 0, %s109
      %s131 = sphi 0, %s133
      %s134 = sphi 0, %s131
      %s135 = sphi 0, %s134
      %s151 = sphi 0, %s135
      %s159 = sphi 0, %s161
      %s162 = sphi 0, %s159
      %s163 = sphi 0, %s162
      %s179 = sphi 0, %s163
    $region4: #{decoder_forward.7} parent=1 // loop_header_branch
      %14 = sbr.rel (%p12) target = $region8
    $region5: #{decoder_forward.7} parent=1 // loop_body
      %s16 = ssub.s32 %s11, 1
      %s17 = ssub.s32 %s11, 2
      %s24 = sadd.s32 1, %s19
      %p25 = scmp.ge.s32.totalorder %s24, 1
      %s26 = scalar_select %p25, 0, %s24
      %s27 = sadd.s32 1, %s18
      %s28 = scalar_select %p25, %s27, %s18
      %p29 = scmp.ge.s32.totalorder %s28, 2
      %s30 = scalar_select %p29, 0, %s28
      %s31 = ssub.s32 %s18, %s30
      %s32 = ssub.s32 %s19, %s26
      %s33 = sor.u32 %s31, %s32
      %p34 = scmp.eq.s32.totalorder %s33, 0
      %s36 = sadd.s32 %s35, 1
      %s37 = scalar_select %p34, %s35, %s36
      %p40 = pneg %p34
      %p41 = scmp.eq.s32.totalorder %s11, 1
      %p42 = por %p40, %p41
      %p43 = scmp.ne.s32.totalorder %s35, %s38
      %p44 = scmp.eq.s32.totalorder %s11, 0
      %p45 = por %p43, %p44
      %p46 = scmp.ne.s32.totalorder %s35, %s38
      %p47 = scmp.eq.s32.totalorder %s16, 1
      %p48 = por %p46, %p47
      %p49 = scmp.ne.s32.totalorder %s38, %s39
      %p50 = scmp.eq.s32.totalorder %s16, 0
      %p51 = por %p49, %p50
      %p52 = scmp.ne.s32.totalorder %s38, %s39
      %p53 = scmp.eq.s32.totalorder %s17, 1
      %p54 = por %p52, %p53
      %p56 = scmp.ne.s32.totalorder %s39, %s55
      %p57 = scmp.eq.s32.totalorder %s17, 0
      %p58 = por %p56, %p57
      %s59 = ssub.s32 %s18, %s30
      %p60 = scmp.eq.s32.totalorder %s59, 0
      %s62 = sadd.s32 %s61, 1
      %s63 = scalar_select %p60, %s61, %s62
      %p66 = pneg %p60
      %p67 = scmp.eq.s32.totalorder %s11, 1
      %p68 = por %p66, %p67
      %p69 = scmp.ne.s32.totalorder %s61, %s64
      %p70 = scmp.eq.s32.totalorder %s11, 0
      %p71 = por %p69, %p70
      %p72 = scmp.ne.s32.totalorder %s61, %s64
      %p73 = scmp.eq.s32.totalorder %s16, 1
      %p74 = por %p72, %p73
      %p75 = scmp.ne.s32.totalorder %s64, %s65
      %p76 = scmp.eq.s32.totalorder %s16, 0
      %p77 = por %p75, %p76
      %p78 = scmp.ne.s32.totalorder %s64, %s65
      %p79 = scmp.eq.s32.totalorder %s17, 1
      %p80 = por %p78, %p79
      %p82 = scmp.ne.s32.totalorder %s65, %s81
      %p83 = scmp.eq.s32.totalorder %s17, 0
      %p84 = por %p82, %p83
      %s86 = sadd.s32 %s85, 1
      %p89 = scmp.eq.s32.totalorder %s11, 1
      %p90 = scmp.ne.s32.totalorder %s85, %s87
      %p91 = scmp.eq.s32.totalorder %s11, 0
      %p92 = por %p90, %p91
      %p93 = scmp.ne.s32.totalorder %s85, %s87
      %p94 = scmp.eq.s32.totalorder %s16, 1
      %p95 = por %p93, %p94
      %p96 = scmp.ne.s32.totalorder %s87, %s88
      %p97 = scmp.eq.s32.totalorder %s16, 0
      %p98 = por %p96, %p97
      %p99 = scmp.ne.s32.totalorder %s87, %s88
      %p100 = scmp.eq.s32.totalorder %s17, 1
      %p101 = por %p99, %p100
      %p103 = scmp.ne.s32.totalorder %s88, %s102
      %p104 = scmp.eq.s32.totalorder %s17, 0
      %p105 = por %p103, %p104
      %s107 = sadd.s32 %s106, 1
      %p110 = scmp.eq.s32.totalorder %s11, 1
      %p111 = scmp.ne.s32.totalorder %s106, %s108
      %p112 = scmp.eq.s32.totalorder %s11, 0
      %p113 = por %p111, %p112
      %p114 = scmp.ne.s32.totalorder %s106, %s108
      %p115 = scmp.eq.s32.totalorder %s16, 1
      %p116 = por %p114, %p115
      %p117 = scmp.ne.s32.totalorder %s108, %s109
      %p118 = scmp.eq.s32.totalorder %s16, 0
      %p119 = por %p117, %p118
      %p120 = scmp.ne.s32.totalorder %s108, %s109
      %p121 = scmp.eq.s32.totalorder %s17, 1
      %p122 = por %p120, %p121
      %p124 = scmp.ne.s32.totalorder %s109, %s123
      %p125 = scmp.eq.s32.totalorder %s17, 0
      %p126 = por %p124, %p125
      %s127 = ssub.s32 %s18, %s30
      %s128 = ssub.s32 %s19, %s26
      %s129 = sor.u32 %s127, %s128
      %p130 = scmp.eq.s32.totalorder %s129, 0
      %s132 = sadd.s32 %s131, 1
      %s133 = scalar_select %p130, %s131, %s132
      %p136 = pneg %p130
      %p137 = scmp.eq.s32.totalorder %s11, 1
      %p138 = por %p136, %p137
      %p139 = scmp.ne.s32.totalorder %s131, %s134
      %p140 = scmp.eq.s32.totalorder %s11, 0
      %p141 = por %p139, %p140
      %p142 = scmp.ne.s32.totalorder %s131, %s134
      %p143 = scmp.eq.s32.totalorder %s16, 1
      %p144 = por %p142, %p143
      %p145 = scmp.ne.s32.totalorder %s134, %s135
      %p146 = scmp.eq.s32.totalorder %s16, 0
      %p147 = por %p145, %p146
      %p148 = scmp.ne.s32.totalorder %s134, %s135
      %p149 = scmp.eq.s32.totalorder %s17, 1
      %p150 = por %p148, %p149
      %p152 = scmp.ne.s32.totalorder %s135, %s151
      %p153 = scmp.eq.s32.totalorder %s17, 0
      %p154 = por %p152, %p153
      %s155 = ssub.s32 %s18, %s30
      %s156 = ssub.s32 %s19, %s26
      %s157 = sor.u32 %s155, %s156
      %p158 = scmp.eq.s32.totalorder %s157, 0
      %s160 = sadd.s32 %s159, 1
      %s161 = scalar_select %p158, %s159, %s160
      %p164 = pneg %p158
      %p165 = scmp.eq.s32.totalorder %s11, 1
      %p166 = por %p164, %p165
      %p167 = scmp.ne.s32.totalorder %s159, %s162
      %p168 = scmp.eq.s32.totalorder %s11, 0
      %p169 = por %p167, %p168
      %p170 = scmp.ne.s32.totalorder %s159, %s162
      %p171 = scmp.eq.s32.totalorder %s16, 1
      %p172 = por %p170, %p171
      %p173 = scmp.ne.s32.totalorder %s162, %s163
      %p174 = scmp.eq.s32.totalorder %s16, 0
      %p175 = por %p173, %p174
      %p176 = scmp.ne.s32.totalorder %s162, %s163
      %p177 = scmp.eq.s32.totalorder %s17, 1
      %p178 = por %p176, %p177
      %p180 = scmp.ne.s32.totalorder %s163, %s179
      %p181 = scmp.eq.s32.totalorder %s17, 0
      %p182 = por %p180, %p181
      %p183 = scmp.le.s32.totalorder 1, %s11
      %p184 = scmp.lt.s32.totalorder %s11, 3
      %p185 = pnand %p183, %p184
      %p186 = pneg %p185
      // Predicated region
      $region9: #{decoder_forward.7} parent=5 // pred_check
        _
      $region10: #{decoder_forward.7} parent=5 // pred_check_branch
        %188 = sbr.rel (%p185) target = $region12
      $region11: #{decoder_forward.7} parent=5 // pred_region
        %s189 = ssub.s32 %s11, 1
        // Predicated region
        $region13: #{decoder_forward.7} parent=11 // pred_check
          %p190 = pneg %p98
        $region14: #{decoder_forward.7} parent=11 // pred_check_branch
          %192 = sbr.rel (%p190) target = $region16
        $region15: #{decoder_forward.7} parent=11 // pred_region
          _
        $region16: #{decoder_forward.7} parent=11 // pred_fallthru
          _
        // Predicated region
        $region17: #{decoder_forward.7} parent=11 // pred_check
          %p193 = pneg %p119
        $region18: #{decoder_forward.7} parent=11 // pred_check_branch
          %195 = sbr.rel (%p193) target = $region20
        $region19: #{decoder_forward.7} parent=11 // pred_region
          _
        $region20: #{decoder_forward.7} parent=11 // pred_fallthru
          _
      $region12: #{decoder_forward.7} parent=5 // pred_fallthru
        _
      %p196 = scmp.lt.s32.totalorder %s11, 2
      // Predicated region
      $region21: #{decoder_forward.7} parent=5 // pred_check
        %p197 = pneg %p196
      $region22: #{decoder_forward.7} parent=5 // pred_check_branch
        %199 = sbr.rel (%p197) target = $region24
      $region23: #{decoder_forward.7} parent=5 // pred_region
        // Predicated region
        $region25: #{decoder_forward.7} parent=23 // pred_check
          %p200 = pneg %p45
        $region26: #{decoder_forward.7} parent=23 // pred_check_branch
          %202 = sbr.rel (%p200) target = $region28
        $region27: #{decoder_forward.7} parent=23 // pred_region
          %s203 = sand.u32 %s35, 1
          %s204 = sand.u32 %s35, 1
          %s205 = smul.addr %s204, 16
          %s206 = scalar_lea.vmem [#allocation2], %s205
          %s207 = smul.u32 2, %s19
          %s208 = smul.addr %s207, 3
          %s209 = sadd.s32 2, %s208
          %s210 = smul.addr %s18, 6
          %s211 = sadd.s32 %s209, %s210
          %s212 = smul.addr %s211, 8
          %s213 = scalar_lea.vmem %s0, %s212
          // Predicated region
          $region29: #{decoder_forward.7} parent=27 // pred_check
            _
          $region30: #{decoder_forward.7} parent=27 // pred_check_branch
            %215 = sbr.rel (0) target = $region32
          $region31: #{decoder_forward.7} parent=27 // pred_region
            // Predicated region
            $region33: #{decoder_forward.7} parent=31 // pred_check
              _
            $region34: #{decoder_forward.7} parent=31 // pred_check_branch
              %217 = sbr.rel (0) target = $region36
            $region35: #{decoder_forward.7} parent=31 // pred_region
              // Predicated region
              $region48: #{decoder_forward.7} parent=35 // pred_check
                _
              $region49: #{decoder_forward.7} parent=35 // pred_check_branch
                %234 = sbr.rel (0) target = $region51
              $region50: #{decoder_forward.7} parent=35 // pred_region
                loop: start=0, step=1, limit=1
                $region52: #{decoder_forward.7} parent=50 // loop_pre_header
                  _
                $region53: #{decoder_forward.7} parent=50 // loop_header
                  %s236 = sphi 0, %s240
                  %p237 = scmp.ge.s32.totalorder %s236, 1
                  %s241 = sphi %s213, %s213
                  %s242 = sphi %s206, %s206
                $region54: #{decoder_forward.7} parent=50 // loop_header_branch
                  %239 = sbr.rel (%p237) target = $region58
                $region55: #{decoder_forward.7} parent=50 // loop_body
                  %v243 = vld [vmem:[%s241] sm:$0xff]
                  %244 = vst [vmem:[%s242] sm:$0xff] %v243
                  %v245 = vld [vmem:[%s241 + $0x18] sm:$0xff]
                  %246 = vst [vmem:[%s242 + $0x8] sm:$0xff] %v245
                $region56: #{decoder_forward.7} parent=50 // loop_footer
                  %s240 = sadd.s32 1, %s236
                $region57: #{decoder_forward.7} parent=50 // loop_footer_branch
                  %235 = sbr.rel target = $region53
                $region58: #{decoder_forward.7} parent=50 // loop_exit
                  _
              $region51: #{decoder_forward.7} parent=35 // pred_fallthru
                _
              // Predicated region
              $region59: #{decoder_forward.7} parent=35 // pred_check
                _
              $region60: #{decoder_forward.7} parent=35 // pred_check_branch
                %248 = sbr.rel target = $region62
              $region61: #{decoder_forward.7} parent=35 // pred_region
                _
              $region62: #{decoder_forward.7} parent=35 // pred_fallthru
                _
            $region36: #{decoder_forward.7} parent=31 // pred_fallthru
              _
            // Predicated region
            $region37: #{decoder_forward.7} parent=31 // pred_check
              _
            $region38: #{decoder_forward.7} parent=31 // pred_check_branch
              %219 = sbr.rel target = $region40
            $region39: #{decoder_forward.7} parent=31 // pred_region
              loop: start=0, step=1, limit=1
              $region41: #{decoder_forward.7} parent=39 // loop_pre_header
                _
              $region42: #{decoder_forward.7} parent=39 // loop_header
                %s222 = sphi 0, %s226
                %p223 = scmp.ge.s32.totalorder %s222, 1
                %s227 = sphi %s213, %s213
                %s228 = sphi %s206, %s206
              $region43: #{decoder_forward.7} parent=39 // loop_header_branch
                %225 = sbr.rel (%p223) target = $region47
              $region44: #{decoder_forward.7} parent=39 // loop_body
                %v229 = vld [vmem:[%s227] sm:$0xff]
                %230 = vst [vmem:[%s228] sm:$0xff] %v229
                %v231 = vld [vmem:[%s227 + $0x18] sm:$0xff]
                %232 = vst [vmem:[%s228 + $0x8] sm:$0xff] %v231
              $region45: #{decoder_forward.7} parent=39 // loop_footer
                %s226 = sadd.s32 1, %s222
              $region46: #{decoder_forward.7} parent=39 // loop_footer_branch
                %221 = sbr.rel target = $region42
              $region47: #{decoder_forward.7} parent=39 // loop_exit
                _
            $region40: #{decoder_forward.7} parent=31 // pred_fallthru
              _
          $region32: #{decoder_forward.7} parent=27 // pred_fallthru
            _
          %249 = vnop
        $region28: #{decoder_forward.7} parent=23 // pred_fallthru
          _
        // Predicated region
        $region63: #{decoder_forward.7} parent=23 // pred_check
          %p250 = pneg %p71
        $region64: #{decoder_forward.7} parent=23 // pred_check_branch
          %252 = sbr.rel (%p250) target = $region66
        $region65: #{decoder_forward.7} parent=23 // pred_region
          %s253 = sand.u32 %s61, 1
          %s254 = sand.u32 %s61, 1
          %s255 = smul.addr %s254, 32
          %s256 = scalar_lea.vmem [#allocation3], %s255
          %s257 = smul.addr %s18, 6
          %s258 = smul.addr %s257, 8
          %s259 = scalar_lea.vmem %s1, %s258
          // Predicated region
          $region67: #{decoder_forward.7} parent=65 // pred_check
            _
          $region68: #{decoder_forward.7} parent=65 // pred_check_branch
            %261 = sbr.rel (0) target = $region70
          $region69: #{decoder_forward.7} parent=65 // pred_region
            // Predicated region
            $region71: #{decoder_forward.7} parent=69 // pred_check
              _
            $region72: #{decoder_forward.7} parent=69 // pred_check_branch
              %263 = sbr.rel (0) target = $region74
            $region73: #{decoder_forward.7} parent=69 // pred_region
              loop: start=0, step=1, limit=1
              $region75: #{decoder_forward.7} parent=73 // loop_pre_header
                _
              $region76: #{decoder_forward.7} parent=73 // loop_header
                %s265 = sphi 0, %s269
                %p266 = scmp.ge.s32.totalorder %s265, 1
                %s270 = sphi %s259, %s259
                %s271 = sphi %s256, %s256
              $region77: #{decoder_forward.7} parent=73 // loop_header_branch
                %268 = sbr.rel (%p266) target = $region81
              $region78: #{decoder_forward.7} parent=73 // loop_body
                %v272 = vld [vmem:[%s270] sm:$0xff]
                %273 = vst [vmem:[%s271] sm:$0xff] %v272
                %v274 = vld [vmem:[%s270 + $0x8] sm:$0xff]
                %275 = vst [vmem:[%s271 + $0x8] sm:$0xff] %v274
                %v276 = vld [vmem:[%s270 + $0x18] sm:$0xff]
                %277 = vst [vmem:[%s271 + $0x10] sm:$0xff] %v276
                %v278 = vld [vmem:[%s270 + $0x20] sm:$0xff]
                %279 = vst [vmem:[%s271 + $0x18] sm:$0xff] %v278
              $region79: #{decoder_forward.7} parent=73 // loop_footer
                %s269 = sadd.s32 1, %s265
              $region80: #{decoder_forward.7} parent=73 // loop_footer_branch
                %264 = sbr.rel target = $region76
              $region81: #{decoder_forward.7} parent=73 // loop_exit
                _
            $region74: #{decoder_forward.7} parent=69 // pred_fallthru
              _
            // Predicated region
            $region82: #{decoder_forward.7} parent=69 // pred_check
              _
            $region83: #{decoder_forward.7} parent=69 // pred_check_branch
              %281 = sbr.rel target = $region85
            $region84: #{decoder_forward.7} parent=69 // pred_region
              _
            $region85: #{decoder_forward.7} parent=69 // pred_fallthru
              _
          $region70: #{decoder_forward.7} parent=65 // pred_fallthru
            _
          %282 = vnop
        $region66: #{decoder_forward.7} parent=23 // pred_fallthru
          _
        // Predicated region
        $region86: #{decoder_forward.7} parent=23 // pred_check
          %p283 = pneg %p141
        $region87: #{decoder_forward.7} parent=23 // pred_check_branch
          %285 = sbr.rel (%p283) target = $region89
        $region88: #{decoder_forward.7} parent=23 // pred_region
          %s286 = smul.u32 2, %s19
          %p287 = scmp.lt.s32.totalorder %s18, 1
          %s288 = scalar_select %p287, %s18, 1
          %p289 = scmp.lt.s32.totalorder %s286, 1
          %s290 = scalar_select %p289, %s286, 1
          %s291 = smul.addr %s288, 2
          %s292 = sadd.s32 %s290, %s291
          %s293 = smul.addr %s292, 8
          %s294 = scalar_lea.vmem %s4, %s293
          %s295 = smul.u32 2, %s19
        $region89: #{decoder_forward.7} parent=23 // pred_fallthru
          _
      $region24: #{decoder_forward.7} parent=5 // pred_fallthru
        _
      %p296 = scmp.le.s32.totalorder 1, %s11
      %p297 = scmp.lt.s32.totalorder %s11, 3
      %p298 = pnand %p296, %p297
      %p299 = pneg %p298
      // Predicated region
      $region90: #{decoder_forward.7} parent=5 // pred_check
        _
      $region91: #{decoder_forward.7} parent=5 // pred_check_branch
        %301 = sbr.rel (%p298) target = $region93
      $region92: #{decoder_forward.7} parent=5 // pred_region
        %s302 = ssub.s32 %s11, 1
        %s303 = sand.u32 %s38, 1
        %s304 = sand.u32 %s38, 1
        %s305 = smul.addr %s304, 16
        %s306 = scalar_lea.vmem [#allocation2], %s305
        // Predicated region
        $region94: #{decoder_forward.7} parent=92 // pred_check
          %p307 = pneg %p51
        $region95: #{decoder_forward.7} parent=92 // pred_check_branch
          %309 = sbr.rel (%p307) target = $region97
        $region96: #{decoder_forward.7} parent=92 // pred_region
          _
        $region97: #{decoder_forward.7} parent=92 // pred_fallthru
          _
        %s310 = sand.u32 %s64, 1
        %s311 = sand.u32 %s64, 1
        %s312 = smul.addr %s311, 32
        %s313 = scalar_lea.vmem [#allocation3], %s312
        // Predicated region
        $region98: #{decoder_forward.7} parent=92 // pred_check
          %p314 = pneg %p77
        $region99: #{decoder_forward.7} parent=92 // pred_check_branch
          %316 = sbr.rel (%p314) target = $region101
        $region100: #{decoder_forward.7} parent=92 // pred_region
          _
        $region101: #{decoder_forward.7} parent=92 // pred_fallthru
          _
        %s317 = sand.u32 %s38, 1
        %s318 = sand.u32 %s38, 1
        %s319 = smul.addr %s318, 16
        %s320 = scalar_lea.vmem [#allocation2], %s319
        %p321 = pneg %p51
        %p322 = pneg %p48
        %s323 = sand.u32 %s64, 1
        %s324 = sand.u32 %s64, 1
        %s325 = smul.addr %s324, 32
        %s326 = scalar_lea.vmem [#allocation3], %s325
        %p327 = pneg %p77
        %p328 = pneg %p74
        %p329 = pneg %p98
        %p330 = pneg %p95
        %p331 = pneg %p119
        %p332 = pneg %p116
        %s333 = smul.u32 2, %s21
        %p334 = scmp.lt.s32.totalorder %s20, 1
        %s335 = scalar_select %p334, %s20, 1
        %p336 = scmp.lt.s32.totalorder %s333, 1
        %s337 = scalar_select %p336, %s333, 1
        %s338 = smul.addr %s335, 2
        %s339 = sadd.s32 %s337, %s338
        %s340 = smul.addr %s339, 8
        %s341 = scalar_lea.vmem %s4, %s340
        %p342 = pneg %p147
        %p343 = pneg %p144
        %p344 = pneg %p175
        %p345 = pneg %p172
        %s346 = smul.u32 2, %s21
        %p347 = scmp.lt.s32.totalorder %s20, 1
        %s348 = scalar_select %p347, %s20, 1
        %p349 = scmp.lt.s32.totalorder %s346, 1
        %s350 = scalar_select %p349, %s346, 1
        %s351 = smul.addr %s348, 2
        %s352 = sadd.s32 %s350, %s351
        %s353 = smul.addr %s352, 8
        %s354 = scalar_lea.vmem %s5, %s353
        %s355 = smul.u32 2, %s21
        %s356 = smul.u32 2, %s21
        %p357 = scmp.lt.s32.totalorder %s20, 1
        %s358 = scalar_select %p357, %s20, 1
        %p359 = scmp.lt.s32.totalorder %s356, 1
        %s360 = scalar_select %p359, %s356, 1
        %s361 = smul.addr %s358, 2
        %s362 = sadd.s32 %s360, %s361
        %s363 = smul.addr %s362, 8
        %s364 = scalar_lea.vmem %s4, %s363
        %s365 = smul.u32 2, %s21
        %s366 = smul.u32 2, %s21
        %p367 = scmp.lt.s32.totalorder %s20, 1
        %s368 = scalar_select %p367, %s20, 1
        %p369 = scmp.lt.s32.totalorder %s366, 1
        %s370 = scalar_select %p369, %s366, 1
        %s371 = smul.addr %s368, 2
        %s372 = sadd.s32 %s370, %s371
        %s373 = smul.addr %s372, 8
        %s374 = scalar_lea.vmem %s5, %s373
        %s375 = smul.u32 2, %s21
        %v377 = vld [vmem:[%s306] sm:$0xff]
        %v378 = vld [vmem:[%s306 + $0x8] sm:$0xff]
        %v379 = vld [vmem:[%s313] sm:$0xff]
        %v380 = vld [vmem:[%s313 + $0x8] sm:$0xff]
        %v381 = vld [vmem:[%s313 + $0x10] sm:$0xff]
        %v382 = vld [vmem:[%s313 + $0x18] sm:$0xff]
        %v383 = vld [vmem:[%s2] sm:$0xf]
        %v384 = vld [vmem:[%s2 + $0x4] sm:$0xf]
        %v385 = vld [vmem:[%s2 + $0x8] sm:$0xf]
        %v386 = vld [vmem:[%s2 + $0xc] sm:$0xf]
        %v387 = vld [vmem:[%s2 + $0x10] sm:$0xf]
        %v388 = vld [vmem:[%s2 + $0x14] sm:$0xf]
        %v389 = vld [vmem:[%s2 + $0x18] sm:$0xf]
        %v390 = vld [vmem:[%s2 + $0x1c] sm:$0xf]
        %v391 = vld [vmem:[%s2 + $0x20] sm:$0xf]
        %v392 = vld [vmem:[%s2 + $0x24] sm:$0xf]
        %v393 = vld [vmem:[%s2 + $0x28] sm:$0xf]
        %v394 = vld [vmem:[%s2 + $0x2c] sm:$0xf]
        %v395 = vld [vmem:[%s2 + $0x30] sm:$0xf]
        %v396 = vld [vmem:[%s2 + $0x34] sm:$0xf]
        %v397 = vld [vmem:[%s2 + $0x38] sm:$0xf]
        %v398 = vld [vmem:[%s2 + $0x3c] sm:$0xf]
        %v399 = vld [vmem:[%s364] sm:$0xff]
        %v400 = vld [vmem:[%s364 + $0x8] sm:$0xff]
        %v401 = vld [vmem:[%s3] sm:$0x1]
        %v403 = vlaneseq
        %v404 = vshrl.u32 %v403, 7
        %v405 = vsub.s32 0, %v404
        %v406 = vrot.slane %v401, %v405
        %v408 = vadd.f32 %v399, %v406
        %v409 = vadd.f32 %v400, %v406
        %v410 = vpack.c.bf16 %v378, %v377
        %v411 = vpack.c.bf16 %v381, %v379
        %v412 = vpack.c.bf16 %v382, %v380
        %vm413 = vcmask 261120
        %v415 = vsel %vm413, %v410, 0
        %v418 = vsel %vm413, %v411, 0
        %420 = vmatprep.subr.bf16.mxu0 0
        %421 = vmatpush1.bf16.xpose.msra.mxu0 %v418
        %422 = vmatprep.subr.bf16.mxu0 0
        %423 = vmatpush1.bf16.xpose.msra.mxu0 0
        %424 = vmatprep.subr.bf16.mxu0 0
        %425 = vmatpush1.bf16.xpose.msra.mxu0 0
        %426 = vmatprep.subr.bf16.mxu0 0
        %427 = vmatpush1.bf16.xpose.msra.mxu0 0
        %428 = vmatprep.subr.bf16.mxu0 0
        %429 = vmatpush1.bf16.xpose.msra.mxu0 0
        %430 = vmatprep.subr.bf16.mxu0 0
        %431 = vmatpush1.bf16.xpose.msra.mxu0 0
        %432 = vmatprep.subr.bf16.mxu0 0
        %433 = vmatpush1.bf16.xpose.msra.mxu0 0
        %434 = vmatprep.subr.bf16.mxu0 0
        %435 = vmatpush1.bf16.xpose.msra.mxu0 0
        %436 = vmatprep.subr.bf16.mxu0 0
        %437 = vmatpush1.bf16.xpose.msra.mxu0 0
        %438 = vmatprep.subr.bf16.mxu0 0
        %439 = vmatpush1.bf16.xpose.msra.mxu0 0
        %440 = vmatprep.subr.bf16.mxu0 0
        %441 = vmatpush1.bf16.xpose.msra.mxu0 0
        %442 = vmatprep.subr.bf16.mxu0 0
        %443 = vmatpush1.bf16.xpose.msra.mxu0 0
        %444 = vmatprep.subr.bf16.mxu0 0
        %445 = vmatpush1.bf16.xpose.msra.mxu0 0
        %446 = vmatprep.subr.bf16.mxu0 0
        %447 = vmatpush1.bf16.xpose.msra.mxu0 0
        %448 = vmatprep.subr.bf16.mxu0 0
        %449 = vmatpush1.bf16.xpose.msra.mxu0 0
        %450 = vmatprep.subr.bf16.mxu0 0
        %451 = vmatpush1.bf16.xpose.msra.mxu0 0
        %452 = vmatprep.mubr.bf16.mxu0 0
        %453 = vmatmul.mubr.bf16.gmra.mrb[0].mxu0 %v415
        %v454 = vpop.f32.mrb[0].mxu0
        %v455 = vadd.f32 0.0, %v454
        %v456 = vpop.f32.mrb[0].mxu0
        %v457 = vpop.f32.mrb[0].mxu0
        %v458 = vadd.f32 0.0, %v457
        %v459 = vpop.f32.mrb[0].mxu0
        %460 = vdwg.mxu0
        %v461 = vmul.f32 %v455, 0.17677669
        %v462 = vmul.f32 %v458, 0.17677669
        %vm463 = vcmask 130048
        %v464 = vsel %vm463, %v461, -inf
        %465 = vmax.xlane.f32.xlu0 %v464
        %v466 = vpop.xlane.xlu0 %465
        %v467 = vsel %vm463, %v462, -inf
        %468 = vmax.xlane.f32.xlu0 %v467
        %v469 = vpop.xlane.xlu0 %468
        %v470 = vsub.f32 %v461, %v466
        %v471 = vsub.f32 %v462, %v469
        %v472 = vmul.f32 %v470, 1.442695
        %v473 = vpow.pop %v472
        %v474 = vmul.f32 %v471, 1.442695
        %v475 = vpow.pop %v474
        %v476 = vsel %vm463, %v473, 0.0
        %477 = vadd.xlane.f32.xlu0 %v476
        %v478 = vpop.xlane.xlu0 %477
        %v479 = vsel %vm463, %v475, 0.0
        %480 = vadd.xlane.f32.xlu0 %v479
        %v481 = vpop.xlane.xlu0 %480
        %v482 = vrcp.pop %v478
        %v483 = vrcp.pop %v481
        %v484 = vmul.f32 %v473, %v482
        %v485 = vmul.f32 %v475, %v483
        %v486 = vpack.c.bf16 %v485, %v484
        %v488 = vsel %vm463, %v486, 0
        %490 = vmatprep.subr.bf16.mxu0 0
        %491 = vmatpush1.bf16.msra.mxu0 %v412
        %492 = vmatprep.subr.bf16.mxu0 0
        %493 = vmatpush1.bf16.msra.mxu0 0
        %494 = vmatprep.subr.bf16.mxu0 0
        %495 = vmatpush1.bf16.msra.mxu0 0
        %496 = vmatprep.subr.bf16.mxu0 0
        %497 = vmatpush1.bf16.msra.mxu0 0
        %498 = vmatprep.subr.bf16.mxu0 0
        %499 = vmatpush1.bf16.msra.mxu0 0
        %500 = vmatprep.subr.bf16.mxu0 0
        %501 = vmatpush1.bf16.msra.mxu0 0
        %502 = vmatprep.subr.bf16.mxu0 0
        %503 = vmatpush1.bf16.msra.mxu0 0
        %504 = vmatprep.subr.bf16.mxu0 0
        %505 = vmatpush1.bf16.msra.mxu0 0
        %506 = vmatprep.subr.bf16.mxu0 0
        %507 = vmatpush1.bf16.msra.mxu0 0
        %508 = vmatprep.subr.bf16.mxu0 0
        %509 = vmatpush1.bf16.msra.mxu0 0
        %510 = vmatprep.subr.bf16.mxu0 0
        %511 = vmatpush1.bf16.msra.mxu0 0
        %512 = vmatprep.subr.bf16.mxu0 0
        %513 = vmatpush1.bf16.msra.mxu0 0
        %514 = vmatprep.subr.bf16.mxu0 0
        %515 = vmatpush1.bf16.msra.mxu0 0
        %516 = vmatprep.subr.bf16.mxu0 0
        %517 = vmatpush1.bf16.msra.mxu0 0
        %518 = vmatprep.subr.bf16.mxu0 0
        %519 = vmatpush1.bf16.msra.mxu0 0
        %520 = vmatprep.subr.bf16.mxu0 0
        %521 = vmatpush1.bf16.msra.mxu0 0
        %522 = vmatprep.mubr.bf16.mxu0 0
        %523 = vmatmul.mubr.bf16.gmra.mrb[0].mxu0 %v488
        %v524 = vpop.f32.mrb[0].mxu0
        %v525 = vadd.f32 0.0, %v524
        %v526 = vpop.f32.mrb[0].mxu0
        %v527 = vpop.f32.mrb[0].mxu0
        %v528 = vadd.f32 0.0, %v527
        %v529 = vpop.f32.mrb[0].mxu0
        %530 = vdwg.mxu0
        %v531 = vpack.c.bf16 %v528, %v525
        %v536 = vunpack.c.l.b16 %v383
        %v537 = vunpack.c.l.b16 %v384
        %v538 = vunpack.c.l.b16 %v385
        %v539 = vunpack.c.l.b16 %v386
        %v540 = vpack.c.b16 %v537, %v536
        %v541 = vpack.c.b16 %v539, %v538
        %v545 = vsel %vm413, %v531, 0
        %547 = vmatprep.subr.bf16.mxu0 0
        %548 = vmatpush1.bf16.msra.mxu0 %v540
        %549 = vmatprep.subr.bf16.mxu0 0
        %550 = vmatpush1.bf16.msra.mxu0 %v541
        %551 = vmatprep.subr.bf16.mxu0 0
        %552 = vmatpush1.bf16.msra.mxu0 0
        %553 = vmatprep.subr.bf16.mxu0 0
        %554 = vmatpush1.bf16.msra.mxu0 0
        %555 = vmatprep.subr.bf16.mxu0 0
        %556 = vmatpush1.bf16.msra.mxu0 0
        %557 = vmatprep.subr.bf16.mxu0 0
        %558 = vmatpush1.bf16.msra.mxu0 0
        %559 = vmatprep.subr.bf16.mxu0 0
        %560 = vmatpush1.bf16.msra.mxu0 0
        %561 = vmatprep.subr.bf16.mxu0 0
        %562 = vmatpush1.bf16.msra.mxu0 0
        %563 = vmatprep.subr.bf16.mxu0 0
        %564 = vmatpush1.bf16.msra.mxu0 0
        %565 = vmatprep.subr.bf16.mxu0 0
        %566 = vmatpush1.bf16.msra.mxu0 0
        %567 = vmatprep.subr.bf16.mxu0 0
        %568 = vmatpush1.bf16.msra.mxu0 0
        %569 = vmatprep.subr.bf16.mxu0 0
        %570 = vmatpush1.bf16.msra.mxu0 0
        %571 = vmatprep.subr.bf16.mxu0 0
        %572 = vmatpush1.bf16.msra.mxu0 0
        %573 = vmatprep.subr.bf16.mxu0 0
        %574 = vmatpush1.bf16.msra.mxu0 0
        %575 = vmatprep.subr.bf16.mxu0 0
        %576 = vmatpush1.bf16.msra.mxu0 0
        %577 = vmatprep.subr.bf16.mxu0 0
        %578 = vmatpush1.bf16.msra.mxu0 0
        %579 = vmatprep.mubr.bf16.mxu0 0
        %580 = vmatmul.mubr.bf16.gmra.mrb[0].mxu0 %v545
        %v581 = vpop.f32.mrb[0].mxu0
        %v582 = vadd.f32 0.0, %v581
        %v583 = vpop.f32.mrb[0].mxu0
        %v584 = vpop.f32.mrb[0].mxu0
        %v585 = vadd.f32 0.0, %v584
        %v586 = vpop.f32.mrb[0].mxu0
        %587 = vdwg.mxu0
        %v588 = vadd.f32 %v408, %v582
        %v589 = vadd.f32 %v409, %v585
        %591 = vrot.lane.b32.xlu0 %v410, 96
        %v592 = vpop.permute.xlu0 %591
        %594 = vrot.lane.b32.xlu0 %v411, 96
        %v595 = vpop.permute.xlu0 %594
        %v597 = vsel %vm413, %v592, 0
        %v600 = vsel %vm413, %v595, 0
        %602 = vmatprep.subr.bf16.mxu0 0
        %603 = vmatpush1.bf16.xpose.msra.mxu0 %v600
        %604 = vmatprep.subr.bf16.mxu0 0
        %605 = vmatpush1.bf16.xpose.msra.mxu0 0
        %606 = vmatprep.subr.bf16.mxu0 0
        %607 = vmatpush1.bf16.xpose.msra.mxu0 0
        %608 = vmatprep.subr.bf16.mxu0 0
        %609 = vmatpush1.bf16.xpose.msra.mxu0 0
        %610 = vmatprep.subr.bf16.mxu0 0
        %611 = vmatpush1.bf16.xpose.msra.mxu0 0
        %612 = vmatprep.subr.bf16.mxu0 0
        %613 = vmatpush1.bf16.xpose.msra.mxu0 0
        %614 = vmatprep.subr.bf16.mxu0 0
        %615 = vmatpush1.bf16.xpose.msra.mxu0 0
        %616 = vmatprep.subr.bf16.mxu0 0
        %617 = vmatpush1.bf16.xpose.msra.mxu0 0
        %618 = vmatprep.subr.bf16.mxu0 0
        %619 = vmatpush1.bf16.xpose.msra.mxu0 0
        %620 = vmatprep.subr.bf16.mxu0 0
        %621 = vmatpush1.bf16.xpose.msra.mxu0 0
        %622 = vmatprep.subr.bf16.mxu0 0
        %623 = vmatpush1.bf16.xpose.msra.mxu0 0
        %624 = vmatprep.subr.bf16.mxu0 0
        %625 = vmatpush1.bf16.xpose.msra.mxu0 0
        %626 = vmatprep.subr.bf16.mxu0 0
        %627 = vmatpush1.bf16.xpose.msra.mxu0 0
        %628 = vmatprep.subr.bf16.mxu0 0
        %629 = vmatpush1.bf16.xpose.msra.mxu0 0
        %630 = vmatprep.subr.bf16.mxu0 0
        %631 = vmatpush1.bf16.xpose.msra.mxu0 0
        %632 = vmatprep.subr.bf16.mxu0 0
        %633 = vmatpush1.bf16.xpose.msra.mxu0 0
        %634 = vmatprep.mubr.bf16.mxu0 0
        %635 = vmatmul.mubr.bf16.gmra.mrb[0].mxu0 %v597
        %v636 = vpop.f32.mrb[0].mxu0
        %v637 = vadd.f32 0.0, %v636
        %v638 = vpop.f32.mrb[0].mxu0
        %v639 = vpop.f32.mrb[0].mxu0
        %v640 = vadd.f32 0.0, %v639
        %v641 = vpop.f32.mrb[0].mxu0
        %642 = vdwg.mxu0
        %v643 = vmul.f32 %v637, 0.17677669
        %v644 = vmul.f32 %v640, 0.17677669
        %v645 = vsel %vm463, %v643, -inf
        %646 = vmax.xlane.f32.xlu0 %v645
        %v647 = vpop.xlane.xlu0 %646
        %v648 = vsel %vm463, %v644, -inf
        %649 = vmax.xlane.f32.xlu0 %v648
        %v650 = vpop.xlane.xlu0 %649
        %v651 = vsub.f32 %v643, %v647
        %v652 = vsub.f32 %v644, %v650
        %v653 = vmul.f32 %v651, 1.442695
        %v654 = vpow.pop %v653
        %v655 = vmul.f32 %v652, 1.442695
        %v656 = vpow.pop %v655
        %v657 = vsel %vm463, %v654, 0.0
        %658 = vadd.xlane.f32.xlu0 %v657
        %v659 = vpop.xlane.xlu0 %658
        %v660 = vsel %vm463, %v656, 0.0
        %661 = vadd.xlane.f32.xlu0 %v660
        %v662 = vpop.xlane.xlu0 %661
        %v663 = vrcp.pop %v659
        %v664 = vrcp.pop %v662
        %v665 = vmul.f32 %v654, %v663
        %v666 = vmul.f32 %v656, %v664
        %v667 = vpack.c.bf16 %v666, %v665
        %669 = vrot.lane.b32.xlu0 %v412, 96
        %v670 = vpop.permute.xlu0 %669
        %v673 = vsel %vm463, %v667, 0
        %675 = vmatprep.subr.bf16.mxu0 0
        %676 = vmatpush1.bf16.msra.mxu0 %v670
        %677 = vmatprep.subr.bf16.mxu0 0
        %678 = vmatpush1.bf16.msra.mxu0 0
        %679 = vmatprep.subr.bf16.mxu0 0
        %680 = vmatpush1.bf16.msra.mxu0 0
        %681 = vmatprep.subr.bf16.mxu0 0
        %682 = vmatpush1.bf16.msra.mxu0 0
        %683 = vmatprep.subr.bf16.mxu0 0
        %684 = vmatpush1.bf16.msra.mxu0 0
        %685 = vmatprep.subr.bf16.mxu0 0
        %686 = vmatpush1.bf16.msra.mxu0 0
        %687 = vmatprep.subr.bf16.mxu0 0
        %688 = vmatpush1.bf16.msra.mxu0 0
        %689 = vmatprep.subr.bf16.mxu0 0
        %690 = vmatpush1.bf16.msra.mxu0 0
        %691 = vmatprep.subr.bf16.mxu0 0
        %692 = vmatpush1.bf16.msra.mxu0 0
        %693 = vmatprep.subr.bf16.mxu0 0
        %694 = vmatpush1.bf16.msra.mxu0 0
        %695 = vmatprep.subr.bf16.mxu0 0
        %696 = vmatpush1.bf16.msra.mxu0 0
        %697 = vmatprep.subr.bf16.mxu0 0
        %698 = vmatpush1.bf16.msra.mxu0 0
        %699 = vmatprep.subr.bf16.mxu0 0
        %700 = vmatpush1.bf16.msra.mxu0 0
        %701 = vmatprep.subr.bf16.mxu0 0
        %702 = vmatpush1.bf16.msra.mxu0 0
        %703 = vmatprep.subr.bf16.mxu0 0
        %704 = vmatpush1.bf16.msra.mxu0 0
        %705 = vmatprep.subr.bf16.mxu0 0
        %706 = vmatpush1.bf16.msra.mxu0 0
        %707 = vmatprep.mubr.bf16.mxu0 0
        %708 = vmatmul.mubr.bf16.gmra.mrb[0].mxu0 %v673
        %v709 = vpop.f32.mrb[0].mxu0
        %v710 = vadd.f32 0.0, %v709
        %v711 = vpop.f32.mrb[0].mxu0
        %v712 = vpop.f32.mrb[0].mxu0
        %v713 = vadd.f32 0.0, %v712
        %v714 = vpop.f32.mrb[0].mxu0
        %715 = vdwg.mxu0
        %v716 = vpack.c.bf16 %v713, %v710
        %v721 = vunpack.c.l.b16 %v387
        %v722 = vunpack.c.l.b16 %v388
        %v723 = vunpack.c.l.b16 %v389
        %v724 = vunpack.c.l.b16 %v390
        %v725 = vpack.c.b16 %v722, %v721
        %v726 = vpack.c.b16 %v724, %v723
        %v730 = vsel %vm413, %v716, 0
        %732 = vmatprep.subr.bf16.mxu0 0
        %733 = vmatpush1.bf16.msra.mxu0 %v725
        %734 = vmatprep.subr.bf16.mxu0 0
        %735 = vmatpush1.bf16.msra.mxu0 %v726
        %736 = vmatprep.subr.bf16.mxu0 0
        %737 = vmatpush1.bf16.msra.mxu0 0
        %738 = vmatprep.subr.bf16.mxu0 0
        %739 = vmatpush1.bf16.msra.mxu0 0
        %740 = vmatprep.subr.bf16.mxu0 0
        %741 = vmatpush1.bf16.msra.mxu0 0
        %742 = vmatprep.subr.bf16.mxu0 0
        %743 = vmatpush1.bf16.msra.mxu0 0
        %744 = vmatprep.subr.bf16.mxu0 0
        %745 = vmatpush1.bf16.msra.mxu0 0
        %746 = vmatprep.subr.bf16.mxu0 0
        %747 = vmatpush1.bf16.msra.mxu0 0
        %748 = vmatprep.subr.bf16.mxu0 0
        %749 = vmatpush1.bf16.msra.mxu0 0
        %750 = vmatprep.subr.bf16.mxu0 0
        %751 = vmatpush1.bf16.msra.mxu0 0
        %752 = vmatprep.subr.bf16.mxu0 0
        %753 = vmatpush1.bf16.msra.mxu0 0
        %754 = vmatprep.subr.bf16.mxu0 0
        %755 = vmatpush1.bf16.msra.mxu0 0
        %756 = vmatprep.subr.bf16.mxu0 0
        %757 = vmatpush1.bf16.msra.mxu0 0
        %758 = vmatprep.subr.bf16.mxu0 0
        %759 = vmatpush1.bf16.msra.mxu0 0
        %760 = vmatprep.subr.bf16.mxu0 0
        %761 = vmatpush1.bf16.msra.mxu0 0
        %762 = vmatprep.subr.bf16.mxu0 0
        %763 = vmatpush1.bf16.msra.mxu0 0
        %764 = vmatprep.mubr.bf16.mxu0 0
        %765 = vmatmul.mubr.bf16.gmra.mrb[0].mxu0 %v730
        %v766 = vpop.f32.mrb[0].mxu0
        %v767 = vadd.f32 0.0, %v766
        %v768 = vpop.f32.mrb[0].mxu0
        %v769 = vpop.f32.mrb[0].mxu0
        %v770 = vadd.f32 0.0, %v769
        %v771 = vpop.f32.mrb[0].mxu0
        %772 = vdwg.mxu0
        %v773 = vadd.f32 %v588, %v767
        %v774 = vadd.f32 %v589, %v770
        %775 = vrot.lane.b32.xlu0 %v410, 64
        %v776 = vpop.permute.xlu0 %775
        %777 = vrot.lane.b32.xlu0 %v411, 64
        %v778 = vpop.permute.xlu0 %777
        %v780 = vsel %vm413, %v776, 0
        %v783 = vsel %vm413, %v778, 0
        %785 = vmatprep.subr.bf16.mxu0 0
        %786 = vmatpush1.bf16.xpose.msra.mxu0 %v783
        %787 = vmatprep.subr.bf16.mxu0 0
        %788 = vmatpush1.bf16.xpose.msra.mxu0 0
        %789 = vmatprep.subr.bf16.mxu0 0
        %790 = vmatpush1.bf16.xpose.msra.mxu0 0
        %791 = vmatprep.subr.bf16.mxu0 0
        %792 = vmatpush1.bf16.xpose.msra.mxu0 0
        %793 = vmatprep.subr.bf16.mxu0 0
        %794 = vmatpush1.bf16.xpose.msra.mxu0 0
        %795 = vmatprep.subr.bf16.mxu0 0
        %796 = vmatpush1.bf16.xpose.msra.mxu0 0
        %797 = vmatprep.subr.bf16.mxu0 0
        %798 = vmatpush1.bf16.xpose.msra.mxu0 0
        %799 = vmatprep.subr.bf16.mxu0 0
        %800 = vmatpush1.bf16.xpose.msra.mxu0 0
        %801 = vmatprep.subr.bf16.mxu0 0
        %802 = vmatpush1.bf16.xpose.msra.mxu0 0
        %803 = vmatprep.subr.bf16.mxu0 0
        %804 = vmatpush1.bf16.xpose.msra.mxu0 0
        %805 = vmatprep.subr.bf16.mxu0 0
        %806 = vmatpush1.bf16.xpose.msra.mxu0 0
        %807 = vmatprep.subr.bf16.mxu0 0
        %808 = vmatpush1.bf16.xpose.msra.mxu0 0
        %809 = vmatprep.subr.bf16.mxu0 0
        %810 = vmatpush1.bf16.xpose.msra.mxu0 0
        %811 = vmatprep.subr.bf16.mxu0 0
        %812 = vmatpush1.bf16.xpose.msra.mxu0 0
        %813 = vmatprep.subr.bf16.mxu0 0
        %814 = vmatpush1.bf16.xpose.msra.mxu0 0
        %815 = vmatprep.subr.bf16.mxu0 0
        %816 = vmatpush1.bf16.xpose.msra.mxu0 0
        %817 = vmatprep.mubr.bf16.mxu0 0
        %818 = vmatmul.mubr.bf16.gmra.mrb[0].mxu0 %v780
        %v819 = vpop.f32.mrb[0].mxu0
        %v820 = vadd.f32 0.0, %v819
        %v821 = vpop.f32.mrb[0].mxu0
        %v822 = vpop.f32.mrb[0].mxu0
        %v823 = vadd.f32 0.0, %v822
        %v824 = vpop.f32.mrb[0].mxu0
        %825 = vdwg.mxu0
        %v826 = vmul.f32 %v820, 0.17677669
        %v827 = vmul.f32 %v823, 0.17677669
        %v828 = vsel %vm463, %v826, -inf
        %829 = vmax.xlane.f32.xlu0 %v828
        %v830 = vpop.xlane.xlu0 %829
        %v831 = vsel %vm463, %v827, -inf
        %832 = vmax.xlane.f32.xlu0 %v831
        %v833 = vpop.xlane.xlu0 %832
        %v834 = vsub.f32 %v826, %v830
        %v835 = vsub.f32 %v827, %v833
        %v836 = vmul.f32 %v834, 1.442695
        %v837 = vpow.pop %v836
        %v838 = vmul.f32 %v835, 1.442695
        %v839 = vpow.pop %v838
        %v840 = vsel %vm463, %v837, 0.0
        %841 = vadd.xlane.f32.xlu0 %v840
        %v842 = vpop.xlane.xlu0 %841
        %v843 = vsel %vm463, %v839, 0.0
        %844 = vadd.xlane.f32.xlu0 %v843
        %v845 = vpop.xlane.xlu0 %844
        %v846 = vrcp.pop %v842
        %v847 = vrcp.pop %v845
        %v848 = vmul.f32 %v837, %v846
        %v849 = vmul.f32 %v839, %v847
        %v850 = vpack.c.bf16 %v849, %v848
        %851 = vrot.lane.b32.xlu0 %v412, 64
        %v852 = vpop.permute.xlu0 %851
        %v855 = vsel %vm463, %v850, 0
        %857 = vmatprep.subr.bf16.mxu0 0
        %858 = vmatpush1.bf16.msra.mxu0 %v852
        %859 = vmatprep.subr.bf16.mxu0 0
        %860 = vmatpush1.bf16.msra.mxu0 0
        %861 = vmatprep.subr.bf16.mxu0 0
        %862 = vmatpush1.bf16.msra.mxu0 0
        %863 = vmatprep.subr.bf16.mxu0 0
        %864 = vmatpush1.bf16.msra.mxu0 0
        %865 = vmatprep.subr.bf16.mxu0 0
        %866 = vmatpush1.bf16.msra.mxu0 0
        %867 = vmatprep.subr.bf16.mxu0 0
        %868 = vmatpush1.bf16.msra.mxu0 0
        %869 = vmatprep.subr.bf16.mxu0 0
        %870 = vmatpush1.bf16.msra.mxu0 0
        %871 = vmatprep.subr.bf16.mxu0 0
        %872 = vmatpush1.bf16.msra.mxu0 0
        %873 = vmatprep.subr.bf16.mxu0 0
        %874 = vmatpush1.bf16.msra.mxu0 0
        %875 = vmatprep.subr.bf16.mxu0 0
        %876 = vmatpush1.bf16.msra.mxu0 0
        %877 = vmatprep.subr.bf16.mxu0 0
        %878 = vmatpush1.bf16.msra.mxu0 0
        %879 = vmatprep.subr.bf16.mxu0 0
        %880 = vmatpush1.bf16.msra.mxu0 0
        %881 = vmatprep.subr.bf16.mxu0 0
        %882 = vmatpush1.bf16.msra.mxu0 0
        %883 = vmatprep.subr.bf16.mxu0 0
        %884 = vmatpush1.bf16.msra.mxu0 0
        %885 = vmatprep.subr.bf16.mxu0 0
        %886 = vmatpush1.bf16.msra.mxu0 0
        %887 = vmatprep.subr.bf16.mxu0 0
        %888 = vmatpush1.bf16.msra.mxu0 0
        %889 = vmatprep.mubr.bf16.mxu0 0
        %890 = vmatmul.mubr.bf16.gmra.mrb[0].mxu0 %v855
        %v891 = vpop.f32.mrb[0].mxu0
        %v892 = vadd.f32 0.0, %v891
        %v893 = vpop.f32.mrb[0].mxu0
        %v894 = vpop.f32.mrb[0].mxu0
        %v895 = vadd.f32 0.0, %v894
        %v896 = vpop.f32.mrb[0].mxu0
        %897 = vdwg.mxu0
        %v898 = vpack.c.bf16 %v895, %v892
        %v903 = vunpack.c.l.b16 %v391
        %v904 = vunpack.c.l.b16 %v392
        %v905 = vunpack.c.l.b16 %v393
        %v906 = vunpack.c.l.b16 %v394
        %v907 = vpack.c.b16 %v904, %v903
        %v908 = vpack.c.b16 %v906, %v905
        %v912 = vsel %vm413, %v898, 0
        %914 = vmatprep.subr.bf16.mxu0 0
        %915 = vmatpush1.bf16.msra.mxu0 %v907
        %916 = vmatprep.subr.bf16.mxu0 0
        %917 = vmatpush1.bf16.msra.mxu0 %v908
        %918 = vmatprep.subr.bf16.mxu0 0
        %919 = vmatpush1.bf16.msra.mxu0 0
        %920 = vmatprep.subr.bf16.mxu0 0
        %921 = vmatpush1.bf16.msra.mxu0 0
        %922 = vmatprep.subr.bf16.mxu0 0
        %923 = vmatpush1.bf16.msra.mxu0 0
        %924 = vmatprep.subr.bf16.mxu0 0
        %925 = vmatpush1.bf16.msra.mxu0 0
        %926 = vmatprep.subr.bf16.mxu0 0
        %927 = vmatpush1.bf16.msra.mxu0 0
        %928 = vmatprep.subr.bf16.mxu0 0
        %929 = vmatpush1.bf16.msra.mxu0 0
        %930 = vmatprep.subr.bf16.mxu0 0
        %931 = vmatpush1.bf16.msra.mxu0 0
        %932 = vmatprep.subr.bf16.mxu0 0
        %933 = vmatpush1.bf16.msra.mxu0 0
        %934 = vmatprep.subr.bf16.mxu0 0
        %935 = vmatpush1.bf16.msra.mxu0 0
        %936 = vmatprep.subr.bf16.mxu0 0
        %937 = vmatpush1.bf16.msra.mxu0 0
        %938 = vmatprep.subr.bf16.mxu0 0
        %939 = vmatpush1.bf16.msra.mxu0 0
        %940 = vmatprep.subr.bf16.mxu0 0
        %941 = vmatpush1.bf16.msra.mxu0 0
        %942 = vmatprep.subr.bf16.mxu0 0
        %943 = vmatpush1.bf16.msra.mxu0 0
        %944 = vmatprep.subr.bf16.mxu0 0
        %945 = vmatpush1.bf16.msra.mxu0 0
        %946 = vmatprep.mubr.bf16.mxu0 0
        %947 = vmatmul.mubr.bf16.gmra.mrb[0].mxu0 %v912
        %v948 = vpop.f32.mrb[0].mxu0
        %v949 = vadd.f32 0.0, %v948
        %v950 = vpop.f32.mrb[0].mxu0
        %v951 = vpop.f32.mrb[0].mxu0
        %v952 = vadd.f32 0.0, %v951
        %v953 = vpop.f32.mrb[0].mxu0
        %954 = vdwg.mxu0
        %v955 = vadd.f32 %v773, %v949
        %v956 = vadd.f32 %v774, %v952
        %957 = vrot.lane.b32.xlu0 %v410, 32
        %v958 = vpop.permute.xlu0 %957
        %959 = vrot.lane.b32.xlu0 %v411, 32
        %v960 = vpop.permute.xlu0 %959
        %v962 = vsel %vm413, %v958, 0
        %v965 = vsel %vm413, %v960, 0
        %967 = vmatprep.subr.bf16.mxu0 0
        %968 = vmatpush1.bf16.xpose.msra.mxu0 %v965
        %969 = vmatprep.subr.bf16.mxu0 0
        %970 = vmatpush1.bf16.xpose.msra.mxu0 0
        %971 = vmatprep.subr.bf16.mxu0 0
        %972 = vmatpush1.bf16.xpose.msra.mxu0 0
        %973 = vmatprep.subr.bf16.mxu0 0
        %974 = vmatpush1.bf16.xpose.msra.mxu0 0
        %975 = vmatprep.subr.bf16.mxu0 0
        %976 = vmatpush1.bf16.xpose.msra.mxu0 0
        %977 = vmatprep.subr.bf16.mxu0 0
        %978 = vmatpush1.bf16.xpose.msra.mxu0 0
        %979 = vmatprep.subr.bf16.mxu0 0
        %980 = vmatpush1.bf16.xpose.msra.mxu0 0
        %981 = vmatprep.subr.bf16.mxu0 0
        %982 = vmatpush1.bf16.xpose.msra.mxu0 0
        %983 = vmatprep.subr.bf16.mxu0 0
        %984 = vmatpush1.bf16.xpose.msra.mxu0 0
        %985 = vmatprep.subr.bf16.mxu0 0
        %986 = vmatpush1.bf16.xpose.msra.mxu0 0
        %987 = vmatprep.subr.bf16.mxu0 0
        %988 = vmatpush1.bf16.xpose.msra.mxu0 0
        %989 = vmatprep.subr.bf16.mxu0 0
        %990 = vmatpush1.bf16.xpose.msra.mxu0 0
        %991 = vmatprep.subr.bf16.mxu0 0
        %992 = vmatpush1.bf16.xpose.msra.mxu0 0
        %993 = vmatprep.subr.bf16.mxu0 0
        %994 = vmatpush1.bf16.xpose.msra.mxu0 0
        %995 = vmatprep.subr.bf16.mxu0 0
        %996 = vmatpush1.bf16.xpose.msra.mxu0 0
        %997 = vmatprep.subr.bf16.mxu0 0
        %998 = vmatpush1.bf16.xpose.msra.mxu0 0
        %999 = vmatprep.mubr.bf16.mxu0 0
        %1000 = vmatmul.mubr.bf16.gmra.mrb[0].mxu0 %v962
        %v1001 = vpop.f32.mrb[0].mxu0
        %v1002 = vadd.f32 0.0, %v1001
        %v1003 = vpop.f32.mrb[0].mxu0
        %v1004 = vpop.f32.mrb[0].mxu0
        %v1005 = vadd.f32 0.0, %v1004
        %v1006 = vpop.f32.mrb[0].mxu0
        %1007 = vdwg.mxu0
        %v1008 = vmul.f32 %v1002, 0.17677669
        %v1009 = vmul.f32 %v1005, 0.17677669
        %v1010 = vsel %vm463, %v1008, -inf
        %1011 = vmax.xlane.f32.xlu0 %v1010
        %v1012 = vpop.xlane.xlu0 %1011
        %v1013 = vsel %vm463, %v1009, -inf
        %1014 = vmax.xlane.f32.xlu0 %v1013
        %v1015 = vpop.xlane.xlu0 %1014
        %v1016 = vsub.f32 %v1008, %v1012
        %v1017 = vsub.f32 %v1009, %v1015
        %v1018 = vmul.f32 %v1016, 1.442695
        %v1019 = vpow.pop %v1018
        %v1020 = vmul.f32 %v1017, 1.442695
        %v1021 = vpow.pop %v1020
        %v1022 = vsel %vm463, %v1019, 0.0
        %1023 = vadd.xlane.f32.xlu0 %v1022
        %v1024 = vpop.xlane.xlu0 %1023
        %v1025 = vsel %vm463, %v1021, 0.0
        %1026 = vadd.xlane.f32.xlu0 %v1025
        %v1027 = vpop.xlane.xlu0 %1026
        %v1028 = vrcp.pop %v1024
        %v1029 = vrcp.pop %v1027
        %v1030 = vmul.f32 %v1019, %v1028
        %v1031 = vmul.f32 %v1021, %v1029
        %v1032 = vpack.c.bf16 %v1031, %v1030
        %1033 = vrot.lane.b32.xlu0 %v412, 32
        %v1034 = vpop.permute.xlu0 %1033
        %v1037 = vsel %vm463, %v1032, 0
        %1039 = vmatprep.subr.bf16.mxu0 0
        %1040 = vmatpush1.bf16.msra.mxu0 %v1034
        %1041 = vmatprep.subr.bf16.mxu0 0
        %1042 = vmatpush1.bf16.msra.mxu0 0
        %1043 = vmatprep.subr.bf16.mxu0 0
        %1044 = vmatpush1.bf16.msra.mxu0 0
        %1045 = vmatprep.subr.bf16.mxu0 0
        %1046 = vmatpush1.bf16.msra.mxu0 0
        %1047 = vmatprep.subr.bf16.mxu0 0
        %1048 = vmatpush1.bf16.msra.mxu0 0
        %1049 = vmatprep.subr.bf16.mxu0 0
        %1050 = vmatpush1.bf16.msra.mxu0 0
        %1051 = vmatprep.subr.bf16.mxu0 0
        %1052 = vmatpush1.bf16.msra.mxu0 0
        %1053 = vmatprep.subr.bf16.mxu0 0
        %1054 = vmatpush1.bf16.msra.mxu0 0
        %1055 = vmatprep.subr.bf16.mxu0 0
        %1056 = vmatpush1.bf16.msra.mxu0 0
        %1057 = vmatprep.subr.bf16.mxu0 0
        %1058 = vmatpush1.bf16.msra.mxu0 0
        %1059 = vmatprep.subr.bf16.mxu0 0
        %1060 = vmatpush1.bf16.msra.mxu0 0
        %1061 = vmatprep.subr.bf16.mxu0 0
        %1062 = vmatpush1.bf16.msra.mxu0 0
        %1063 = vmatprep.subr.bf16.mxu0 0
        %1064 = vmatpush1.bf16.msra.mxu0 0
        %1065 = vmatprep.subr.bf16.mxu0 0
        %1066 = vmatpush1.bf16.msra.mxu0 0
        %1067 = vmatprep.subr.bf16.mxu0 0
        %1068 = vmatpush1.bf16.msra.mxu0 0
        %1069 = vmatprep.subr.bf16.mxu0 0
        %1070 = vmatpush1.bf16.msra.mxu0 0
        %1071 = vmatprep.mubr.bf16.mxu0 0
        %1072 = vmatmul.mubr.bf16.gmra.mrb[0].mxu0 %v1037
        %v1073 = vpop.f32.mrb[0].mxu0
        %v1074 = vadd.f32 0.0, %v1073
        %v1075 = vpop.f32.mrb[0].mxu0
        %v1076 = vpop.f32.mrb[0].mxu0
        %v1077 = vadd.f32 0.0, %v1076
        %v1078 = vpop.f32.mrb[0].mxu0
        %1079 = vdwg.mxu0
        %v1080 = vpack.c.bf16 %v1077, %v1074
        %v1085 = vunpack.c.l.b16 %v395
        %v1086 = vunpack.c.l.b16 %v396
        %v1087 = vunpack.c.l.b16 %v397
        %v1088 = vunpack.c.l.b16 %v398
        %v1089 = vpack.c.b16 %v1086, %v1085
        %v1090 = vpack.c.b16 %v1088, %v1087
        %v1094 = vsel %vm413, %v1080, 0
        %1096 = vmatprep.subr.bf16.mxu0 0
        %1097 = vmatpush1.bf16.msra.mxu0 %v1089
        %1098 = vmatprep.subr.bf16.mxu0 0
        %1099 = vmatpush1.bf16.msra.mxu0 %v1090
        %1100 = vmatprep.subr.bf16.mxu0 0
        %1101 = vmatpush1.bf16.msra.mxu0 0
        %1102 = vmatprep.subr.bf16.mxu0 0
        %1103 = vmatpush1.bf16.msra.mxu0 0
        %1104 = vmatprep.subr.bf16.mxu0 0
        %1105 = vmatpush1.bf16.msra.mxu0 0
        %1106 = vmatprep.subr.bf16.mxu0 0
        %1107 = vmatpush1.bf16.msra.mxu0 0
        %1108 = vmatprep.subr.bf16.mxu0 0
        %1109 = vmatpush1.bf16.msra.mxu0 0
        %1110 = vmatprep.subr.bf16.mxu0 0
        %1111 = vmatpush1.bf16.msra.mxu0 0
        %1112 = vmatprep.subr.bf16.mxu0 0
        %1113 = vmatpush1.bf16.msra.mxu0 0
        %1114 = vmatprep.subr.bf16.mxu0 0
        %1115 = vmatpush1.bf16.msra.mxu0 0
        %1116 = vmatprep.subr.bf16.mxu0 0
        %1117 = vmatpush1.bf16.msra.mxu0 0
        %1118 = vmatprep.subr.bf16.mxu0 0
        %1119 = vmatpush1.bf16.msra.mxu0 0
        %1120 = vmatprep.subr.bf16.mxu0 0
        %1121 = vmatpush1.bf16.msra.mxu0 0
        %1122 = vmatprep.subr.bf16.mxu0 0
        %1123 = vmatpush1.bf16.msra.mxu0 0
        %1124 = vmatprep.subr.bf16.mxu0 0
        %1125 = vmatpush1.bf16.msra.mxu0 0
        %1126 = vmatprep.subr.bf16.mxu0 0
        %1127 = vmatpush1.bf16.msra.mxu0 0
        %1128 = vmatprep.mubr.bf16.mxu0 0
        %1129 = vmatmul.mubr.bf16.gmra.mrb[0].mxu0 %v1094
        %v1130 = vpop.f32.mrb[0].mxu0
        %v1131 = vadd.f32 0.0, %v1130
        %v1132 = vpop.f32.mrb[0].mxu0
        %v1133 = vpop.f32.mrb[0].mxu0
        %v1134 = vadd.f32 0.0, %v1133
        %v1135 = vpop.f32.mrb[0].mxu0
        %1136 = vdwg.mxu0
        %v1137 = vadd.f32 %v955, %v1131
        %v1138 = vadd.f32 %v956, %v1134
        %1139 = vst [vmem:[%s374] sm:$0xff] %v1137
        %1140 = vst [vmem:[%s374 + $0x8] sm:$0xff] %v1138
        %s1141 = smul.u32 2, %s21
        %p1142 = scmp.lt.s32.totalorder %s20, 1
        %s1143 = scalar_select %p1142, %s20, 1
        %p1144 = scmp.lt.s32.totalorder %s1141, 1
        %s1145 = scalar_select %p1144, %s1141, 1
        %s1146 = smul.addr %s1143, 2
        %s1147 = sadd.s32 %s1145, %s1146
        %s1148 = smul.addr %s1147, 8
        %s1149 = scalar_lea.vmem %s5, %s1148
        // Predicated region
        $region102: #{decoder_forward.7} parent=92 // pred_check
          %p1150 = pneg %p172
        $region103: #{decoder_forward.7} parent=92 // pred_check_branch
          %1152 = sbr.rel (%p1150) target = $region105
        $region104: #{decoder_forward.7} parent=92 // pred_region
          %s1153 = smul.u32 2, %s21
        $region105: #{decoder_forward.7} parent=92 // pred_fallthru
          _
      $region93: #{decoder_forward.7} parent=5 // pred_fallthru
        _
      %p1154 = scmp.le.s32.totalorder 2, %s11
      // Predicated region
      $region106: #{decoder_forward.7} parent=5 // pred_check
        %p1155 = pneg %p1154
      $region107: #{decoder_forward.7} parent=5 // pred_check_branch
        %1157 = sbr.rel (%p1155) target = $region109
      $region108: #{decoder_forward.7} parent=5 // pred_region
        %s1158 = ssub.s32 %s11, 2
        // Predicated region
        $region110: #{decoder_forward.7} parent=108 // pred_check
          %p1159 = pneg %p178
        $region111: #{decoder_forward.7} parent=108 // pred_check_branch
          %1161 = sbr.rel (%p1159) target = $region113
        $region112: #{decoder_forward.7} parent=108 // pred_region
          %s1162 = smul.u32 2, %s23
          %p1163 = scmp.lt.s32.totalorder %s22, 1
          %s1164 = scalar_select %p1163, %s22, 1
          %p1165 = scmp.lt.s32.totalorder %s1162, 1
          %s1166 = scalar_select %p1165, %s1162, 1
          %s1167 = smul.addr %s1164, 2
          %s1168 = sadd.s32 %s1166, %s1167
          %s1169 = smul.addr %s1168, 8
          %s1170 = scalar_lea.vmem %s5, %s1169
        $region113: #{decoder_forward.7} parent=108 // pred_fallthru
          _
      $region109: #{decoder_forward.7} parent=5 // pred_fallthru
        _
    $region6: #{decoder_forward.7} parent=1 // loop_footer
      %s15 = sadd.s32 1, %s11
    $region7: #{decoder_forward.7} parent=1 // loop_footer_branch
      %10 = sbr.rel target = $region3
    $region8: #{decoder_forward.7} parent=1 // loop_exit
      _

// kernel: decoder_forward.11
$region0: #{decoder_forward.11}
  #allocation0 [shape = 'u32[]', space=smem, size = 0x4, offset = 0x4, fixed_abs, tag = 'smem constant byte address 0x4 - core index']
  #allocation1 [shape = 'u32[144,128]{1,0:T(1,128)}', space=vmem, size = 0x12000, scoped, tag = 'internal scratch']
  #allocation2 [shape = 'bf16[32,128]{1,0:T(16,128)(2,1)}', space=vmem, size = 0x2000, scoped, tag = 'scratch operand']
  #allocation3 [shape = 'f32[32,128]{1,0:T(8,128)}', space=vmem, size = 0x4000, scoped, tag = 'scratch operand']
  %s0 = inlined_call_operand.vmem [shape: f32[32,128], index: 0, kind: input, shape index: {}]
  %s1 = inlined_call_operand.vmem [shape: f32[1,128], index: 1, kind: input, shape index: {}]
  %s2 = inlined_call_operand.vmem [shape: f32[1,128], index: 2, kind: input, shape index: {}]
  %s3 = inlined_call_operand.vmem [shape: bf16[128,256], index: 3, kind: input, shape index: {}]
  %s4 = inlined_call_operand.vmem [shape: f32[1,256], index: 4, kind: input, shape index: {}]
  %s5 = inlined_call_operand.vmem [shape: bf16[256,128], index: 5, kind: input, shape index: {}]
  %s6 = inlined_call_operand.vmem [shape: f32[1,128], index: 6, kind: input, shape index: {}]
  %s7 = inlined_call_operand.hbm [shape: f32[32,128], index: 7, kind: output, shape index: {}]
  %s8 = sld [smem:[#allocation0]]
  $region46: #{decoder_forward.11} parent=0
    _
  %s10 = ssub.s32 1, %s8
  %s11 = scalar_select 0, %s10, %s8
  $region1: #{decoder_forward.11} parent=0
    #allocation4 [shape = 'u8[16384]{0}', space=vmem, size = 0x4000, scoped, tag = 'output window, operand 0, single buffered']
    #allocation5 [shape = 's32[1]{0}', space=sflag, size = 0x4, scoped, tag = 'scoped memory for decoder_forward.11']
    %12 = vsyncpa [#allocation5], 0
    // Predicated region
    $region2: #{decoder_forward.11} parent=1 // pred_check
      _
    $region3: #{decoder_forward.11} parent=1 // pred_check_branch
      %14 = sbr.rel (0) target = $region5
    $region4: #{decoder_forward.11} parent=1 // pred_region
      _
    $region5: #{decoder_forward.11} parent=1 // pred_fallthru
      _
    // Predicated region
    $region6: #{decoder_forward.11} parent=1 // pred_check
      _
    $region7: #{decoder_forward.11} parent=1 // pred_check_branch
      %16 = sbr.rel (0) target = $region9
    $region8: #{decoder_forward.11} parent=1 // pred_region
      _
    $region9: #{decoder_forward.11} parent=1 // pred_fallthru
      _
    // Predicated region
    $region10: #{decoder_forward.11} parent=1 // pred_check
      _
    $region11: #{decoder_forward.11} parent=1 // pred_check_branch
      %18 = sbr.rel (0) target = $region13
    $region12: #{decoder_forward.11} parent=1 // pred_region
      _
    $region13: #{decoder_forward.11} parent=1 // pred_fallthru
      _
    // Predicated region
    $region14: #{decoder_forward.11} parent=1 // pred_check
      _
    $region15: #{decoder_forward.11} parent=1 // pred_check_branch
      %20 = sbr.rel (0) target = $region17
    $region16: #{decoder_forward.11} parent=1 // pred_region
      _
    $region17: #{decoder_forward.11} parent=1 // pred_fallthru
      _
    // Predicated region
    $region18: #{decoder_forward.11} parent=1 // pred_check
      _
    $region19: #{decoder_forward.11} parent=1 // pred_check_branch
      %22 = sbr.rel (0) target = $region21
    $region20: #{decoder_forward.11} parent=1 // pred_region
      _
    $region21: #{decoder_forward.11} parent=1 // pred_fallthru
      _
    // Predicated region
    $region22: #{decoder_forward.11} parent=1 // pred_check
      _
    $region23: #{decoder_forward.11} parent=1 // pred_check_branch
      %24 = sbr.rel (0) target = $region25
    $region24: #{decoder_forward.11} parent=1 // pred_region
      _
    $region25: #{decoder_forward.11} parent=1 // pred_fallthru
      _
    // Predicated region
    $region26: #{decoder_forward.11} parent=1 // pred_check
      _
    $region27: #{decoder_forward.11} parent=1 // pred_check_branch
      %26 = sbr.rel (0) target = $region29
    $region28: #{decoder_forward.11} parent=1 // pred_region
      _
    $region29: #{decoder_forward.11} parent=1 // pred_fallthru
      _
    %p28 = scmp.eq.s32.totalorder 0, 0
    // Predicated region
    $region30: #{decoder_forward.11} parent=1 // pred_check
      %p29 = pneg %p28
    $region31: #{decoder_forward.11} parent=1 // pred_check_branch
      %31 = sbr.rel (%p29) target = $region33
    $region32: #{decoder_forward.11} parent=1 // pred_region
      %v32 = vld [vmem:[%s0] sm:$0xff]
      %v33 = vld [vmem:[%s0 + $0x8] sm:$0xff]
      %v34 = vld [vmem:[%s0 + $0x10] sm:$0xff]
      %v35 = vld [vmem:[%s0 + $0x18] sm:$0xff]
      %36 = vadd.xlane.f32.xlu0 %v32
      %v37 = vpop.xlane.xlu0 %36
      %38 = vadd.xlane.f32.xlu0 %v33
      %v39 = vpop.xlane.xlu0 %38
      %40 = vadd.xlane.f32.xlu0 %v34
      %v41 = vpop.xlane.xlu0 %40
      %42 = vadd.xlane.f32.xlu0 %v35
      %v43 = vpop.xlane.xlu0 %42
      %v44 = vrcp.pop 128.0
      %v45 = vmul.f32 %v37, %v44
      %v46 = vmul.f32 %v39, %v44
      %v47 = vmul.f32 %v41, %v44
      %v48 = vmul.f32 %v43, %v44
      %v49 = vsub.f32 %v32, %v45
      %v50 = vsub.f32 %v33, %v46
      %v51 = vsub.f32 %v34, %v47
      %v52 = vsub.f32 %v35, %v48
      %v53 = vmul.f32 %v49, %v49
      %v54 = vmul.f32 %v50, %v50
      %v55 = vmul.f32 %v51, %v51
      %v56 = vmul.f32 %v52, %v52
      %57 = vadd.xlane.f32.xlu0 %v53
      %v58 = vpop.xlane.xlu0 %57
      %59 = vadd.xlane.f32.xlu0 %v54
      %v60 = vpop.xlane.xlu0 %59
      %61 = vadd.xlane.f32.xlu0 %v55
      %v62 = vpop.xlane.xlu0 %61
      %63 = vadd.xlane.f32.xlu0 %v56
      %v64 = vpop.xlane.xlu0 %63
      %v65 = vmul.f32 %v58, 0.007874016
      %v66 = vmul.f32 %v60, 0.007874016
      %v67 = vmul.f32 %v62, 0.007874016
      %v68 = vmul.f32 %v64, 0.007874016
      %v69 = vrsqrt.pop %v65
      %v70 = vmul.f32 %v65, %v69
      %vm71 = vcmp.eq.f32.partialorder %v65, inf
      %v72 = vsel %vm71, %v65, %v70
      %vm73 = vcmp.eq.f32.partialorder %v65, 0.0
      %v74 = vand.u32 %v65, 2147483648
      %v75 = vsel %vm73, %v74, %v72
      %v76 = vrsqrt.pop %v66
      %v77 = vmul.f32 %v66, %v76
      %vm78 = vcmp.eq.f32.partialorder %v66, inf
      %v79 = vsel %vm78, %v66, %v77
      %vm80 = vcmp.eq.f32.partialorder %v66, 0.0
      %v81 = vand.u32 %v66, 2147483648
      %v82 = vsel %vm80, %v81, %v79
      %v83 = vrsqrt.pop %v67
      %v84 = vmul.f32 %v67, %v83
      %vm85 = vcmp.eq.f32.partialorder %v67, inf
      %v86 = vsel %vm85, %v67, %v84
      %vm87 = vcmp.eq.f32.partialorder %v67, 0.0
      %v88 = vand.u32 %v67, 2147483648
      %v89 = vsel %vm87, %v88, %v86
      %v90 = vrsqrt.pop %v68
      %v91 = vmul.f32 %v68, %v90
      %vm92 = vcmp.eq.f32.partialorder %v68, inf
      %v93 = vsel %vm92, %v68, %v91
      %vm94 = vcmp.eq.f32.partialorder %v68, 0.0
      %v95 = vand.u32 %v68, 2147483648
      %v96 = vsel %vm94, %v95, %v93
      %v97 = vadd.f32 %v75, 1e-06
      %v98 = vadd.f32 %v82, 1e-06
      %v99 = vadd.f32 %v89, 1e-06
      %v100 = vadd.f32 %v96, 1e-06
      %v101 = vrcp.pop %v97
      %v102 = vmul.f32 1.0, %v101
      %v103 = vrcp.pop %v98
      %v104 = vmul.f32 1.0, %v103
      %v105 = vrcp.pop %v99
      %v106 = vmul.f32 1.0, %v105
      %v107 = vrcp.pop %v100
      %v108 = vmul.f32 1.0, %v107
      %v109 = vld [vmem:[%s1] sm:$0x1]
      %v111 = vlaneseq
      %v112 = vshrl.u32 %v111, 7
      %v113 = vsub.s32 0, %v112
      %v114 = vrot.slane %v109, %v113
      %v116 = vmul.f32 %v114, %v49
      %v117 = vmul.f32 %v114, %v50
      %v118 = vmul.f32 %v114, %v51
      %v119 = vmul.f32 %v114, %v52
      %v120 = vmul.f32 %v116, %v102
      %v121 = vmul.f32 %v117, %v104
      %v122 = vmul.f32 %v118, %v106
      %v123 = vmul.f32 %v119, %v108
      %v124 = vld [vmem:[%s2] sm:$0x1]
      %v126 = vlaneseq
      %v127 = vshrl.u32 %v126, 7
      %v128 = vsub.s32 0, %v127
      %v129 = vrot.slane %v124, %v128
      %v131 = vadd.f32 %v120, %v129
      %v132 = vadd.f32 %v121, %v129
      %v133 = vadd.f32 %v122, %v129
      %v134 = vadd.f32 %v123, %v129
      %v135 = vpack.c.bf16 %v132, %v131
      %v136 = vpack.c.bf16 %v134, %v133
      %137 = vst [vmem:[#allocation2] sm:$0xff] %v135
      %138 = vst [vmem:[#allocation2 + $0x8] sm:$0xff] %v136
      %139 = vst [vmem:[#allocation3] sm:$0xff] 0.0
      %140 = vst [vmem:[#allocation3 + $0x8] sm:$0xff] 0.0
      %141 = vst [vmem:[#allocation3 + $0x10] sm:$0xff] 0.0
      %142 = vst [vmem:[#allocation3 + $0x18] sm:$0xff] 0.0
    $region33: #{decoder_forward.11} parent=1 // pred_fallthru
      _
    %v143 = vld [vmem:[#allocation2] sm:$0xff]
    %v144 = vld [vmem:[#allocation2 + $0x8] sm:$0xff]
    %v145 = vld [vmem:[%s3] sm:$0xff]
    %v146 = vld [vmem:[%s3 + $0x8] sm:$0xff]
    %v147 = vld [vmem:[%s3 + $0x10] sm:$0xff]
    %v148 = vld [vmem:[%s3 + $0x18] sm:$0xff]
    %v149 = vld [vmem:[%s3 + $0x20] sm:$0xff]
    %v150 = vld [vmem:[%s3 + $0x28] sm:$0xff]
    %v151 = vld [vmem:[%s3 + $0x30] sm:$0xff]
    %v152 = vld [vmem:[%s3 + $0x38] sm:$0xff]
    %v153 = vld [vmem:[%s3 + $0x40] sm:$0xff]
    %v154 = vld [vmem:[%s3 + $0x48] sm:$0xff]
    %v155 = vld [vmem:[%s3 + $0x50] sm:$0xff]
    %v156 = vld [vmem:[%s3 + $0x58] sm:$0xff]
    %v157 = vld [vmem:[%s3 + $0x60] sm:$0xff]
    %v158 = vld [vmem:[%s3 + $0x68] sm:$0xff]
    %v159 = vld [vmem:[%s3 + $0x70] sm:$0xff]
    %v160 = vld [vmem:[%s3 + $0x78] sm:$0xff]
    %v161 = vld [vmem:[%s4] sm:$0x3]
    %v163 = vlaneseq
    %v164 = vshrl.u32 %v163, 7
    %v165 = vsub.s32 0, %v164
    %v166 = vrot.slane %v161, %v165
    %v167 = vlaneseq
    %v168 = vshrl.u32 %v167, 7
    %v169 = vsub.s32 1, %v168
    %v170 = vrot.slane %v161, %v169
    %v189 = vunpack.c.l.b16 %v145
    %v190 = vunpack.c.h.b16 %v145
    %v191 = vunpack.c.l.b16 %v146
    %v192 = vunpack.c.h.b16 %v146
    %v193 = vunpack.c.l.b16 %v147
    %v194 = vunpack.c.h.b16 %v147
    %v195 = vunpack.c.l.b16 %v148
    %v196 = vunpack.c.h.b16 %v148
    %v197 = vunpack.c.l.b16 %v149
    %v198 = vunpack.c.h.b16 %v149
    %v199 = vunpack.c.l.b16 %v150
    %v200 = vunpack.c.h.b16 %v150
    %v201 = vunpack.c.l.b16 %v151
    %v202 = vunpack.c.h.b16 %v151
    %v203 = vunpack.c.l.b16 %v152
    %v204 = vunpack.c.h.b16 %v152
    %v205 = vunpack.c.l.b16 %v153
    %v206 = vunpack.c.h.b16 %v153
    %v207 = vunpack.c.l.b16 %v154
    %v208 = vunpack.c.h.b16 %v154
    %v209 = vunpack.c.l.b16 %v155
    %v210 = vunpack.c.h.b16 %v155
    %v211 = vunpack.c.l.b16 %v156
    %v212 = vunpack.c.h.b16 %v156
    %v213 = vunpack.c.l.b16 %v157
    %v214 = vunpack.c.h.b16 %v157
    %v215 = vunpack.c.l.b16 %v158
    %v216 = vunpack.c.h.b16 %v158
    %v217 = vunpack.c.l.b16 %v159
    %v218 = vunpack.c.h.b16 %v159
    %v219 = vunpack.c.l.b16 %v160
    %v220 = vunpack.c.h.b16 %v160
    %v221 = vpack.c.b16 %v191, %v189
    %v222 = vpack.c.b16 %v192, %v190
    %v223 = vpack.c.b16 %v195, %v193
    %v224 = vpack.c.b16 %v196, %v194
    %v225 = vpack.c.b16 %v199, %v197
    %v226 = vpack.c.b16 %v200, %v198
    %v227 = vpack.c.b16 %v203, %v201
    %v228 = vpack.c.b16 %v204, %v202
    %v229 = vpack.c.b16 %v207, %v205
    %v230 = vpack.c.b16 %v208, %v206
    %v231 = vpack.c.b16 %v211, %v209
    %v232 = vpack.c.b16 %v212, %v210
    %v233 = vpack.c.b16 %v215, %v213
    %v234 = vpack.c.b16 %v216, %v214
    %v235 = vpack.c.b16 %v219, %v217
    %v236 = vpack.c.b16 %v220, %v218
    %253 = vmatprep.subr.bf16.mxu0 %v222
    %254 = vmatpush1.bf16.msra.mxu0 %v221
    %255 = vmatprep.subr.bf16.mxu0 %v224
    %256 = vmatpush1.bf16.msra.mxu0 %v223
    %257 = vmatprep.subr.bf16.mxu0 %v226
    %258 = vmatpush1.bf16.msra.mxu0 %v225
    %259 = vmatprep.subr.bf16.mxu0 %v228
    %260 = vmatpush1.bf16.msra.mxu0 %v227
    %261 = vmatprep.subr.bf16.mxu0 %v230
    %262 = vmatpush1.bf16.msra.mxu0 %v229
    %263 = vmatprep.subr.bf16.mxu0 %v232
    %264 = vmatpush1.bf16.msra.mxu0 %v231
    %265 = vmatprep.subr.bf16.mxu0 %v234
    %266 = vmatpush1.bf16.msra.mxu0 %v233
    %267 = vmatprep.subr.bf16.mxu0 %v236
    %268 = vmatpush1.bf16.msra.mxu0 %v235
    %269 = vmatprep.subr.bf16.mxu0 0
    %270 = vmatpush1.bf16.msra.mxu0 0
    %271 = vmatprep.subr.bf16.mxu0 0
    %272 = vmatpush1.bf16.msra.mxu0 0
    %273 = vmatprep.subr.bf16.mxu0 0
    %274 = vmatpush1.bf16.msra.mxu0 0
    %275 = vmatprep.subr.bf16.mxu0 0
    %276 = vmatpush1.bf16.msra.mxu0 0
    %277 = vmatprep.subr.bf16.mxu0 0
    %278 = vmatpush1.bf16.msra.mxu0 0
    %279 = vmatprep.subr.bf16.mxu0 0
    %280 = vmatpush1.bf16.msra.mxu0 0
    %281 = vmatprep.subr.bf16.mxu0 0
    %282 = vmatpush1.bf16.msra.mxu0 0
    %283 = vmatprep.subr.bf16.mxu0 0
    %284 = vmatpush1.bf16.msra.mxu0 0
    %285 = vmatprep.mubr.bf16.mxu0 0
    %286 = vmatmul.mubr.bf16.gmra.mrb[0].mxu0 %v143
    %v287 = vpop.f32.mrb[0].mxu0
    %v288 = vadd.f32 %v166, %v287
    %v289 = vpop.f32.mrb[0].mxu0
    %v290 = vadd.f32 %v170, %v289
    %v291 = vpop.f32.mrb[0].mxu0
    %v292 = vadd.f32 %v166, %v291
    %v293 = vpop.f32.mrb[0].mxu0
    %v294 = vadd.f32 %v170, %v293
    %295 = vmatprep.mubr.bf16.mxu0 0
    %296 = vmatmul.mubr.bf16.gmra.mrb[0].mxu0 %v144
    %v297 = vpop.f32.mrb[0].mxu0
    %v298 = vadd.f32 %v166, %v297
    %v299 = vpop.f32.mrb[0].mxu0
    %v300 = vadd.f32 %v170, %v299
    %v301 = vpop.f32.mrb[0].mxu0
    %v302 = vadd.f32 %v166, %v301
    %v303 = vpop.f32.mrb[0].mxu0
    %v304 = vadd.f32 %v170, %v303
    %305 = vdwg.mxu0
    %v306 = vmax.f32 %v288, 0.0
    %v307 = vmax.f32 %v290, 0.0
    %v308 = vmax.f32 %v292, 0.0
    %v309 = vmax.f32 %v294, 0.0
    %v310 = vmax.f32 %v298, 0.0
    %v311 = vmax.f32 %v300, 0.0
    %v312 = vmax.f32 %v302, 0.0
    %v313 = vmax.f32 %v304, 0.0
    %v314 = vld [vmem:[#allocation3] sm:$0xff]
    %v315 = vld [vmem:[#allocation3 + $0x8] sm:$0xff]
    %v316 = vld [vmem:[#allocation3 + $0x10] sm:$0xff]
    %v317 = vld [vmem:[#allocation3 + $0x18] sm:$0xff]
    %v318 = vpack.c.bf16 %v308, %v306
    %v319 = vpack.c.bf16 %v309, %v307
    %v320 = vpack.c.bf16 %v312, %v310
    %v321 = vpack.c.bf16 %v313, %v311
    %v322 = vld [vmem:[%s5] sm:$0xf]
    %v323 = vld [vmem:[%s5 + $0x4] sm:$0xf]
    %v324 = vld [vmem:[%s5 + $0x8] sm:$0xf]
    %v325 = vld [vmem:[%s5 + $0xc] sm:$0xf]
    %v326 = vld [vmem:[%s5 + $0x10] sm:$0xf]
    %v327 = vld [vmem:[%s5 + $0x14] sm:$0xf]
    %v328 = vld [vmem:[%s5 + $0x18] sm:$0xf]
    %v329 = vld [vmem:[%s5 + $0x1c] sm:$0xf]
    %v330 = vld [vmem:[%s5 + $0x20] sm:$0xf]
    %v331 = vld [vmem:[%s5 + $0x24] sm:$0xf]
    %v332 = vld [vmem:[%s5 + $0x28] sm:$0xf]
    %v333 = vld [vmem:[%s5 + $0x2c] sm:$0xf]
    %v334 = vld [vmem:[%s5 + $0x30] sm:$0xf]
    %v335 = vld [vmem:[%s5 + $0x34] sm:$0xf]
    %v336 = vld [vmem:[%s5 + $0x38] sm:$0xf]
    %v337 = vld [vmem:[%s5 + $0x3c] sm:$0xf]
    %v338 = vld [vmem:[%s5 + $0x40] sm:$0xf]
    %v339 = vld [vmem:[%s5 + $0x44] sm:$0xf]
    %v340 = vld [vmem:[%s5 + $0x48] sm:$0xf]
    %v341 = vld [vmem:[%s5 + $0x4c] sm:$0xf]
    %v342 = vld [vmem:[%s5 + $0x50] sm:$0xf]
    %v343 = vld [vmem:[%s5 + $0x54] sm:$0xf]
    %v344 = vld [vmem:[%s5 + $0x58] sm:$0xf]
    %v345 = vld [vmem:[%s5 + $0x5c] sm:$0xf]
    %v346 = vld [vmem:[%s5 + $0x60] sm:$0xf]
    %v347 = vld [vmem:[%s5 + $0x64] sm:$0xf]
    %v348 = vld [vmem:[%s5 + $0x68] sm:$0xf]
    %v349 = vld [vmem:[%s5 + $0x6c] sm:$0xf]
    %v350 = vld [vmem:[%s5 + $0x70] sm:$0xf]
    %v351 = vld [vmem:[%s5 + $0x74] sm:$0xf]
    %v352 = vld [vmem:[%s5 + $0x78] sm:$0xf]
    %v353 = vld [vmem:[%s5 + $0x7c] sm:$0xf]
    %v386 = vunpack.c.l.b16 %v322
    %v387 = vunpack.c.l.b16 %v323
    %v388 = vunpack.c.l.b16 %v324
    %v389 = vunpack.c.l.b16 %v325
    %v390 = vunpack.c.l.b16 %v326
    %v391 = vunpack.c.l.b16 %v327
    %v392 = vunpack.c.l.b16 %v328
    %v393 = vunpack.c.l.b16 %v329
    %v394 = vunpack.c.l.b16 %v330
    %v395 = vunpack.c.l.b16 %v331
    %v396 = vunpack.c.l.b16 %v332
    %v397 = vunpack.c.l.b16 %v333
    %v398 = vunpack.c.l.b16 %v334
    %v399 = vunpack.c.l.b16 %v335
    %v400 = vunpack.c.l.b16 %v336
    %v401 = vunpack.c.l.b16 %v337
    %v402 = vunpack.c.l.b16 %v338
    %v403 = vunpack.c.l.b16 %v339
    %v404 = vunpack.c.l.b16 %v340
    %v405 = vunpack.c.l.b16 %v341
    %v406 = vunpack.c.l.b16 %v342
    %v407 = vunpack.c.l.b16 %v343
    %v408 = vunpack.c.l.b16 %v344
    %v409 = vunpack.c.l.b16 %v345
    %v410 = vunpack.c.l.b16 %v346
    %v411 = vunpack.c.l.b16 %v347
    %v412 = vunpack.c.l.b16 %v348
    %v413 = vunpack.c.l.b16 %v349
    %v414 = vunpack.c.l.b16 %v350
    %v415 = vunpack.c.l.b16 %v351
    %v416 = vunpack.c.l.b16 %v352
    %v417 = vunpack.c.l.b16 %v353
    %v418 = vpack.c.b16 %v387, %v386
    %v419 = vpack.c.b16 %v389, %v388
    %v420 = vpack.c.b16 %v391, %v390
    %v421 = vpack.c.b16 %v393, %v392
    %v422 = vpack.c.b16 %v395, %v394
    %v423 = vpack.c.b16 %v397, %v396
    %v424 = vpack.c.b16 %v399, %v398
    %v425 = vpack.c.b16 %v401, %v400
    %v426 = vpack.c.b16 %v403, %v402
    %v427 = vpack.c.b16 %v405, %v404
    %v428 = vpack.c.b16 %v407, %v406
    %v429 = vpack.c.b16 %v409, %v408
    %v430 = vpack.c.b16 %v411, %v410
    %v431 = vpack.c.b16 %v413, %v412
    %v432 = vpack.c.b16 %v415, %v414
    %v433 = vpack.c.b16 %v417, %v416
    %450 = vmatprep.subr.bf16.mxu0 0
    %451 = vmatpush1.bf16.msra.mxu0 %v418
    %452 = vmatprep.subr.bf16.mxu0 0
    %453 = vmatpush1.bf16.msra.mxu0 %v419
    %454 = vmatprep.subr.bf16.mxu0 0
    %455 = vmatpush1.bf16.msra.mxu0 %v420
    %456 = vmatprep.subr.bf16.mxu0 0
    %457 = vmatpush1.bf16.msra.mxu0 %v421
    %458 = vmatprep.subr.bf16.mxu0 0
    %459 = vmatpush1.bf16.msra.mxu0 %v422
    %460 = vmatprep.subr.bf16.mxu0 0
    %461 = vmatpush1.bf16.msra.mxu0 %v423
    %462 = vmatprep.subr.bf16.mxu0 0
    %463 = vmatpush1.bf16.msra.mxu0 %v424
    %464 = vmatprep.subr.bf16.mxu0 0
    %465 = vmatpush1.bf16.msra.mxu0 %v425
    %466 = vmatprep.subr.bf16.mxu0 0
    %467 = vmatpush1.bf16.msra.mxu0 %v426
    %468 = vmatprep.subr.bf16.mxu0 0
    %469 = vmatpush1.bf16.msra.mxu0 %v427
    %470 = vmatprep.subr.bf16.mxu0 0
    %471 = vmatpush1.bf16.msra.mxu0 %v428
    %472 = vmatprep.subr.bf16.mxu0 0
    %473 = vmatpush1.bf16.msra.mxu0 %v429
    %474 = vmatprep.subr.bf16.mxu0 0
    %475 = vmatpush1.bf16.msra.mxu0 %v430
    %476 = vmatprep.subr.bf16.mxu0 0
    %477 = vmatpush1.bf16.msra.mxu0 %v431
    %478 = vmatprep.subr.bf16.mxu0 0
    %479 = vmatpush1.bf16.msra.mxu0 %v432
    %480 = vmatprep.subr.bf16.mxu0 0
    %481 = vmatpush1.bf16.msra.mxu0 %v433
    %482 = vmatprep.mubr.bf16.mxu0 %v319
    %483 = vmatmul.mubr.bf16.gmra.mrb[0].mxu0 %v318
    %v484 = vpop.f32.mrb[0].mxu0
    %v485 = vadd.f32 0.0, %v484
    %v486 = vpop.f32.mrb[0].mxu0
    %v487 = vpop.f32.mrb[0].mxu0
    %v488 = vadd.f32 0.0, %v487
    %v489 = vpop.f32.mrb[0].mxu0
    %490 = vmatprep.mubr.bf16.mxu0 %v321
    %491 = vmatmul.mubr.bf16.gmra.mrb[0].mxu0 %v320
    %v492 = vpop.f32.mrb[0].mxu0
    %v493 = vadd.f32 0.0, %v492
    %v494 = vpop.f32.mrb[0].mxu0
    %v495 = vpop.f32.mrb[0].mxu0
    %v496 = vadd.f32 0.0, %v495
    %v497 = vpop.f32.mrb[0].mxu0
    %498 = vdwg.mxu0
    %v499 = vadd.f32 %v314, %v485
    %v500 = vadd.f32 %v315, %v488
    %v501 = vadd.f32 %v316, %v493
    %v502 = vadd.f32 %v317, %v496
    %503 = vst [vmem:[#allocation3] sm:$0xff] %v499
    %504 = vst [vmem:[#allocation3 + $0x8] sm:$0xff] %v500
    %505 = vst [vmem:[#allocation3 + $0x10] sm:$0xff] %v501
    %506 = vst [vmem:[#allocation3 + $0x18] sm:$0xff] %v502
    // Predicated region
    $region34: #{decoder_forward.11} parent=1 // pred_check
      %p507 = pneg %p28
    $region35: #{decoder_forward.11} parent=1 // pred_check_branch
      %509 = sbr.rel (%p507) target = $region37
    $region36: #{decoder_forward.11} parent=1 // pred_region
      %v510 = vld [vmem:[%s0] sm:$0xff]
      %v511 = vld [vmem:[%s0 + $0x8] sm:$0xff]
      %v512 = vld [vmem:[%s0 + $0x10] sm:$0xff]
      %v513 = vld [vmem:[%s0 + $0x18] sm:$0xff]
      %v514 = vld [vmem:[#allocation3] sm:$0xff]
      %v515 = vld [vmem:[#allocation3 + $0x8] sm:$0xff]
      %v516 = vld [vmem:[#allocation3 + $0x10] sm:$0xff]
      %v517 = vld [vmem:[#allocation3 + $0x18] sm:$0xff]
      %v518 = vadd.f32 %v510, %v514
      %v519 = vadd.f32 %v511, %v515
      %v520 = vadd.f32 %v512, %v516
      %v521 = vadd.f32 %v513, %v517
      %v522 = vld [vmem:[%s6] sm:$0x1]
      %v524 = vlaneseq
      %v525 = vshrl.u32 %v524, 7
      %v526 = vsub.s32 0, %v525
      %v527 = vrot.slane %v522, %v526
      %v529 = vadd.f32 %v518, %v527
      %v530 = vadd.f32 %v519, %v527
      %v531 = vadd.f32 %v520, %v527
      %v532 = vadd.f32 %v521, %v527
      %533 = vst [vmem:[#allocation4] sm:$0xff] %v529
      %534 = vst [vmem:[#allocation4 + $0x8] sm:$0xff] %v530
      %535 = vst [vmem:[#allocation4 + $0x10] sm:$0xff] %v531
      %536 = vst [vmem:[#allocation4 + $0x18] sm:$0xff] %v532
    $region37: #{decoder_forward.11} parent=1 // pred_fallthru
      _
    // Predicated region
    $region38: #{decoder_forward.11} parent=1 // pred_check
      _
    $region39: #{decoder_forward.11} parent=1 // pred_check_branch
      %538 = sbr.rel (0) target = $region41
    $region40: #{decoder_forward.11} parent=1 // pred_region
      %s540 = ssub.s32 512, 512
      %541 = vsyncadd [#allocation5], %s540
      %s542 = sshll.u32 [#allocation4], 4
      %s543 = int_to_ptr.vmem [resolvable:$true] %s542
      %548 = dma.vmem_to_hbm [thread:$0]  %s543, 512, %s7, [#allocation5], 128, 128, 8
    $region41: #{decoder_forward.11} parent=1 // pred_fallthru
      _
    // Predicated region
    $region42: #{decoder_forward.11} parent=1 // pred_check
      _
    $region43: #{decoder_forward.11} parent=1 // pred_check_branch
      %550 = sbr.rel (0) target = $region45
    $region44: #{decoder_forward.11} parent=1 // pred_region
      %551 = dma.done [#allocation5], 512
    $region45: #{decoder_forward.11} parent=1 // pred_fallthru
      _
    %552 = vsyncpa [#allocation5], 1

// kernel: decoder_forward.10
$region0: #{decoder_forward.10}
  #allocation0 [shape = 'u32[]', space=smem, size = 0x4, offset = 0x4, fixed_abs, tag = 'smem constant byte address 0x4 - core index']
  #allocation1 [shape = 'u32[144,128]{1,0:T(1,128)}', space=vmem, size = 0x12000, scoped, tag = 'internal scratch']
  %s0 = inlined_call_operand.vmem [shape: f32[2,16,128], index: 0, kind: input, shape index: {}]
  %s1 = inlined_call_operand.vmem [shape: f32[2,16,256], index: 1, kind: input, shape index: {}]
  %s2 = inlined_call_operand.vmem [shape: bf16[128,128], index: 2, kind: input, shape index: {}]
  %s3 = inlined_call_operand.vmem [shape: f32[1,128], index: 3, kind: input, shape index: {}]
  %s4 = inlined_call_operand.vmem [shape: f32[2,16,128], index: 4, kind: input, shape index: {}]
  %s5 = inlined_call_operand.vmem [shape: f32[2,16,128], index: 5, kind: output, shape index: {}]
  %s6 = sld [smem:[#allocation0]]
  $region53: #{decoder_forward.10} parent=0
    _
  %s8 = ssub.s32 1, %s6
  %s9 = scalar_select 0, %s8, %s6
  loop: start=0, step=1, limit=4
  $region2: #{decoder_forward.10} parent=0 // loop_pre_header
    _
  $region3: #{decoder_forward.10} parent=0 // loop_header
    %s11 = sphi 0, %s15
    %p12 = scmp.ge.s32.totalorder %s11, 4
    %s18 = sphi 0, %s30
    %s19 = sphi 0, %s26
    %s20 = sphi 0, %s18
    %s21 = sphi 0, %s19
    %s22 = sphi 0, %s20
    %s23 = sphi 0, %s21
    %s35 = sphi 0, %s37
    %s38 = sphi 0, %s35
    %s39 = sphi 0, %s38
    %s55 = sphi 0, %s39
    %s61 = sphi 0, %s63
    %s64 = sphi 0, %s61
    %s65 = sphi 0, %s64
    %s81 = sphi 0, %s65
    %s85 = sphi 0, %s85
    %s87 = sphi 0, %s85
    %s88 = sphi 0, %s87
    %s102 = sphi 0, %s88
    %s106 = sphi 0, %s106
    %s108 = sphi 0, %s106
    %s109 = sphi 0, %s108
    %s123 = sphi 0, %s109
    %s131 = sphi 0, %s133
    %s134 = sphi 0, %s131
    %s135 = sphi 0, %s134
    %s151 = sphi 0, %s135
    %s159 = sphi 0, %s161
    %s162 = sphi 0, %s159
    %s163 = sphi 0, %s162
    %s179 = sphi 0, %s163
  $region4: #{decoder_forward.10} parent=0 // loop_header_branch
    %14 = sbr.rel (%p12) target = $region8
  $region5: #{decoder_forward.10} parent=0 // loop_body
    %s16 = ssub.s32 %s11, 1
    %s17 = ssub.s32 %s11, 2
    %s24 = sadd.s32 1, %s19
    %p25 = scmp.ge.s32.totalorder %s24, 1
    %s26 = scalar_select %p25, 0, %s24
    %s27 = sadd.s32 1, %s18
    %s28 = scalar_select %p25, %s27, %s18
    %p29 = scmp.ge.s32.totalorder %s28, 2
    %s30 = scalar_select %p29, 0, %s28
    %s31 = ssub.s32 %s18, %s30
    %s32 = ssub.s32 %s19, %s26
    %s33 = sor.u32 %s31, %s32
    %p34 = scmp.eq.s32.totalorder %s33, 0
    %s36 = sadd.s32 %s35, 1
    %s37 = scalar_select %p34, %s35, %s36
    %p40 = pneg %p34
    %p41 = scmp.eq.s32.totalorder %s11, 1
    %p42 = por %p40, %p41
    %p43 = scmp.ne.s32.totalorder %s35, %s38
    %p44 = scmp.eq.s32.totalorder %s11, 0
    %p45 = por %p43, %p44
    %p46 = scmp.ne.s32.totalorder %s35, %s38
    %p47 = scmp.eq.s32.totalorder %s16, 1
    %p48 = por %p46, %p47
    %p49 = scmp.ne.s32.totalorder %s38, %s39
    %p50 = scmp.eq.s32.totalorder %s16, 0
    %p51 = por %p49, %p50
    %p52 = scmp.ne.s32.totalorder %s38, %s39
    %p53 = scmp.eq.s32.totalorder %s17, 1
    %p54 = por %p52, %p53
    %p56 = scmp.ne.s32.totalorder %s39, %s55
    %p57 = scmp.eq.s32.totalorder %s17, 0
    %p58 = por %p56, %p57
    %s59 = ssub.s32 %s18, %s30
    %p60 = scmp.eq.s32.totalorder %s59, 0
    %s62 = sadd.s32 %s61, 1
    %s63 = scalar_select %p60, %s61, %s62
    %p66 = pneg %p60
    %p67 = scmp.eq.s32.totalorder %s11, 1
    %p68 = por %p66, %p67
    %p69 = scmp.ne.s32.totalorder %s61, %s64
    %p70 = scmp.eq.s32.totalorder %s11, 0
    %p71 = por %p69, %p70
    %p72 = scmp.ne.s32.totalorder %s61, %s64
    %p73 = scmp.eq.s32.totalorder %s16, 1
    %p74 = por %p72, %p73
    %p75 = scmp.ne.s32.totalorder %s64, %s65
    %p76 = scmp.eq.s32.totalorder %s16, 0
    %p77 = por %p75, %p76
    %p78 = scmp.ne.s32.totalorder %s64, %s65
    %p79 = scmp.eq.s32.totalorder %s17, 1
    %p80 = por %p78, %p79
    %p82 = scmp.ne.s32.totalorder %s65, %s81
    %p83 = scmp.eq.s32.totalorder %s17, 0
    %p84 = por %p82, %p83
    %s86 = sadd.s32 %s85, 1
    %p89 = scmp.eq.s32.totalorder %s11, 1
    %p90 = scmp.ne.s32.totalorder %s85, %s87
    %p91 = scmp.eq.s32.totalorder %s11, 0
    %p92 = por %p90, %p91
    %p93 = scmp.ne.s32.totalorder %s85, %s87
    %p94 = scmp.eq.s32.totalorder %s16, 1
    %p95 = por %p93, %p94
    %p96 = scmp.ne.s32.totalorder %s87, %s88
    %p97 = scmp.eq.s32.totalorder %s16, 0
    %p98 = por %p96, %p97
    %p99 = scmp.ne.s32.totalorder %s87, %s88
    %p100 = scmp.eq.s32.totalorder %s17, 1
    %p101 = por %p99, %p100
    %p103 = scmp.ne.s32.totalorder %s88, %s102
    %p104 = scmp.eq.s32.totalorder %s17, 0
    %p105 = por %p103, %p104
    %s107 = sadd.s32 %s106, 1
    %p110 = scmp.eq.s32.totalorder %s11, 1
    %p111 = scmp.ne.s32.totalorder %s106, %s108
    %p112 = scmp.eq.s32.totalorder %s11, 0
    %p113 = por %p111, %p112
    %p114 = scmp.ne.s32.totalorder %s106, %s108
    %p115 = scmp.eq.s32.totalorder %s16, 1
    %p116 = por %p114, %p115
    %p117 = scmp.ne.s32.totalorder %s108, %s109
    %p118 = scmp.eq.s32.totalorder %s16, 0
    %p119 = por %p117, %p118
    %p120 = scmp.ne.s32.totalorder %s108, %s109
    %p121 = scmp.eq.s32.totalorder %s17, 1
    %p122 = por %p120, %p121
    %p124 = scmp.ne.s32.totalorder %s109, %s123
    %p125 = scmp.eq.s32.totalorder %s17, 0
    %p126 = por %p124, %p125
    %s127 = ssub.s32 %s18, %s30
    %s128 = ssub.s32 %s19, %s26
    %s129 = sor.u32 %s127, %s128
    %p130 = scmp.eq.s32.totalorder %s129, 0
    %s132 = sadd.s32 %s131, 1
    %s133 = scalar_select %p130, %s131, %s132
    %p136 = pneg %p130
    %p137 = scmp.eq.s32.totalorder %s11, 1
    %p138 = por %p136, %p137
    %p139 = scmp.ne.s32.totalorder %s131, %s134
    %p140 = scmp.eq.s32.totalorder %s11, 0
    %p141 = por %p139, %p140
    %p142 = scmp.ne.s32.totalorder %s131, %s134
    %p143 = scmp.eq.s32.totalorder %s16, 1
    %p144 = por %p142, %p143
    %p145 = scmp.ne.s32.totalorder %s134, %s135
    %p146 = scmp.eq.s32.totalorder %s16, 0
    %p147 = por %p145, %p146
    %p148 = scmp.ne.s32.totalorder %s134, %s135
    %p149 = scmp.eq.s32.totalorder %s17, 1
    %p150 = por %p148, %p149
    %p152 = scmp.ne.s32.totalorder %s135, %s151
    %p153 = scmp.eq.s32.totalorder %s17, 0
    %p154 = por %p152, %p153
    %s155 = ssub.s32 %s18, %s30
    %s156 = ssub.s32 %s19, %s26
    %s157 = sor.u32 %s155, %s156
    %p158 = scmp.eq.s32.totalorder %s157, 0
    %s160 = sadd.s32 %s159, 1
    %s161 = scalar_select %p158, %s159, %s160
    %p164 = pneg %p158
    %p165 = scmp.eq.s32.totalorder %s11, 1
    %p166 = por %p164, %p165
    %p167 = scmp.ne.s32.totalorder %s159, %s162
    %p168 = scmp.eq.s32.totalorder %s11, 0
    %p169 = por %p167, %p168
    %p170 = scmp.ne.s32.totalorder %s159, %s162
    %p171 = scmp.eq.s32.totalorder %s16, 1
    %p172 = por %p170, %p171
    %p173 = scmp.ne.s32.totalorder %s162, %s163
    %p174 = scmp.eq.s32.totalorder %s16, 0
    %p175 = por %p173, %p174
    %p176 = scmp.ne.s32.totalorder %s162, %s163
    %p177 = scmp.eq.s32.totalorder %s17, 1
    %p178 = por %p176, %p177
    %p180 = scmp.ne.s32.totalorder %s163, %s179
    %p181 = scmp.eq.s32.totalorder %s17, 0
    %p182 = por %p180, %p181
    %p183 = scmp.le.s32.totalorder 1, %s11
    %p184 = scmp.lt.s32.totalorder %s11, 3
    %p185 = pnand %p183, %p184
    %p186 = pneg %p185
    // Predicated region
    $region9: #{decoder_forward.10} parent=5 // pred_check
      _
    $region10: #{decoder_forward.10} parent=5 // pred_check_branch
      %188 = sbr.rel (%p185) target = $region12
    $region11: #{decoder_forward.10} parent=5 // pred_region
      %s189 = ssub.s32 %s11, 1
      // Predicated region
      $region13: #{decoder_forward.10} parent=11 // pred_check
        %p190 = pneg %p98
      $region14: #{decoder_forward.10} parent=11 // pred_check_branch
        %192 = sbr.rel (%p190) target = $region16
      $region15: #{decoder_forward.10} parent=11 // pred_region
        _
      $region16: #{decoder_forward.10} parent=11 // pred_fallthru
        _
      // Predicated region
      $region17: #{decoder_forward.10} parent=11 // pred_check
        %p193 = pneg %p119
      $region18: #{decoder_forward.10} parent=11 // pred_check_branch
        %195 = sbr.rel (%p193) target = $region20
      $region19: #{decoder_forward.10} parent=11 // pred_region
        _
      $region20: #{decoder_forward.10} parent=11 // pred_fallthru
        _
    $region12: #{decoder_forward.10} parent=5 // pred_fallthru
      _
    %p196 = scmp.lt.s32.totalorder %s11, 2
    // Predicated region
    $region21: #{decoder_forward.10} parent=5 // pred_check
      %p197 = pneg %p196
    $region22: #{decoder_forward.10} parent=5 // pred_check_branch
      %199 = sbr.rel (%p197) target = $region24
    $region23: #{decoder_forward.10} parent=5 // pred_region
      // Predicated region
      $region25: #{decoder_forward.10} parent=23 // pred_check
        %p200 = pneg %p45
      $region26: #{decoder_forward.10} parent=23 // pred_check_branch
        %202 = sbr.rel (%p200) target = $region28
      $region27: #{decoder_forward.10} parent=23 // pred_region
        %s203 = smul.u32 2, %s19
        %p204 = scmp.lt.s32.totalorder %s18, 1
        %s205 = scalar_select %p204, %s18, 1
        %p206 = scmp.lt.s32.totalorder %s203, 1
        %s207 = scalar_select %p206, %s203, 1
        %s208 = smul.addr %s205, 2
        %s209 = sadd.s32 %s207, %s208
        %s210 = smul.addr %s209, 8
        %s211 = scalar_lea.vmem %s0, %s210
        %s212 = smul.u32 2, %s19
      $region28: #{decoder_forward.10} parent=23 // pred_fallthru
        _
      // Predicated region
      $region29: #{decoder_forward.10} parent=23 // pred_check
        %p213 = pneg %p71
      $region30: #{decoder_forward.10} parent=23 // pred_check_branch
        %215 = sbr.rel (%p213) target = $region32
      $region31: #{decoder_forward.10} parent=23 // pred_region
        %p216 = scmp.lt.s32.totalorder %s18, 1
        %s217 = scalar_select %p216, %s18, 1
        %s218 = smul.addr %s217, 4
        %s219 = smul.addr %s218, 8
        %s220 = scalar_lea.vmem %s1, %s219
      $region32: #{decoder_forward.10} parent=23 // pred_fallthru
        _
      // Predicated region
      $region33: #{decoder_forward.10} parent=23 // pred_check
        %p221 = pneg %p141
      $region34: #{decoder_forward.10} parent=23 // pred_check_branch
        %223 = sbr.rel (%p221) target = $region36
      $region35: #{decoder_forward.10} parent=23 // pred_region
        %s224 = smul.u32 2, %s19
        %p225 = scmp.lt.s32.totalorder %s18, 1
        %s226 = scalar_select %p225, %s18, 1
        %p227 = scmp.lt.s32.totalorder %s224, 1
        %s228 = scalar_select %p227, %s224, 1
        %s229 = smul.addr %s226, 2
        %s230 = sadd.s32 %s228, %s229
        %s231 = smul.addr %s230, 8
        %s232 = scalar_lea.vmem %s4, %s231
        %s233 = smul.u32 2, %s19
      $region36: #{decoder_forward.10} parent=23 // pred_fallthru
        _
    $region24: #{decoder_forward.10} parent=5 // pred_fallthru
      _
    %p234 = scmp.le.s32.totalorder 1, %s11
    %p235 = scmp.lt.s32.totalorder %s11, 3
    %p236 = pnand %p234, %p235
    %p237 = pneg %p236
    // Predicated region
    $region37: #{decoder_forward.10} parent=5 // pred_check
      _
    $region38: #{decoder_forward.10} parent=5 // pred_check_branch
      %239 = sbr.rel (%p236) target = $region40
    $region39: #{decoder_forward.10} parent=5 // pred_region
      %s240 = ssub.s32 %s11, 1
      %s241 = smul.u32 2, %s21
      %p242 = scmp.lt.s32.totalorder %s20, 1
      %s243 = scalar_select %p242, %s20, 1
      %p244 = scmp.lt.s32.totalorder %s241, 1
      %s245 = scalar_select %p244, %s241, 1
      %s246 = smul.addr %s243, 2
      %s247 = sadd.s32 %s245, %s246
      %s248 = smul.addr %s247, 8
      %s249 = scalar_lea.vmem %s0, %s248
      %p250 = pneg %p51
      %p251 = pneg %p48
      %p252 = scmp.lt.s32.totalorder %s20, 1
      %s253 = scalar_select %p252, %s20, 1
      %s254 = smul.addr %s253, 4
      %s255 = smul.addr %s254, 8
      %s256 = scalar_lea.vmem %s1, %s255
      %p257 = pneg %p77
      %p258 = pneg %p74
      %p259 = pneg %p98
      %p260 = pneg %p95
      %p261 = pneg %p119
      %p262 = pneg %p116
      %s263 = smul.u32 2, %s21
      %p264 = scmp.lt.s32.totalorder %s20, 1
      %s265 = scalar_select %p264, %s20, 1
      %p266 = scmp.lt.s32.totalorder %s263, 1
      %s267 = scalar_select %p266, %s263, 1
      %s268 = smul.addr %s265, 2
      %s269 = sadd.s32 %s267, %s268
      %s270 = smul.addr %s269, 8
      %s271 = scalar_lea.vmem %s4, %s270
      %p272 = pneg %p147
      %p273 = pneg %p144
      %p274 = pneg %p175
      %p275 = pneg %p172
      %s276 = smul.u32 2, %s21
      %p277 = scmp.lt.s32.totalorder %s20, 1
      %s278 = scalar_select %p277, %s20, 1
      %p279 = scmp.lt.s32.totalorder %s276, 1
      %s280 = scalar_select %p279, %s276, 1
      %s281 = smul.addr %s278, 2
      %s282 = sadd.s32 %s280, %s281
      %s283 = smul.addr %s282, 8
      %s284 = scalar_lea.vmem %s5, %s283
      %s285 = smul.u32 2, %s21
      %p286 = scmp.lt.s32.totalorder %s20, 1
      %s287 = scalar_select %p286, %s20, 1
      %p288 = scmp.lt.s32.totalorder %s285, 1
      %s289 = scalar_select %p288, %s285, 1
      %s290 = smul.addr %s287, 2
      %s291 = sadd.s32 %s289, %s290
      %s292 = smul.addr %s291, 8
      %s293 = scalar_lea.vmem %s0, %s292
      %s294 = smul.u32 2, %s21
      %p295 = scmp.lt.s32.totalorder %s20, 1
      %s296 = scalar_select %p295, %s20, 1
      %s297 = smul.addr %s296, 4
      %s298 = smul.addr %s297, 8
      %s299 = scalar_lea.vmem %s1, %s298
      %s300 = smul.u32 2, %s21
      %p301 = scmp.lt.s32.totalorder %s20, 1
      %s302 = scalar_select %p301, %s20, 1
      %p303 = scmp.lt.s32.totalorder %s300, 1
      %s304 = scalar_select %p303, %s300, 1
      %s305 = smul.addr %s302, 2
      %s306 = sadd.s32 %s304, %s305
      %s307 = smul.addr %s306, 8
      %s308 = scalar_lea.vmem %s4, %s307
      %s309 = smul.u32 2, %s21
      %s310 = smul.u32 2, %s21
      %p311 = scmp.lt.s32.totalorder %s20, 1
      %s312 = scalar_select %p311, %s20, 1
      %p313 = scmp.lt.s32.totalorder %s310, 1
      %s314 = scalar_select %p313, %s310, 1
      %s315 = smul.addr %s312, 2
      %s316 = sadd.s32 %s314, %s315
      %s317 = smul.addr %s316, 8
      %s318 = scalar_lea.vmem %s5, %s317
      %s319 = smul.u32 2, %s21
      %v321 = vld [vmem:[%s293] sm:$0xff]
      %v322 = vld [vmem:[%s293 + $0x8] sm:$0xff]
      %v323 = vld [vmem:[%s299] sm:$0xff]
      %v324 = vld [vmem:[%s299 + $0x8] sm:$0xff]
      %v325 = vld [vmem:[%s299 + $0x10] sm:$0xff]
      %v326 = vld [vmem:[%s299 + $0x18] sm:$0xff]
      %v327 = vld [vmem:[%s2] sm:$0xf]
      %v328 = vld [vmem:[%s2 + $0x4] sm:$0xf]
      %v329 = vld [vmem:[%s2 + $0x8] sm:$0xf]
      %v330 = vld [vmem:[%s2 + $0xc] sm:$0xf]
      %v331 = vld [vmem:[%s2 + $0x10] sm:$0xf]
      %v332 = vld [vmem:[%s2 + $0x14] sm:$0xf]
      %v333 = vld [vmem:[%s2 + $0x18] sm:$0xf]
      %v334 = vld [vmem:[%s2 + $0x1c] sm:$0xf]
      %v335 = vld [vmem:[%s2 + $0x20] sm:$0xf]
      %v336 = vld [vmem:[%s2 + $0x24] sm:$0xf]
      %v337 = vld [vmem:[%s2 + $0x28] sm:$0xf]
      %v338 = vld [vmem:[%s2 + $0x2c] sm:$0xf]
      %v339 = vld [vmem:[%s2 + $0x30] sm:$0xf]
      %v340 = vld [vmem:[%s2 + $0x34] sm:$0xf]
      %v341 = vld [vmem:[%s2 + $0x38] sm:$0xf]
      %v342 = vld [vmem:[%s2 + $0x3c] sm:$0xf]
      %v343 = vld [vmem:[%s308] sm:$0xff]
      %v344 = vld [vmem:[%s308 + $0x8] sm:$0xff]
      %v345 = vld [vmem:[%s3] sm:$0x1]
      %v347 = vlaneseq
      %v348 = vshrl.u32 %v347, 7
      %v349 = vsub.s32 0, %v348
      %v350 = vrot.slane %v345, %v349
      %v352 = vadd.f32 %v343, %v350
      %v353 = vadd.f32 %v344, %v350
      %v354 = vpack.c.bf16 %v322, %v321
      %v355 = vpack.c.bf16 %v325, %v323
      %v356 = vpack.c.bf16 %v326, %v324
      %vm357 = vcmask 261120
      %v359 = vsel %vm357, %v354, 0
      %v362 = vsel %vm357, %v355, 0
      %364 = vmatprep.subr.bf16.mxu0 0
      %365 = vmatpush1.bf16.xpose.msra.mxu0 %v362
      %366 = vmatprep.subr.bf16.mxu0 0
      %367 = vmatpush1.bf16.xpose.msra.mxu0 0
      %368 = vmatprep.subr.bf16.mxu0 0
      %369 = vmatpush1.bf16.xpose.msra.mxu0 0
      %370 = vmatprep.subr.bf16.mxu0 0
      %371 = vmatpush1.bf16.xpose.msra.mxu0 0
      %372 = vmatprep.subr.bf16.mxu0 0
      %373 = vmatpush1.bf16.xpose.msra.mxu0 0
      %374 = vmatprep.subr.bf16.mxu0 0
      %375 = vmatpush1.bf16.xpose.msra.mxu0 0
      %376 = vmatprep.subr.bf16.mxu0 0
      %377 = vmatpush1.bf16.xpose.msra.mxu0 0
      %378 = vmatprep.subr.bf16.mxu0 0
      %379 = vmatpush1.bf16.xpose.msra.mxu0 0
      %380 = vmatprep.subr.bf16.mxu0 0
      %381 = vmatpush1.bf16.xpose.msra.mxu0 0
      %382 = vmatprep.subr.bf16.mxu0 0
      %383 = vmatpush1.bf16.xpose.msra.mxu0 0
      %384 = vmatprep.subr.bf16.mxu0 0
      %385 = vmatpush1.bf16.xpose.msra.mxu0 0
      %386 = vmatprep.subr.bf16.mxu0 0
      %387 = vmatpush1.bf16.xpose.msra.mxu0 0
      %388 = vmatprep.subr.bf16.mxu0 0
      %389 = vmatpush1.bf16.xpose.msra.mxu0 0
      %390 = vmatprep.subr.bf16.mxu0 0
      %391 = vmatpush1.bf16.xpose.msra.mxu0 0
      %392 = vmatprep.subr.bf16.mxu0 0
      %393 = vmatpush1.bf16.xpose.msra.mxu0 0
      %394 = vmatprep.subr.bf16.mxu0 0
      %395 = vmatpush1.bf16.xpose.msra.mxu0 0
      %396 = vmatprep.mubr.bf16.mxu0 0
      %397 = vmatmul.mubr.bf16.gmra.mrb[0].mxu0 %v359
      %v398 = vpop.f32.mrb[0].mxu0
      %v399 = vadd.f32 0.0, %v398
      %v400 = vpop.f32.mrb[0].mxu0
      %v401 = vpop.f32.mrb[0].mxu0
      %v402 = vadd.f32 0.0, %v401
      %v403 = vpop.f32.mrb[0].mxu0
      %404 = vdwg.mxu0
      %v405 = vmul.f32 %v399, 0.17677669
      %v406 = vmul.f32 %v402, 0.17677669
      %vm407 = vcmask 130048
      %v408 = vsel %vm407, %v405, -inf
      %409 = vmax.xlane.f32.xlu0 %v408
      %v410 = vpop.xlane.xlu0 %409
      %v411 = vsel %vm407, %v406, -inf
      %412 = vmax.xlane.f32.xlu0 %v411
      %v413 = vpop.xlane.xlu0 %412
      %v414 = vsub.f32 %v405, %v410
      %v415 = vsub.f32 %v406, %v413
      %v416 = vmul.f32 %v414, 1.442695
      %v417 = vpow.pop %v416
      %v418 = vmul.f32 %v415, 1.442695
      %v419 = vpow.pop %v418
      %v420 = vsel %vm407, %v417, 0.0
      %421 = vadd.xlane.f32.xlu0 %v420
      %v422 = vpop.xlane.xlu0 %421
      %v423 = vsel %vm407, %v419, 0.0
      %424 = vadd.xlane.f32.xlu0 %v423
      %v425 = vpop.xlane.xlu0 %424
      %v426 = vrcp.pop %v422
      %v427 = vrcp.pop %v425
      %v428 = vmul.f32 %v417, %v426
      %v429 = vmul.f32 %v419, %v427
      %v430 = vpack.c.bf16 %v429, %v428
      %v432 = vsel %vm407, %v430, 0
      %434 = vmatprep.subr.bf16.mxu0 0
      %435 = vmatpush1.bf16.msra.mxu0 %v356
      %436 = vmatprep.subr.bf16.mxu0 0
      %437 = vmatpush1.bf16.msra.mxu0 0
      %438 = vmatprep.subr.bf16.mxu0 0
      %439 = vmatpush1.bf16.msra.mxu0 0
      %440 = vmatprep.subr.bf16.mxu0 0
      %441 = vmatpush1.bf16.msra.mxu0 0
      %442 = vmatprep.subr.bf16.mxu0 0
      %443 = vmatpush1.bf16.msra.mxu0 0
      %444 = vmatprep.subr.bf16.mxu0 0
      %445 = vmatpush1.bf16.msra.mxu0 0
      %446 = vmatprep.subr.bf16.mxu0 0
      %447 = vmatpush1.bf16.msra.mxu0 0
      %448 = vmatprep.subr.bf16.mxu0 0
      %449 = vmatpush1.bf16.msra.mxu0 0
      %450 = vmatprep.subr.bf16.mxu0 0
      %451 = vmatpush1.bf16.msra.mxu0 0
      %452 = vmatprep.subr.bf16.mxu0 0
      %453 = vmatpush1.bf16.msra.mxu0 0
      %454 = vmatprep.subr.bf16.mxu0 0
      %455 = vmatpush1.bf16.msra.mxu0 0
      %456 = vmatprep.subr.bf16.mxu0 0
      %457 = vmatpush1.bf16.msra.mxu0 0
      %458 = vmatprep.subr.bf16.mxu0 0
      %459 = vmatpush1.bf16.msra.mxu0 0
      %460 = vmatprep.subr.bf16.mxu0 0
      %461 = vmatpush1.bf16.msra.mxu0 0
      %462 = vmatprep.subr.bf16.mxu0 0
      %463 = vmatpush1.bf16.msra.mxu0 0
      %464 = vmatprep.subr.bf16.mxu0 0
      %465 = vmatpush1.bf16.msra.mxu0 0
      %466 = vmatprep.mubr.bf16.mxu0 0
      %467 = vmatmul.mubr.bf16.gmra.mrb[0].mxu0 %v432
      %v468 = vpop.f32.mrb[0].mxu0
      %v469 = vadd.f32 0.0, %v468
      %v470 = vpop.f32.mrb[0].mxu0
      %v471 = vpop.f32.mrb[0].mxu0
      %v472 = vadd.f32 0.0, %v471
      %v473 = vpop.f32.mrb[0].mxu0
      %474 = vdwg.mxu0
      %v475 = vpack.c.bf16 %v472, %v469
      %v480 = vunpack.c.l.b16 %v327
      %v481 = vunpack.c.l.b16 %v328
      %v482 = vunpack.c.l.b16 %v329
      %v483 = vunpack.c.l.b16 %v330
      %v484 = vpack.c.b16 %v481, %v480
      %v485 = vpack.c.b16 %v483, %v482
      %v489 = vsel %vm357, %v475, 0
      %491 = vmatprep.subr.bf16.mxu0 0
      %492 = vmatpush1.bf16.msra.mxu0 %v484
      %493 = vmatprep.subr.bf16.mxu0 0
      %494 = vmatpush1.bf16.msra.mxu0 %v485
      %495 = vmatprep.subr.bf16.mxu0 0
      %496 = vmatpush1.bf16.msra.mxu0 0
      %497 = vmatprep.subr.bf16.mxu0 0
      %498 = vmatpush1.bf16.msra.mxu0 0
      %499 = vmatprep.subr.bf16.mxu0 0
      %500 = vmatpush1.bf16.msra.mxu0 0
      %501 = vmatprep.subr.bf16.mxu0 0
      %502 = vmatpush1.bf16.msra.mxu0 0
      %503 = vmatprep.subr.bf16.mxu0 0
      %504 = vmatpush1.bf16.msra.mxu0 0
      %505 = vmatprep.subr.bf16.mxu0 0
      %506 = vmatpush1.bf16.msra.mxu0 0
      %507 = vmatprep.subr.bf16.mxu0 0
      %508 = vmatpush1.bf16.msra.mxu0 0
      %509 = vmatprep.subr.bf16.mxu0 0
      %510 = vmatpush1.bf16.msra.mxu0 0
      %511 = vmatprep.subr.bf16.mxu0 0
      %512 = vmatpush1.bf16.msra.mxu0 0
      %513 = vmatprep.subr.bf16.mxu0 0
      %514 = vmatpush1.bf16.msra.mxu0 0
      %515 = vmatprep.subr.bf16.mxu0 0
      %516 = vmatpush1.bf16.msra.mxu0 0
      %517 = vmatprep.subr.bf16.mxu0 0
      %518 = vmatpush1.bf16.msra.mxu0 0
      %519 = vmatprep.subr.bf16.mxu0 0
      %520 = vmatpush1.bf16.msra.mxu0 0
      %521 = vmatprep.subr.bf16.mxu0 0
      %522 = vmatpush1.bf16.msra.mxu0 0
      %523 = vmatprep.mubr.bf16.mxu0 0
      %524 = vmatmul.mubr.bf16.gmra.mrb[0].mxu0 %v489
      %v525 = vpop.f32.mrb[0].mxu0
      %v526 = vadd.f32 0.0, %v525
      %v527 = vpop.f32.mrb[0].mxu0
      %v528 = vpop.f32.mrb[0].mxu0
      %v529 = vadd.f32 0.0, %v528
      %v530 = vpop.f32.mrb[0].mxu0
      %531 = vdwg.mxu0
      %v532 = vadd.f32 %v352, %v526
      %v533 = vadd.f32 %v353, %v529
      %535 = vrot.lane.b32.xlu0 %v354, 96
      %v536 = vpop.permute.xlu0 %535
      %538 = vrot.lane.b32.xlu0 %v355, 96
      %v539 = vpop.permute.xlu0 %538
      %v541 = vsel %vm357, %v536, 0
      %v544 = vsel %vm357, %v539, 0
      %546 = vmatprep.subr.bf16.mxu0 0
      %547 = vmatpush1.bf16.xpose.msra.mxu0 %v544
      %548 = vmatprep.subr.bf16.mxu0 0
      %549 = vmatpush1.bf16.xpose.msra.mxu0 0
      %550 = vmatprep.subr.bf16.mxu0 0
      %551 = vmatpush1.bf16.xpose.msra.mxu0 0
      %552 = vmatprep.subr.bf16.mxu0 0
      %553 = vmatpush1.bf16.xpose.msra.mxu0 0
      %554 = vmatprep.subr.bf16.mxu0 0
      %555 = vmatpush1.bf16.xpose.msra.mxu0 0
      %556 = vmatprep.subr.bf16.mxu0 0
      %557 = vmatpush1.bf16.xpose.msra.mxu0 0
      %558 = vmatprep.subr.bf16.mxu0 0
      %559 = vmatpush1.bf16.xpose.msra.mxu0 0
      %560 = vmatprep.subr.bf16.mxu0 0
      %561 = vmatpush1.bf16.xpose.msra.mxu0 0
      %562 = vmatprep.subr.bf16.mxu0 0
      %563 = vmatpush1.bf16.xpose.msra.mxu0 0
      %564 = vmatprep.subr.bf16.mxu0 0
      %565 = vmatpush1.bf16.xpose.msra.mxu0 0
      %566 = vmatprep.subr.bf16.mxu0 0
      %567 = vmatpush1.bf16.xpose.msra.mxu0 0
      %568 = vmatprep.subr.bf16.mxu0 0
      %569 = vmatpush1.bf16.xpose.msra.mxu0 0
      %570 = vmatprep.subr.bf16.mxu0 0
      %571 = vmatpush1.bf16.xpose.msra.mxu0 0
      %572 = vmatprep.subr.bf16.mxu0 0
      %573 = vmatpush1.bf16.xpose.msra.mxu0 0
      %574 = vmatprep.subr.bf16.mxu0 0
      %575 = vmatpush1.bf16.xpose.msra.mxu0 0
      %576 = vmatprep.subr.bf16.mxu0 0
      %577 = vmatpush1.bf16.xpose.msra.mxu0 0
      %578 = vmatprep.mubr.bf16.mxu0 0
      %579 = vmatmul.mubr.bf16.gmra.mrb[0].mxu0 %v541
      %v580 = vpop.f32.mrb[0].mxu0
      %v581 = vadd.f32 0.0, %v580
      %v582 = vpop.f32.mrb[0].mxu0
      %v583 = vpop.f32.mrb[0].mxu0
      %v584 = vadd.f32 0.0, %v583
      %v585 = vpop.f32.mrb[0].mxu0
      %586 = vdwg.mxu0
      %v587 = vmul.f32 %v581, 0.17677669
      %v588 = vmul.f32 %v584, 0.17677669
      %v589 = vsel %vm407, %v587, -inf
      %590 = vmax.xlane.f32.xlu0 %v589
      %v591 = vpop.xlane.xlu0 %590
      %v592 = vsel %vm407, %v588, -inf
      %593 = vmax.xlane.f32.xlu0 %v592
      %v594 = vpop.xlane.xlu0 %593
      %v595 = vsub.f32 %v587, %v591
      %v596 = vsub.f32 %v588, %v594
      %v597 = vmul.f32 %v595, 1.442695
      %v598 = vpow.pop %v597
      %v599 = vmul.f32 %v596, 1.442695
      %v600 = vpow.pop %v599
      %v601 = vsel %vm407, %v598, 0.0
      %602 = vadd.xlane.f32.xlu0 %v601
      %v603 = vpop.xlane.xlu0 %602
      %v604 = vsel %vm407, %v600, 0.0
      %605 = vadd.xlane.f32.xlu0 %v604
      %v606 = vpop.xlane.xlu0 %605
      %v607 = vrcp.pop %v603
      %v608 = vrcp.pop %v606
      %v609 = vmul.f32 %v598, %v607
      %v610 = vmul.f32 %v600, %v608
      %v611 = vpack.c.bf16 %v610, %v609
      %613 = vrot.lane.b32.xlu0 %v356, 96
      %v614 = vpop.permute.xlu0 %613
      %v617 = vsel %vm407, %v611, 0
      %619 = vmatprep.subr.bf16.mxu0 0
      %620 = vmatpush1.bf16.msra.mxu0 %v614
      %621 = vmatprep.subr.bf16.mxu0 0
      %622 = vmatpush1.bf16.msra.mxu0 0
      %623 = vmatprep.subr.bf16.mxu0 0
      %624 = vmatpush1.bf16.msra.mxu0 0
      %625 = vmatprep.subr.bf16.mxu0 0
      %626 = vmatpush1.bf16.msra.mxu0 0
      %627 = vmatprep.subr.bf16.mxu0 0
      %628 = vmatpush1.bf16.msra.mxu0 0
      %629 = vmatprep.subr.bf16.mxu0 0
      %630 = vmatpush1.bf16.msra.mxu0 0
      %631 = vmatprep.subr.bf16.mxu0 0
      %632 = vmatpush1.bf16.msra.mxu0 0
      %633 = vmatprep.subr.bf16.mxu0 0
      %634 = vmatpush1.bf16.msra.mxu0 0
      %635 = vmatprep.subr.bf16.mxu0 0
      %636 = vmatpush1.bf16.msra.mxu0 0
      %637 = vmatprep.subr.bf16.mxu0 0
      %638 = vmatpush1.bf16.msra.mxu0 0
      %639 = vmatprep.subr.bf16.mxu0 0
      %640 = vmatpush1.bf16.msra.mxu0 0
      %641 = vmatprep.subr.bf16.mxu0 0
      %642 = vmatpush1.bf16.msra.mxu0 0
      %643 = vmatprep.subr.bf16.mxu0 0
      %644 = vmatpush1.bf16.msra.mxu0 0
      %645 = vmatprep.subr.bf16.mxu0 0
      %646 = vmatpush1.bf16.msra.mxu0 0
      %647 = vmatprep.subr.bf16.mxu0 0
      %648 = vmatpush1.bf16.msra.mxu0 0
      %649 = vmatprep.subr.bf16.mxu0 0
      %650 = vmatpush1.bf16.msra.mxu0 0
      %651 = vmatprep.mubr.bf16.mxu0 0
      %652 = vmatmul.mubr.bf16.gmra.mrb[0].mxu0 %v617
      %v653 = vpop.f32.mrb[0].mxu0
      %v654 = vadd.f32 0.0, %v653
      %v655 = vpop.f32.mrb[0].mxu0
      %v656 = vpop.f32.mrb[0].mxu0
      %v657 = vadd.f32 0.0, %v656
      %v658 = vpop.f32.mrb[0].mxu0
      %659 = vdwg.mxu0
      %v660 = vpack.c.bf16 %v657, %v654
      %v665 = vunpack.c.l.b16 %v331
      %v666 = vunpack.c.l.b16 %v332
      %v667 = vunpack.c.l.b16 %v333
      %v668 = vunpack.c.l.b16 %v334
      %v669 = vpack.c.b16 %v666, %v665
      %v670 = vpack.c.b16 %v668, %v667
      %v674 = vsel %vm357, %v660, 0
      %676 = vmatprep.subr.bf16.mxu0 0
      %677 = vmatpush1.bf16.msra.mxu0 %v669
      %678 = vmatprep.subr.bf16.mxu0 0
      %679 = vmatpush1.bf16.msra.mxu0 %v670
      %680 = vmatprep.subr.bf16.mxu0 0
      %681 = vmatpush1.bf16.msra.mxu0 0
      %682 = vmatprep.subr.bf16.mxu0 0
      %683 = vmatpush1.bf16.msra.mxu0 0
      %684 = vmatprep.subr.bf16.mxu0 0
      %685 = vmatpush1.bf16.msra.mxu0 0
      %686 = vmatprep.subr.bf16.mxu0 0
      %687 = vmatpush1.bf16.msra.mxu0 0
      %688 = vmatprep.subr.bf16.mxu0 0
      %689 = vmatpush1.bf16.msra.mxu0 0
      %690 = vmatprep.subr.bf16.mxu0 0
      %691 = vmatpush1.bf16.msra.mxu0 0
      %692 = vmatprep.subr.bf16.mxu0 0
      %693 = vmatpush1.bf16.msra.mxu0 0
      %694 = vmatprep.subr.bf16.mxu0 0
      %695 = vmatpush1.bf16.msra.mxu0 0
      %696 = vmatprep.subr.bf16.mxu0 0
      %697 = vmatpush1.bf16.msra.mxu0 0
      %698 = vmatprep.subr.bf16.mxu0 0
      %699 = vmatpush1.bf16.msra.mxu0 0
      %700 = vmatprep.subr.bf16.mxu0 0
      %701 = vmatpush1.bf16.msra.mxu0 0
      %702 = vmatprep.subr.bf16.mxu0 0
      %703 = vmatpush1.bf16.msra.mxu0 0
      %704 = vmatprep.subr.bf16.mxu0 0
      %705 = vmatpush1.bf16.msra.mxu0 0
      %706 = vmatprep.subr.bf16.mxu0 0
      %707 = vmatpush1.bf16.msra.mxu0 0
      %708 = vmatprep.mubr.bf16.mxu0 0
      %709 = vmatmul.mubr.bf16.gmra.mrb[0].mxu0 %v674
      %v710 = vpop.f32.mrb[0].mxu0
      %v711 = vadd.f32 0.0, %v710
      %v712 = vpop.f32.mrb[0].mxu0
      %v713 = vpop.f32.mrb[0].mxu0
      %v714 = vadd.f32 0.0, %v713
      %v715 = vpop.f32.mrb[0].mxu0
      %716 = vdwg.mxu0
      %v717 = vadd.f32 %v532, %v711
      %v718 = vadd.f32 %v533, %v714
      %719 = vrot.lane.b32.xlu0 %v354, 64
      %v720 = vpop.permute.xlu0 %719
      %721 = vrot.lane.b32.xlu0 %v355, 64
      %v722 = vpop.permute.xlu0 %721
      %v724 = vsel %vm357, %v720, 0
      %v727 = vsel %vm357, %v722, 0
      %729 = vmatprep.subr.bf16.mxu0 0
      %730 = vmatpush1.bf16.xpose.msra.mxu0 %v727
      %731 = vmatprep.subr.bf16.mxu0 0
      %732 = vmatpush1.bf16.xpose.msra.mxu0 0
      %733 = vmatprep.subr.bf16.mxu0 0
      %734 = vmatpush1.bf16.xpose.msra.mxu0 0
      %735 = vmatprep.subr.bf16.mxu0 0
      %736 = vmatpush1.bf16.xpose.msra.mxu0 0
      %737 = vmatprep.subr.bf16.mxu0 0
      %738 = vmatpush1.bf16.xpose.msra.mxu0 0
      %739 = vmatprep.subr.bf16.mxu0 0
      %740 = vmatpush1.bf16.xpose.msra.mxu0 0
      %741 = vmatprep.subr.bf16.mxu0 0
      %742 = vmatpush1.bf16.xpose.msra.mxu0 0
      %743 = vmatprep.subr.bf16.mxu0 0
      %744 = vmatpush1.bf16.xpose.msra.mxu0 0
      %745 = vmatprep.subr.bf16.mxu0 0
      %746 = vmatpush1.bf16.xpose.msra.mxu0 0
      %747 = vmatprep.subr.bf16.mxu0 0
      %748 = vmatpush1.bf16.xpose.msra.mxu0 0
      %749 = vmatprep.subr.bf16.mxu0 0
      %750 = vmatpush1.bf16.xpose.msra.mxu0 0
      %751 = vmatprep.subr.bf16.mxu0 0
      %752 = vmatpush1.bf16.xpose.msra.mxu0 0
      %753 = vmatprep.subr.bf16.mxu0 0
      %754 = vmatpush1.bf16.xpose.msra.mxu0 0
      %755 = vmatprep.subr.bf16.mxu0 0
      %756 = vmatpush1.bf16.xpose.msra.mxu0 0
      %757 = vmatprep.subr.bf16.mxu0 0
      %758 = vmatpush1.bf16.xpose.msra.mxu0 0
      %759 = vmatprep.subr.bf16.mxu0 0
      %760 = vmatpush1.bf16.xpose.msra.mxu0 0
      %761 = vmatprep.mubr.bf16.mxu0 0
      %762 = vmatmul.mubr.bf16.gmra.mrb[0].mxu0 %v724
      %v763 = vpop.f32.mrb[0].mxu0
      %v764 = vadd.f32 0.0, %v763
      %v765 = vpop.f32.mrb[0].mxu0
      %v766 = vpop.f32.mrb[0].mxu0
      %v767 = vadd.f32 0.0, %v766
      %v768 = vpop.f32.mrb[0].mxu0
      %769 = vdwg.mxu0
      %v770 = vmul.f32 %v764, 0.17677669
      %v771 = vmul.f32 %v767, 0.17677669
      %v772 = vsel %vm407, %v770, -inf
      %773 = vmax.xlane.f32.xlu0 %v772
      %v774 = vpop.xlane.xlu0 %773
      %v775 = vsel %vm407, %v771, -inf
      %776 = vmax.xlane.f32.xlu0 %v775
      %v777 = vpop.xlane.xlu0 %776
      %v778 = vsub.f32 %v770, %v774
      %v779 = vsub.f32 %v771, %v777
      %v780 = vmul.f32 %v778, 1.442695
      %v781 = vpow.pop %v780
      %v782 = vmul.f32 %v779, 1.442695
      %v783 = vpow.pop %v782
      %v784 = vsel %vm407, %v781, 0.0
      %785 = vadd.xlane.f32.xlu0 %v784
      %v786 = vpop.xlane.xlu0 %785
      %v787 = vsel %vm407, %v783, 0.0
      %788 = vadd.xlane.f32.xlu0 %v787
      %v789 = vpop.xlane.xlu0 %788
      %v790 = vrcp.pop %v786
      %v791 = vrcp.pop %v789
      %v792 = vmul.f32 %v781, %v790
      %v793 = vmul.f32 %v783, %v791
      %v794 = vpack.c.bf16 %v793, %v792
      %795 = vrot.lane.b32.xlu0 %v356, 64
      %v796 = vpop.permute.xlu0 %795
      %v799 = vsel %vm407, %v794, 0
      %801 = vmatprep.subr.bf16.mxu0 0
      %802 = vmatpush1.bf16.msra.mxu0 %v796
      %803 = vmatprep.subr.bf16.mxu0 0
      %804 = vmatpush1.bf16.msra.mxu0 0
      %805 = vmatprep.subr.bf16.mxu0 0
      %806 = vmatpush1.bf16.msra.mxu0 0
      %807 = vmatprep.subr.bf16.mxu0 0
      %808 = vmatpush1.bf16.msra.mxu0 0
      %809 = vmatprep.subr.bf16.mxu0 0
      %810 = vmatpush1.bf16.msra.mxu0 0
      %811 = vmatprep.subr.bf16.mxu0 0
      %812 = vmatpush1.bf16.msra.mxu0 0
      %813 = vmatprep.subr.bf16.mxu0 0
      %814 = vmatpush1.bf16.msra.mxu0 0
      %815 = vmatprep.subr.bf16.mxu0 0
      %816 = vmatpush1.bf16.msra.mxu0 0
      %817 = vmatprep.subr.bf16.mxu0 0
      %818 = vmatpush1.bf16.msra.mxu0 0
      %819 = vmatprep.subr.bf16.mxu0 0
      %820 = vmatpush1.bf16.msra.mxu0 0
      %821 = vmatprep.subr.bf16.mxu0 0
      %822 = vmatpush1.bf16.msra.mxu0 0
      %823 = vmatprep.subr.bf16.mxu0 0
      %824 = vmatpush1.bf16.msra.mxu0 0
      %825 = vmatprep.subr.bf16.mxu0 0
      %826 = vmatpush1.bf16.msra.mxu0 0
      %827 = vmatprep.subr.bf16.mxu0 0
      %828 = vmatpush1.bf16.msra.mxu0 0
      %829 = vmatprep.subr.bf16.mxu0 0
      %830 = vmatpush1.bf16.msra.mxu0 0
      %831 = vmatprep.subr.bf16.mxu0 0
      %832 = vmatpush1.bf16.msra.mxu0 0
      %833 = vmatprep.mubr.bf16.mxu0 0
      %834 = vmatmul.mubr.bf16.gmra.mrb[0].mxu0 %v799
      %v835 = vpop.f32.mrb[0].mxu0
      %v836 = vadd.f32 0.0, %v835
      %v837 = vpop.f32.mrb[0].mxu0
      %v838 = vpop.f32.mrb[0].mxu0
      %v839 = vadd.f32 0.0, %v838
      %v840 = vpop.f32.mrb[0].mxu0
      %841 = vdwg.mxu0
      %v842 = vpack.c.bf16 %v839, %v836
      %v847 = vunpack.c.l.b16 %v335
      %v848 = vunpack.c.l.b16 %v336
      %v849 = vunpack.c.l.b16 %v337
      %v850 = vunpack.c.l.b16 %v338
      %v851 = vpack.c.b16 %v848, %v847
      %v852 = vpack.c.b16 %v850, %v849
      %v856 = vsel %vm357, %v842, 0
      %858 = vmatprep.subr.bf16.mxu0 0
      %859 = vmatpush1.bf16.msra.mxu0 %v851
      %860 = vmatprep.subr.bf16.mxu0 0
      %861 = vmatpush1.bf16.msra.mxu0 %v852
      %862 = vmatprep.subr.bf16.mxu0 0
      %863 = vmatpush1.bf16.msra.mxu0 0
      %864 = vmatprep.subr.bf16.mxu0 0
      %865 = vmatpush1.bf16.msra.mxu0 0
      %866 = vmatprep.subr.bf16.mxu0 0
      %867 = vmatpush1.bf16.msra.mxu0 0
      %868 = vmatprep.subr.bf16.mxu0 0
      %869 = vmatpush1.bf16.msra.mxu0 0
      %870 = vmatprep.subr.bf16.mxu0 0
      %871 = vmatpush1.bf16.msra.mxu0 0
      %872 = vmatprep.subr.bf16.mxu0 0
      %873 = vmatpush1.bf16.msra.mxu0 0
      %874 = vmatprep.subr.bf16.mxu0 0
      %875 = vmatpush1.bf16.msra.mxu0 0
      %876 = vmatprep.subr.bf16.mxu0 0
      %877 = vmatpush1.bf16.msra.mxu0 0
      %878 = vmatprep.subr.bf16.mxu0 0
      %879 = vmatpush1.bf16.msra.mxu0 0
      %880 = vmatprep.subr.bf16.mxu0 0
      %881 = vmatpush1.bf16.msra.mxu0 0
      %882 = vmatprep.subr.bf16.mxu0 0
      %883 = vmatpush1.bf16.msra.mxu0 0
      %884 = vmatprep.subr.bf16.mxu0 0
      %885 = vmatpush1.bf16.msra.mxu0 0
      %886 = vmatprep.subr.bf16.mxu0 0
      %887 = vmatpush1.bf16.msra.mxu0 0
      %888 = vmatprep.subr.bf16.mxu0 0
      %889 = vmatpush1.bf16.msra.mxu0 0
      %890 = vmatprep.mubr.bf16.mxu0 0
      %891 = vmatmul.mubr.bf16.gmra.mrb[0].mxu0 %v856
      %v892 = vpop.f32.mrb[0].mxu0
      %v893 = vadd.f32 0.0, %v892
      %v894 = vpop.f32.mrb[0].mxu0
      %v895 = vpop.f32.mrb[0].mxu0
      %v896 = vadd.f32 0.0, %v895
      %v897 = vpop.f32.mrb[0].mxu0
      %898 = vdwg.mxu0
      %v899 = vadd.f32 %v717, %v893
      %v900 = vadd.f32 %v718, %v896
      %901 = vrot.lane.b32.xlu0 %v354, 32
      %v902 = vpop.permute.xlu0 %901
      %903 = vrot.lane.b32.xlu0 %v355, 32
      %v904 = vpop.permute.xlu0 %903
      %v906 = vsel %vm357, %v902, 0
      %v909 = vsel %vm357, %v904, 0
      %911 = vmatprep.subr.bf16.mxu0 0
      %912 = vmatpush1.bf16.xpose.msra.mxu0 %v909
      %913 = vmatprep.subr.bf16.mxu0 0
      %914 = vmatpush1.bf16.xpose.msra.mxu0 0
      %915 = vmatprep.subr.bf16.mxu0 0
      %916 = vmatpush1.bf16.xpose.msra.mxu0 0
      %917 = vmatprep.subr.bf16.mxu0 0
      %918 = vmatpush1.bf16.xpose.msra.mxu0 0
      %919 = vmatprep.subr.bf16.mxu0 0
      %920 = vmatpush1.bf16.xpose.msra.mxu0 0
      %921 = vmatprep.subr.bf16.mxu0 0
      %922 = vmatpush1.bf16.xpose.msra.mxu0 0
      %923 = vmatprep.subr.bf16.mxu0 0
      %924 = vmatpush1.bf16.xpose.msra.mxu0 0
      %925 = vmatprep.subr.bf16.mxu0 0
      %926 = vmatpush1.bf16.xpose.msra.mxu0 0
      %927 = vmatprep.subr.bf16.mxu0 0
      %928 = vmatpush1.bf16.xpose.msra.mxu0 0
      %929 = vmatprep.subr.bf16.mxu0 0
      %930 = vmatpush1.bf16.xpose.msra.mxu0 0
      %931 = vmatprep.subr.bf16.mxu0 0
      %932 = vmatpush1.bf16.xpose.msra.mxu0 0
      %933 = vmatprep.subr.bf16.mxu0 0
      %934 = vmatpush1.bf16.xpose.msra.mxu0 0
      %935 = vmatprep.subr.bf16.mxu0 0
      %936 = vmatpush1.bf16.xpose.msra.mxu0 0
      %937 = vmatprep.subr.bf16.mxu0 0
      %938 = vmatpush1.bf16.xpose.msra.mxu0 0
      %939 = vmatprep.subr.bf16.mxu0 0
      %940 = vmatpush1.bf16.xpose.msra.mxu0 0
      %941 = vmatprep.subr.bf16.mxu0 0
      %942 = vmatpush1.bf16.xpose.msra.mxu0 0
      %943 = vmatprep.mubr.bf16.mxu0 0
      %944 = vmatmul.mubr.bf16.gmra.mrb[0].mxu0 %v906
      %v945 = vpop.f32.mrb[0].mxu0
      %v946 = vadd.f32 0.0, %v945
      %v947 = vpop.f32.mrb[0].mxu0
      %v948 = vpop.f32.mrb[0].mxu0
      %v949 = vadd.f32 0.0, %v948
      %v950 = vpop.f32.mrb[0].mxu0
      %951 = vdwg.mxu0
      %v952 = vmul.f32 %v946, 0.17677669
      %v953 = vmul.f32 %v949, 0.17677669
      %v954 = vsel %vm407, %v952, -inf
      %955 = vmax.xlane.f32.xlu0 %v954
      %v956 = vpop.xlane.xlu0 %955
      %v957 = vsel %vm407, %v953, -inf
      %958 = vmax.xlane.f32.xlu0 %v957
      %v959 = vpop.xlane.xlu0 %958
      %v960 = vsub.f32 %v952, %v956
      %v961 = vsub.f32 %v953, %v959
      %v962 = vmul.f32 %v960, 1.442695
      %v963 = vpow.pop %v962
      %v964 = vmul.f32 %v961, 1.442695
      %v965 = vpow.pop %v964
      %v966 = vsel %vm407, %v963, 0.0
      %967 = vadd.xlane.f32.xlu0 %v966
      %v968 = vpop.xlane.xlu0 %967
      %v969 = vsel %vm407, %v965, 0.0
      %970 = vadd.xlane.f32.xlu0 %v969
      %v971 = vpop.xlane.xlu0 %970
      %v972 = vrcp.pop %v968
      %v973 = vrcp.pop %v971
      %v974 = vmul.f32 %v963, %v972
      %v975 = vmul.f32 %v965, %v973
      %v976 = vpack.c.bf16 %v975, %v974
      %977 = vrot.lane.b32.xlu0 %v356, 32
      %v978 = vpop.permute.xlu0 %977
      %v981 = vsel %vm407, %v976, 0
      %983 = vmatprep.subr.bf16.mxu0 0
      %984 = vmatpush1.bf16.msra.mxu0 %v978
      %985 = vmatprep.subr.bf16.mxu0 0
      %986 = vmatpush1.bf16.msra.mxu0 0
      %987 = vmatprep.subr.bf16.mxu0 0
      %988 = vmatpush1.bf16.msra.mxu0 0
      %989 = vmatprep.subr.bf16.mxu0 0
      %990 = vmatpush1.bf16.msra.mxu0 0
      %991 = vmatprep.subr.bf16.mxu0 0
      %992 = vmatpush1.bf16.msra.mxu0 0
      %993 = vmatprep.subr.bf16.mxu0 0
      %994 = vmatpush1.bf16.msra.mxu0 0
      %995 = vmatprep.subr.bf16.mxu0 0
      %996 = vmatpush1.bf16.msra.mxu0 0
      %997 = vmatprep.subr.bf16.mxu0 0
      %998 = vmatpush1.bf16.msra.mxu0 0
      %999 = vmatprep.subr.bf16.mxu0 0
      %1000 = vmatpush1.bf16.msra.mxu0 0
      %1001 = vmatprep.subr.bf16.mxu0 0
      %1002 = vmatpush1.bf16.msra.mxu0 0
      %1003 = vmatprep.subr.bf16.mxu0 0
      %1004 = vmatpush1.bf16.msra.mxu0 0
      %1005 = vmatprep.subr.bf16.mxu0 0
      %1006 = vmatpush1.bf16.msra.mxu0 0
      %1007 = vmatprep.subr.bf16.mxu0 0
      %1008 = vmatpush1.bf16.msra.mxu0 0
      %1009 = vmatprep.subr.bf16.mxu0 0
      %1010 = vmatpush1.bf16.msra.mxu0 0
      %1011 = vmatprep.subr.bf16.mxu0 0
      %1012 = vmatpush1.bf16.msra.mxu0 0
      %1013 = vmatprep.subr.bf16.mxu0 0
      %1014 = vmatpush1.bf16.msra.mxu0 0
      %1015 = vmatprep.mubr.bf16.mxu0 0
      %1016 = vmatmul.mubr.bf16.gmra.mrb[0].mxu0 %v981
      %v1017 = vpop.f32.mrb[0].mxu0
      %v1018 = vadd.f32 0.0, %v1017
      %v1019 = vpop.f32.mrb[0].mxu0
      %v1020 = vpop.f32.mrb[0].mxu0
      %v1021 = vadd.f32 0.0, %v1020
      %v1022 = vpop.f32.mrb[0].mxu0
      %1023 = vdwg.mxu0
      %v1024 = vpack.c.bf16 %v1021, %v1018
      %v1029 = vunpack.c.l.b16 %v339
      %v1030 = vunpack.c.l.b16 %v340
      %v1031 = vunpack.c.l.b16 %v341
      %v1032 = vunpack.c.l.b16 %v342
      %v1033 = vpack.c.b16 %v1030, %v1029
      %v1034 = vpack.c.b16 %v1032, %v1031
      %v1038 = vsel %vm357, %v1024, 0
      %1040 = vmatprep.subr.bf16.mxu0 0
      %1041 = vmatpush1.bf16.msra.mxu0 %v1033
      %1042 = vmatprep.subr.bf16.mxu0 0
      %1043 = vmatpush1.bf16.msra.mxu0 %v1034
      %1044 = vmatprep.subr.bf16.mxu0 0
      %1045 = vmatpush1.bf16.msra.mxu0 0
      %1046 = vmatprep.subr.bf16.mxu0 0
      %1047 = vmatpush1.bf16.msra.mxu0 0
      %1048 = vmatprep.subr.bf16.mxu0 0
      %1049 = vmatpush1.bf16.msra.mxu0 0
      %1050 = vmatprep.subr.bf16.mxu0 0
      %1051 = vmatpush1.bf16.msra.mxu0 0
      %1052 = vmatprep.subr.bf16.mxu0 0
      %1053 = vmatpush1.bf16.msra.mxu0 0
      %1054 = vmatprep.subr.bf16.mxu0 0
      %1055 = vmatpush1.bf16.msra.mxu0 0
      %1056 = vmatprep.subr.bf16.mxu0 0
      %1057 = vmatpush1.bf16.msra.mxu0 0
      %1058 = vmatprep.subr.bf16.mxu0 0
      %1059 = vmatpush1.bf16.msra.mxu0 0
      %1060 = vmatprep.subr.bf16.mxu0 0
      %1061 = vmatpush1.bf16.msra.mxu0 0
      %1062 = vmatprep.subr.bf16.mxu0 0
      %1063 = vmatpush1.bf16.msra.mxu0 0
      %1064 = vmatprep.subr.bf16.mxu0 0
      %1065 = vmatpush1.bf16.msra.mxu0 0
      %1066 = vmatprep.subr.bf16.mxu0 0
      %1067 = vmatpush1.bf16.msra.mxu0 0
      %1068 = vmatprep.subr.bf16.mxu0 0
      %1069 = vmatpush1.bf16.msra.mxu0 0
      %1070 = vmatprep.subr.bf16.mxu0 0
      %1071 = vmatpush1.bf16.msra.mxu0 0
      %1072 = vmatprep.mubr.bf16.mxu0 0
      %1073 = vmatmul.mubr.bf16.gmra.mrb[0].mxu0 %v1038
      %v1074 = vpop.f32.mrb[0].mxu0
      %v1075 = vadd.f32 0.0, %v1074
      %v1076 = vpop.f32.mrb[0].mxu0
      %v1077 = vpop.f32.mrb[0].mxu0
      %v1078 = vadd.f32 0.0, %v1077
      %v1079 = vpop.f32.mrb[0].mxu0
      %1080 = vdwg.mxu0
      %v1081 = vadd.f32 %v899, %v1075
      %v1082 = vadd.f32 %v900, %v1078
      %1083 = vst [vmem:[%s318] sm:$0xff] %v1081
      %1084 = vst [vmem:[%s318 + $0x8] sm:$0xff] %v1082
      %s1085 = smul.u32 2, %s21
      %p1086 = scmp.lt.s32.totalorder %s20, 1
      %s1087 = scalar_select %p1086, %s20, 1
      %p1088 = scmp.lt.s32.totalorder %s1085, 1
      %s1089 = scalar_select %p1088, %s1085, 1
      %s1090 = smul.addr %s1087, 2
      %s1091 = sadd.s32 %s1089, %s1090
      %s1092 = smul.addr %s1091, 8
      %s1093 = scalar_lea.vmem %s5, %s1092
      // Predicated region
      $region41: #{decoder_forward.10} parent=39 // pred_check
        %p1094 = pneg %p172
      $region42: #{decoder_forward.10} parent=39 // pred_check_branch
        %1096 = sbr.rel (%p1094) target = $region44
      $region43: #{decoder_forward.10} parent=39 // pred_region
        %s1097 = smul.u32 2, %s21
      $region44: #{decoder_forward.10} parent=39 // pred_fallthru
        _
    $region40: #{decoder_forward.10} parent=5 // pred_fallthru
      _
    %p1098 = scmp.le.s32.totalorder 2, %s11
    // Predicated region
    $region45: #{decoder_forward.10} parent=5 // pred_check
      %p1099 = pneg %p1098
    $region46: #{decoder_forward.10} parent=5 // pred_check_branch
      %1101 = sbr.rel (%p1099) target = $region48
    $region47: #{decoder_forward.10} parent=5 // pred_region
      %s1102 = ssub.s32 %s11, 2
      // Predicated region
      $region49: #{decoder_forward.10} parent=47 // pred_check
        %p1103 = pneg %p178
      $region50: #{decoder_forward.10} parent=47 // pred_check_branch
        %1105 = sbr.rel (%p1103) target = $region52
      $region51: #{decoder_forward.10} parent=47 // pred_region
        %s1106 = smul.u32 2, %s23
        %p1107 = scmp.lt.s32.totalorder %s22, 1
        %s1108 = scalar_select %p1107, %s22, 1
        %p1109 = scmp.lt.s32.totalorder %s1106, 1
        %s1110 = scalar_select %p1109, %s1106, 1
        %s1111 = smul.addr %s1108, 2
        %s1112 = sadd.s32 %s1110, %s1111
        %s1113 = smul.addr %s1112, 8
        %s1114 = scalar_lea.vmem %s5, %s1113
      $region52: #{decoder_forward.10} parent=47 // pred_fallthru
        _
    $region48: #{decoder_forward.10} parent=5 // pred_fallthru
      _
  $region6: #{decoder_forward.10} parent=0 // loop_footer
    %s15 = sadd.s32 1, %s11
  $region7: #{decoder_forward.10} parent=0 // loop_footer_branch
    %10 = sbr.rel target = $region3
  $region8: #{decoder_forward.10} parent=0 // loop_exit
    _

</llo_original>
